<compile_context>
chip_gen: v5e
topology: v5e:2x2
jax: 0.10.0
libtpu: 0.0.40
codegen_flags: <defaults>
</compile_context>

<pallas_src>
import functools

import jax
import jax.numpy as jnp
from jax import lax
from jax.experimental import pallas as pl
from jax.experimental.pallas import tpu as pltpu


LEAKY_SLOPE = 0.2
IN_EPS = 1e-5


def _round_up(x, m):
    return (x + m - 1) // m * m


def _pick_samples_per_block(n, rows):
    """Batch samples into one M tile for small late layers, but keep >= 2
    parallel M blocks when possible (v7x has 2 TensorCores per chip)."""
    if n <= 1 or rows >= 256:
        return 1
    spb = min(n, max(1, 256 // rows), max(1, n // 2))
    while n % spb != 0:
        spb -= 1
    return spb


# ----------------------------- Pallas kernels -------------------------------


def _conv_block_kernel(*refs, samples, rows, fuse_instnorm, eps, slope):
    """Conv-as-GEMM (single K tile) + optional fused InstanceNorm + LeakyReLU.

    refs (fuse_instnorm=True):  a(tm,K) bf16, b(K,C) bf16, g(1,C) f32, bb(1,C) f32, o(tm,C)
    refs (fuse_instnorm=False): a(tm,K) bf16, b(K,C) bf16, o(tm,C)
    tm = samples * rows, rows = OH*OW of one sample.
    """
    if fuse_instnorm:
        a_ref, b_ref, g_ref, bb_ref, o_ref = refs
    else:
        a_ref, b_ref, o_ref = refs

    # Whole K contraction in one MXU call -- no K grid axis, no accumulator.
    y = jnp.dot(a_ref[...], b_ref[...], preferred_element_type=jnp.float32)

    if fuse_instnorm:
        c = y.shape[-1]
        inv_n = 1.0 / rows
        if samples == 1:
            # Rows of this tile span exactly one sample's spatial extent.
            mean = jnp.sum(y, axis=0, keepdims=True) * inv_n
            mean_sq = jnp.sum(y * y, axis=0, keepdims=True) * inv_n
            var = jnp.maximum(mean_sq - mean * mean, 0.0)
            scale = g_ref[...] * lax.rsqrt(var + eps)          # gamma folded in
            shift = bb_ref[...] - mean * scale                 # beta folded in
            y = y * scale + shift
        else:
            # Multiple samples packed into one tile: per-sample stats over axis 1.
            ys = y.reshape(samples, rows, c)
            mean = jnp.sum(ys, axis=1, keepdims=True) * inv_n
            mean_sq = jnp.sum(ys * ys, axis=1, keepdims=True) * inv_n
            var = jnp.maximum(mean_sq - mean * mean, 0.0)
            scale = g_ref[...].reshape(1, 1, c) * lax.rsqrt(var + eps)
            shift = bb_ref[...].reshape(1, 1, c) - mean * scale
            y = (ys * scale + shift).reshape(samples * rows, c)

    y = jnp.maximum(y, slope * y)          # LeakyReLU(0.2)
    o_ref[...] = y.astype(o_ref.dtype)


def _tail_block_kernel(a_ref, b_ref, g_ref, bb_ref, w5_ref, o_ref, *,
                       samples, rows, eps, slope):
    """Fused layer 4 + layer 5:
    Conv(k4,s2,p1) + InstanceNorm(affine) + LeakyReLU + Conv(k4,s1,p0) -> (N, 1).

    a: (N*rows, K) bf16, b: (K, C) bf16, g/bb: (1, C) f32,
    w5: (rows, C) f32 with w5[h*OW+w, c] == torch_w5[0, c, h, w],  o: (N, 1) f32.
    The layer-4 activation stays in registers/VMEM -- never written to HBM.
    """
    y = jnp.dot(a_ref[...], b_ref[...], preferred_element_type=jnp.float32)
    c = y.shape[-1]
    ys = y.reshape(samples, rows, c)

    inv_n = 1.0 / rows
    mean = jnp.sum(ys, axis=1, keepdims=True) * inv_n
    mean_sq = jnp.sum(ys * ys, axis=1, keepdims=True) * inv_n
    var = jnp.maximum(mean_sq - mean * mean, 0.0)
    scale = g_ref[...].reshape(1, 1, c) * lax.rsqrt(var + eps)
    shift = bb_ref[...].reshape(1, 1, c) - mean * scale
    ys = ys * scale + shift
    ys = jnp.maximum(ys, slope * ys)

    # Layer 5: full-extent 4x4 conv == per-sample contraction with w5.
    w5 = w5_ref[...].reshape(1, rows, c)
    partial = jnp.sum(ys * w5, axis=1)                       # (samples, C)
    o_ref[...] = jnp.sum(partial, axis=1, keepdims=True)     # (samples, 1)


# ------------------------------ JAX wrappers ---------------------------------


def conv_block_pallas(x, w, gamma=None, beta=None, *, stride, pad,
                      fuse_instnorm, samples_per_block=None):
    """Bias-free Conv2d (+ optional InstanceNorm affine) + LeakyReLU.

    x: (N, H, W, Cin) NHWC.  w: (Cout, Cin, k, k) PyTorch layout.
    Returns (N, OH, OW, Cout) bfloat16 (true channel count, no padding).
    """
    N, H, W, Cin = x.shape
    Cout, Cin_w, kh, kw = w.shape
    assert Cin == Cin_w and kh == kw
    ksz = kh

    cin_pad = _round_up(Cin, 8)          # -> Kdim = cin_pad*16 is a multiple of 128

    xp = x.astype(jnp.bfloat16)
    if cin_pad != Cin:
        xp = jnp.pad(xp, ((0, 0), (0, 0), (0, 0), (0, cin_pad - Cin)))

    # im2col via XLA patch extraction; feature order = (c, kh, kw)
    patches = lax.conv_general_dilated_patches(
        xp, filter_shape=(ksz, ksz), window_strides=(stride, stride),
        padding=((pad, pad), (pad, pad)),
        dimension_numbers=("NHWC", "HWIO", "NHWC"))
    OH, OW = patches.shape[1], patches.shape[2]
    rows = OH * OW
    Kdim = cin_pad * ksz * ksz
    A = patches.reshape(N * rows, Kdim)

    # Weights -> (K, Cout) bf16, rows ordered (c, kh, kw); no Cout padding.
    wp = w.astype(jnp.bfloat16)
    if cin_pad != Cin:
        wp = jnp.pad(wp, ((0, 0), (0, cin_pad - Cin), (0, 0), (0, 0)))
    B = wp.transpose(1, 2, 3, 0).reshape(Kdim, Cout)

    if samples_per_block is None:
        samples_per_block = _pick_samples_per_block(N, rows)
    spb = samples_per_block
    assert N % spb == 0
    tm = spb * rows
    assert tm % 16 == 0, "bf16 A tile must be sublane-pack aligned"
    assert Cout <= 128, "single Cout tile assumed for this model size"
    tn = Cout

    grid = (N // spb, 1)

    kernel = functools.partial(
        _conv_block_kernel, samples=spb, rows=rows,
        fuse_instnorm=fuse_instnorm, eps=IN_EPS, slope=LEAKY_SLOPE)

    in_specs = [
        pl.BlockSpec((tm, Kdim), lambda i, j: (i, 0)),
        pl.BlockSpec((Kdim, tn), lambda i, j: (0, j)),
    ]
    operands = [A, B]
    if fuse_instnorm:
        g = gamma.astype(jnp.float32).reshape(1, Cout)
        bb = beta.astype(jnp.float32).reshape(1, Cout)
        in_specs += [pl.BlockSpec((1, tn), lambda i, j: (0, j)),
                     pl.BlockSpec((1, tn), lambda i, j: (0, j))]
        operands += [g, bb]

    cost = pl.CostEstimate(
        flops=2 * N * rows * Kdim * Cout,
        transcendentals=(N * Cout if fuse_instnorm else 0),
        bytes_accessed=int(A.size) * 2 + int(B.size) * 2 + N * rows * Cout * 2)

    out = pl.pallas_call(
        kernel,
        out_shape=jax.ShapeDtypeStruct((N * rows, Cout), jnp.bfloat16),
        grid_spec=pltpu.PrefetchScalarGridSpec(
            num_scalar_prefetch=0,
            grid=grid,
            in_specs=in_specs,
            out_specs=pl.BlockSpec((tm, tn), lambda i, j: (i, j)),
        ),
        compiler_params=pltpu.CompilerParams(
            dimension_semantics=("parallel", "parallel")),
        cost_estimate=cost,
    )(*operands)

    return out.reshape(N, OH, OW, Cout)


def tail_block_pallas(x, w4, gamma, beta, w5):
    """Layers 4+5 fused: Conv(k4,s2,p1)+IN+LeakyReLU+Conv(k4,s1,p0) -> (N, 1)."""
    N, H, W, Cin = x.shape
    Cout = w4.shape[0]
    ksz = w4.shape[2]
    cin_pad = _round_up(Cin, 8)

    xp = x.astype(jnp.bfloat16)
    if cin_pad != Cin:
        xp = jnp.pad(xp, ((0, 0), (0, 0), (0, 0), (0, cin_pad - Cin)))
    patches = lax.conv_general_dilated_patches(
        xp, filter_shape=(ksz, ksz), window_strides=(2, 2),
        padding=((1, 1), (1, 1)),
        dimension_numbers=("NHWC", "HWIO", "NHWC"))
    OH, OW = patches.shape[1], patches.shape[2]
    rows = OH * OW
    Kdim = cin_pad * ksz * ksz
    A = patches.reshape(N * rows, Kdim)

    wp = w4.astype(jnp.bfloat16)
    if cin_pad != Cin:
        wp = jnp.pad(wp, ((0, 0), (0, cin_pad - Cin), (0, 0), (0, 0)))
    B = wp.transpose(1, 2, 3, 0).reshape(Kdim, Cout)

    g = gamma.astype(jnp.float32).reshape(1, Cout)
    bb = beta.astype(jnp.float32).reshape(1, Cout)

    assert w5.shape == (1, Cout, OH, OW), "final conv must consume the full 4x4 map"
    # w5t[h*OW+w, c] = w5[0, c, h, w] -- matches the (spatial-row, channel) tile layout.
    w5t = w5[0].astype(jnp.float32).transpose(1, 2, 0).reshape(rows, Cout)

    kernel = functools.partial(_tail_block_kernel, samples=N, rows=rows,
                               eps=IN_EPS, slope=LEAKY_SLOPE)
    cost = pl.CostEstimate(
        flops=2 * N * rows * Kdim * Cout + 2 * N * rows * Cout,
        transcendentals=N * Cout,
        bytes_accessed=int(A.size) * 2 + int(B.size) * 2 + int(w5t.size) * 4 + N * 4)

    out = pl.pallas_call(
        kernel,
        out_shape=jax.ShapeDtypeStruct((N, 1), jnp.float32),
        grid_spec=pltpu.PrefetchScalarGridSpec(
            num_scalar_prefetch=0,
            grid=(1,),
            in_specs=[
                pl.BlockSpec((N * rows, Kdim), lambda i: (0, 0)),
                pl.BlockSpec((Kdim, Cout), lambda i: (0, 0)),
                pl.BlockSpec((1, Cout), lambda i: (0, 0)),
                pl.BlockSpec((1, Cout), lambda i: (0, 0)),
                pl.BlockSpec((rows, Cout), lambda i: (0, 0)),
            ],
            out_specs=pl.BlockSpec((N, 1), lambda i: (0, 0)),
        ),
        compiler_params=pltpu.CompilerParams(dimension_semantics=("arbitrary",)),
        cost_estimate=cost,
    )(A, B, g, bb, w5t)
    return out


def init_params(key, in_channels, features_d):
    """Synthetic parameters in PyTorch layouts: conv weights (Cout, Cin, k, k)."""
    fd = features_d
    ks = jax.random.split(key, 11)
    scale = 0.05

    def w(k_, cout, cin):
        return scale * jax.random.normal(k_, (cout, cin, 4, 4), dtype=jnp.float32)

    return {
        "w1": w(ks[0], fd, in_channels),
        "w2": w(ks[1], fd * 2, fd),
        "g2": 1.0 + 0.1 * jax.random.normal(ks[2], (fd * 2,), dtype=jnp.float32),
        "b2": 0.1 * jax.random.normal(ks[3], (fd * 2,), dtype=jnp.float32),
        "w3": w(ks[4], fd * 4, fd * 2),
        "g3": 1.0 + 0.1 * jax.random.normal(ks[5], (fd * 4,), dtype=jnp.float32),
        "b3": 0.1 * jax.random.normal(ks[6], (fd * 4,), dtype=jnp.float32),
        "w4": w(ks[7], fd * 8, fd * 4),
        "g4": 1.0 + 0.1 * jax.random.normal(ks[8], (fd * 8,), dtype=jnp.float32),
        "b4": 0.1 * jax.random.normal(ks[9], (fd * 8,), dtype=jnp.float32),
        "w5": w(ks[10], 1, fd * 8),
    }


def critic_forward(x_nchw, params):
    """Forward pass. Input NCHW, output NCHW (N, 1, 1, 1) float32."""
    x = jnp.transpose(x_nchw, (0, 2, 3, 1))                     # NCHW -> NHWC

    # Layer 1: Conv + LeakyReLU (fused)
    x = conv_block_pallas(x, params["w1"], stride=2, pad=1, fuse_instnorm=False)
    # Layers 2-3: Conv + InstanceNorm(affine) + LeakyReLU, one kernel each
    x = conv_block_pallas(x, params["w2"], params["g2"], params["b2"],
                          stride=2, pad=1, fuse_instnorm=True)
    x = conv_block_pallas(x, params["w3"], params["g3"], params["b3"],
                          stride=2, pad=1, fuse_instnorm=True)
    # Layers 4+5 fused into a single pallas_call -> (N, 1) scores
    assert x.shape[1] == 8 and x.shape[2] == 8, "Critic expects 64x64 spatial input"
    scores = tail_block_pallas(x, params["w4"], params["g4"], params["b4"],
                               params["w5"])
    N = scores.shape[0]
    return scores.reshape(N, 1, 1, 1)                            # == NCHW


if __name__ == "__main__":
    # The architecture (four stride-2 convs + final k4/s1/p0 conv) requires 64x64 input
    # to produce a (N, 1, 1, 1) output.  batch=4 also exercises multi-sample M tiles.
    batch, in_channels, spatial, features_d = 4, 3, 64, 8

    key = jax.random.PRNGKey(0)
    k_x, k_p = jax.random.split(key)
    x = jax.random.normal(k_x, (batch, in_channels, spatial, spatial), dtype=jnp.float32)
    params = init_params(k_p, in_channels, features_d)

    fwd = jax.jit(critic_forward)
    out = jax.block_until_ready(fwd(x, params))

    assert out.shape == (batch, 1, 1, 1), out.shape
    assert out.dtype == jnp.float32
    assert bool(jnp.all(jnp.isfinite(out)))
    print("KERNEL_OK")
</pallas_src>

<mosaic_0001>
module attributes {stable_mosaic.version = 11 : i64} {
  func.func @_conv_block_kernel(%arg0: i32, %arg1: i32, %arg2: memref<1024x128xbf16, #tpu.memory_space<vmem>>, %arg3: memref<128x8xbf16, #tpu.memory_space<vmem>>, %arg4: memref<1024x8xbf16, #tpu.memory_space<vmem>>) attributes {dimension_semantics = [#tpu.dimension_semantics<parallel>, #tpu.dimension_semantics<parallel>], iteration_bounds = array<i64: 4, 1>, scalar_prefetch = 0 : i64, scratch_operands = 0 : i64, tpu.core_type = #tpu.core_type<tc>, window_params = [{transform_indices = @transform_0, window_bounds = array<i64: 1024, 128>}, {transform_indices = @transform_1, window_bounds = array<i64: 128, 8>}, {transform_indices = @transform_2, window_bounds = array<i64: 1024, 8>}]} {
    %c0 = arith.constant 0 : index
    %c0_0 = arith.constant 0 : index
    %0 = vector.load %arg2[%c0, %c0_0] : memref<1024x128xbf16, #tpu.memory_space<vmem>>, vector<1024x128xbf16>
    %c0_1 = arith.constant 0 : index
    %c0_2 = arith.constant 0 : index
    %1 = vector.load %arg3[%c0_1, %c0_2] : memref<128x8xbf16, #tpu.memory_space<vmem>>, vector<128x8xbf16>
    %cst = arith.constant dense<0.000000e+00> : vector<1024x8xf32>
    %2 = tpu.matmul %0, %1, %cst {dimension_numbers = #tpu.dot_dimension_numbers<[1], [0], [0], [1], [0, 0, 1, 1], [], []>} : vector<1024x128xbf16>, vector<128x8xbf16>, vector<1024x8xf32> -> vector<1024x8xf32>
    %cst_3 = arith.constant 2.000000e-01 : f32
    %3 = vector.broadcast %cst_3 : f32 to vector<1024x8xf32>
    %4 = arith.mulf %3, %2 : vector<1024x8xf32>
    %5 = arith.maximumf %2, %4 : vector<1024x8xf32>
    %6 = arith.truncf %5 : vector<1024x8xf32> to vector<1024x8xbf16>
    %c0_4 = arith.constant 0 : index
    %c0_5 = arith.constant 0 : index
    %7 = vector.load %arg4[%c0_4, %c0_5] : memref<1024x8xbf16, #tpu.memory_space<vmem>>, vector<1024x8xbf16>
    tpu.vector_store %arg4[%c0_4, %c0_5], %6 {strides = array<i32>} : memref<1024x8xbf16, #tpu.memory_space<vmem>>, vector<1024x8xbf16>,
    return
  }
  func.func @transform_0(%arg0: i32, %arg1: i32) -> (i32, i32) {
    %c0_i32 = arith.constant 0 : i32
    %c0_i32_0 = arith.constant 0 : i32
    return %arg0, %c0_i32 : i32, i32
  }
  func.func @transform_1(%arg0: i32, %arg1: i32) -> (i32, i32) {
    %c0_i32 = arith.constant 0 : i32
    %c0_i32_0 = arith.constant 0 : i32
    return %c0_i32, %arg1 : i32, i32
  }
  func.func @transform_2(%arg0: i32, %arg1: i32) -> (i32, i32) {
    %c0_i32 = arith.constant 0 : i32
    return %arg0, %arg1 : i32, i32
  }
}

module attributes {stable_mosaic.version = 11 : i64} {
  func.func @_conv_block_kernel(%arg0: i32, %arg1: i32, %arg2: memref<256x128xbf16, #tpu.memory_space<vmem>>, %arg3: memref<128x16xbf16, #tpu.memory_space<vmem>>, %arg4: memref<1x16xf32, #tpu.memory_space<vmem>>, %arg5: memref<1x16xf32, #tpu.memory_space<vmem>>, %arg6: memref<256x16xbf16, #tpu.memory_space<vmem>>) attributes {dimension_semantics = [#tpu.dimension_semantics<parallel>, #tpu.dimension_semantics<parallel>], iteration_bounds = array<i64: 4, 1>, scalar_prefetch = 0 : i64, scratch_operands = 0 : i64, tpu.core_type = #tpu.core_type<tc>, window_params = [{transform_indices = @transform_0, window_bounds = array<i64: 256, 128>}, {transform_indices = @transform_1, window_bounds = array<i64: 128, 16>}, {transform_indices = @transform_2, window_bounds = array<i64: 1, 16>}, {transform_indices = @transform_3, window_bounds = array<i64: 1, 16>}, {transform_indices = @transform_4, window_bounds = array<i64: 256, 16>}]} {
    %c0 = arith.constant 0 : index
    %c0_0 = arith.constant 0 : index
    %0 = vector.load %arg2[%c0, %c0_0] : memref<256x128xbf16, #tpu.memory_space<vmem>>, vector<256x128xbf16>
    %c0_1 = arith.constant 0 : index
    %c0_2 = arith.constant 0 : index
    %1 = vector.load %arg3[%c0_1, %c0_2] : memref<128x16xbf16, #tpu.memory_space<vmem>>, vector<128x16xbf16>
    %cst = arith.constant dense<0.000000e+00> : vector<256x16xf32>
    %2 = tpu.matmul %0, %1, %cst {dimension_numbers = #tpu.dot_dimension_numbers<[1], [0], [0], [1], [0, 0, 1, 1], [], []>} : vector<256x128xbf16>, vector<128x16xbf16>, vector<256x16xf32> -> vector<256x16xf32>
    %cst_3 = arith.constant dense<0.000000e+00> : vector<16xf32>
    %3 = vector.multi_reduction <add>, %2, %cst_3 [0] : vector<256x16xf32> to vector<16xf32>
    %4 = vector.shape_cast %3 : vector<16xf32> to vector<1x16xf32>
    %cst_4 = arith.constant 3.906250e-03 : f32
    %5 = vector.broadcast %cst_4 : f32 to vector<1x16xf32>
    %6 = arith.mulf %4, %5 : vector<1x16xf32>
    %7 = arith.mulf %2, %2 : vector<256x16xf32>
    %cst_5 = arith.constant dense<0.000000e+00> : vector<16xf32>
    %8 = vector.multi_reduction <add>, %7, %cst_5 [0] : vector<256x16xf32> to vector<16xf32>
    %9 = vector.shape_cast %8 : vector<16xf32> to vector<1x16xf32>
    %cst_6 = arith.constant 3.906250e-03 : f32
    %10 = vector.broadcast %cst_6 : f32 to vector<1x16xf32>
    %11 = arith.mulf %9, %10 : vector<1x16xf32>
    %12 = arith.mulf %6, %6 : vector<1x16xf32>
    %13 = arith.subf %11, %12 : vector<1x16xf32>
    %cst_7 = arith.constant 0.000000e+00 : f32
    %14 = vector.broadcast %cst_7 : f32 to vector<1x16xf32>
    %15 = arith.maximumf %13, %14 : vector<1x16xf32>
    %c0_8 = arith.constant 0 : index
    %c0_9 = arith.constant 0 : index
    %16 = vector.load %arg4[%c0_8, %c0_9] : memref<1x16xf32, #tpu.memory_space<vmem>>, vector<1x16xf32>
    %cst_10 = arith.constant 9.99999974E-6 : f32
    %17 = vector.broadcast %cst_10 : f32 to vector<1x16xf32>
    %18 = arith.addf %15, %17 : vector<1x16xf32>
    %19 = math.rsqrt %18 : vector<1x16xf32>
    %20 = arith.mulf %16, %19 : vector<1x16xf32>
    %c0_11 = arith.constant 0 : index
    %c0_12 = arith.constant 0 : index
    %21 = vector.load %arg5[%c0_11, %c0_12] : memref<1x16xf32, #tpu.memory_space<vmem>>, vector<1x16xf32>
    %22 = arith.mulf %6, %20 : vector<1x16xf32>
    %23 = arith.subf %21, %22 : vector<1x16xf32>
    %24 = vector.broadcast %20 : vector<1x16xf32> to vector<256x16xf32>
    %25 = arith.mulf %2, %24 : vector<256x16xf32>
    %26 = vector.broadcast %23 : vector<1x16xf32> to vector<256x16xf32>
    %27 = arith.addf %25, %26 : vector<256x16xf32>
    %cst_13 = arith.constant 2.000000e-01 : f32
    %28 = vector.broadcast %cst_13 : f32 to vector<256x16xf32>
    %29 = arith.mulf %28, %27 : vector<256x16xf32>
    %30 = arith.maximumf %27, %29 : vector<256x16xf32>
    %31 = arith.truncf %30 : vector<256x16xf32> to vector<256x16xbf16>
    %c0_14 = arith.constant 0 : index
    %c0_15 = arith.constant 0 : index
    %32 = vector.load %arg6[%c0_14, %c0_15] : memref<256x16xbf16, #tpu.memory_space<vmem>>, vector<256x16xbf16>
    tpu.vector_store %arg6[%c0_14, %c0_15], %31 {strides = array<i32>} : memref<256x16xbf16, #tpu.memory_space<vmem>>, vector<256x16xbf16>,
    return
  }
  func.func @transform_0(%arg0: i32, %arg1: i32) -> (i32, i32) {
    %c0_i32 = arith.constant 0 : i32
    %c0_i32_0 = arith.constant 0 : i32
    return %arg0, %c0_i32 : i32, i32
  }
  func.func @transform_1(%arg0: i32, %arg1: i32) -> (i32, i32) {
    %c0_i32 = arith.constant 0 : i32
    %c0_i32_0 = arith.constant 0 : i32
    return %c0_i32, %arg1 : i32, i32
  }
  func.func @transform_2(%arg0: i32, %arg1: i32) -> (i32, i32) {
    %c0_i32 = arith.constant 0 : i32
    %c0_i32_0 = arith.constant 0 : i32
    return %c0_i32, %arg1 : i32, i32
  }
  func.func @transform_3(%arg0: i32, %arg1: i32) -> (i32, i32) {
    %c0_i32 = arith.constant 0 : i32
    %c0_i32_0 = arith.constant 0 : i32
    return %c0_i32, %arg1 : i32, i32
  }
  func.func @transform_4(%arg0: i32, %arg1: i32) -> (i32, i32) {
    %c0_i32 = arith.constant 0 : i32
    return %arg0, %arg1 : i32, i32
  }
}

module attributes {stable_mosaic.version = 11 : i64} {
  func.func @_conv_block_kernel(%arg0: i32, %arg1: i32, %arg2: memref<128x256xbf16, #tpu.memory_space<vmem>>, %arg3: memref<256x32xbf16, #tpu.memory_space<vmem>>, %arg4: memref<1x32xf32, #tpu.memory_space<vmem>>, %arg5: memref<1x32xf32, #tpu.memory_space<vmem>>, %arg6: memref<128x32xbf16, #tpu.memory_space<vmem>>) attributes {dimension_semantics = [#tpu.dimension_semantics<parallel>, #tpu.dimension_semantics<parallel>], iteration_bounds = array<i64: 2, 1>, scalar_prefetch = 0 : i64, scratch_operands = 0 : i64, tpu.core_type = #tpu.core_type<tc>, window_params = [{transform_indices = @transform_0, window_bounds = array<i64: 128, 256>}, {transform_indices = @transform_1, window_bounds = array<i64: 256, 32>}, {transform_indices = @transform_2, window_bounds = array<i64: 1, 32>}, {transform_indices = @transform_3, window_bounds = array<i64: 1, 32>}, {transform_indices = @transform_4, window_bounds = array<i64: 128, 32>}]} {
    %c0 = arith.constant 0 : index
    %c0_0 = arith.constant 0 : index
    %0 = vector.load %arg2[%c0, %c0_0] : memref<128x256xbf16, #tpu.memory_space<vmem>>, vector<128x256xbf16>
    %c0_1 = arith.constant 0 : index
    %c0_2 = arith.constant 0 : index
    %1 = vector.load %arg3[%c0_1, %c0_2] : memref<256x32xbf16, #tpu.memory_space<vmem>>, vector<256x32xbf16>
    %cst = arith.constant dense<0.000000e+00> : vector<128x32xf32>
    %2 = tpu.matmul %0, %1, %cst {dimension_numbers = #tpu.dot_dimension_numbers<[1], [0], [0], [1], [0, 0, 1, 1], [], []>} : vector<128x256xbf16>, vector<256x32xbf16>, vector<128x32xf32> -> vector<128x32xf32>
    %3 = vector.shape_cast %2 : vector<128x32xf32> to vector<2x64x32xf32>
    %cst_3 = arith.constant dense<0.000000e+00> : vector<2x32xf32>
    %4 = vector.multi_reduction <add>, %3, %cst_3 [1] : vector<2x64x32xf32> to vector<2x32xf32>
    %5 = vector.shape_cast %4 : vector<2x32xf32> to vector<2x1x32xf32>
    %cst_4 = arith.constant 1.562500e-02 : f32
    %6 = vector.broadcast %cst_4 : f32 to vector<2x1x32xf32>
    %7 = arith.mulf %5, %6 : vector<2x1x32xf32>
    %8 = arith.mulf %3, %3 : vector<2x64x32xf32>
    %cst_5 = arith.constant dense<0.000000e+00> : vector<2x32xf32>
    %9 = vector.multi_reduction <add>, %8, %cst_5 [1] : vector<2x64x32xf32> to vector<2x32xf32>
    %10 = vector.shape_cast %9 : vector<2x32xf32> to vector<2x1x32xf32>
    %cst_6 = arith.constant 1.562500e-02 : f32
    %11 = vector.broadcast %cst_6 : f32 to vector<2x1x32xf32>
    %12 = arith.mulf %10, %11 : vector<2x1x32xf32>
    %13 = arith.mulf %7, %7 : vector<2x1x32xf32>
    %14 = arith.subf %12, %13 : vector<2x1x32xf32>
    %cst_7 = arith.constant 0.000000e+00 : f32
    %15 = vector.broadcast %cst_7 : f32 to vector<2x1x32xf32>
    %16 = arith.maximumf %14, %15 : vector<2x1x32xf32>
    %c0_8 = arith.constant 0 : index
    %c0_9 = arith.constant 0 : index
    %17 = vector.load %arg4[%c0_8, %c0_9] : memref<1x32xf32, #tpu.memory_space<vmem>>, vector<1x32xf32>
    %18 = vector.shape_cast %17 : vector<1x32xf32> to vector<1x1x32xf32>
    %cst_10 = arith.constant 9.99999974E-6 : f32
    %19 = vector.broadcast %cst_10 : f32 to vector<2x1x32xf32>
    %20 = arith.addf %16, %19 : vector<2x1x32xf32>
    %21 = math.rsqrt %20 : vector<2x1x32xf32>
    %22 = vector.broadcast %18 : vector<1x1x32xf32> to vector<2x1x32xf32>
    %23 = arith.mulf %22, %21 : vector<2x1x32xf32>
    %c0_11 = arith.constant 0 : index
    %c0_12 = arith.constant 0 : index
    %24 = vector.load %arg5[%c0_11, %c0_12] : memref<1x32xf32, #tpu.memory_space<vmem>>, vector<1x32xf32>
    %25 = vector.shape_cast %24 : vector<1x32xf32> to vector<1x1x32xf32>
    %26 = arith.mulf %7, %23 : vector<2x1x32xf32>
    %27 = vector.broadcast %25 : vector<1x1x32xf32> to vector<2x1x32xf32>
    %28 = arith.subf %27, %26 : vector<2x1x32xf32>
    %29 = vector.broadcast %23 : vector<2x1x32xf32> to vector<2x64x32xf32>
    %30 = arith.mulf %3, %29 : vector<2x64x32xf32>
    %31 = vector.broadcast %28 : vector<2x1x32xf32> to vector<2x64x32xf32>
    %32 = arith.addf %30, %31 : vector<2x64x32xf32>
    %33 = vector.shape_cast %32 : vector<2x64x32xf32> to vector<128x32xf32>
    %cst_13 = arith.constant 2.000000e-01 : f32
    %34 = vector.broadcast %cst_13 : f32 to vector<128x32xf32>
    %35 = arith.mulf %34, %33 : vector<128x32xf32>
    %36 = arith.maximumf %33, %35 : vector<128x32xf32>
    %37 = arith.truncf %36 : vector<128x32xf32> to vector<128x32xbf16>
    %c0_14 = arith.constant 0 : index
    %c0_15 = arith.constant 0 : index
    %38 = vector.load %arg6[%c0_14, %c0_15] : memref<128x32xbf16, #tpu.memory_space<vmem>>, vector<128x32xbf16>
    tpu.vector_store %arg6[%c0_14, %c0_15], %37 {strides = array<i32>} : memref<128x32xbf16, #tpu.memory_space<vmem>>, vector<128x32xbf16>,
    return
  }
  func.func @transform_0(%arg0: i32, %arg1: i32) -> (i32, i32) {
    %c0_i32 = arith.constant 0 : i32
    %c0_i32_0 = arith.constant 0 : i32
    return %arg0, %c0_i32 : i32, i32
  }
  func.func @transform_1(%arg0: i32, %arg1: i32) -> (i32, i32) {
    %c0_i32 = arith.constant 0 : i32
    %c0_i32_0 = arith.constant 0 : i32
    return %c0_i32, %arg1 : i32, i32
  }
  func.func @transform_2(%arg0: i32, %arg1: i32) -> (i32, i32) {
    %c0_i32 = arith.constant 0 : i32
    %c0_i32_0 = arith.constant 0 : i32
    return %c0_i32, %arg1 : i32, i32
  }
  func.func @transform_3(%arg0: i32, %arg1: i32) -> (i32, i32) {
    %c0_i32 = arith.constant 0 : i32
    %c0_i32_0 = arith.constant 0 : i32
    return %c0_i32, %arg1 : i32, i32
  }
  func.func @transform_4(%arg0: i32, %arg1: i32) -> (i32, i32) {
    %c0_i32 = arith.constant 0 : i32
    return %arg0, %arg1 : i32, i32
  }
}

module attributes {stable_mosaic.version = 11 : i64} {
  func.func @_tail_block_kernel(%arg0: i32, %arg1: memref<64x512xbf16, #tpu.memory_space<vmem>>, %arg2: memref<512x64xbf16, #tpu.memory_space<vmem>>, %arg3: memref<1x64xf32, #tpu.memory_space<vmem>>, %arg4: memref<1x64xf32, #tpu.memory_space<vmem>>, %arg5: memref<16x64xf32, #tpu.memory_space<vmem>>, %arg6: memref<4x1xf32, #tpu.memory_space<vmem>>) attributes {dimension_semantics = [#tpu.dimension_semantics<arbitrary>], iteration_bounds = array<i64: 1>, scalar_prefetch = 0 : i64, scratch_operands = 0 : i64, tpu.core_type = #tpu.core_type<tc>, window_params = [{pipeline_mode = #tpu.pipeline_mode<synchronous>, transform_indices = @transform_0, window_bounds = array<i64: 64, 512>}, {pipeline_mode = #tpu.pipeline_mode<synchronous>, transform_indices = @transform_1, window_bounds = array<i64: 512, 64>}, {pipeline_mode = #tpu.pipeline_mode<synchronous>, transform_indices = @transform_2, window_bounds = array<i64: 1, 64>}, {pipeline_mode = #tpu.pipeline_mode<synchronous>, transform_indices = @transform_3, window_bounds = array<i64: 1, 64>}, {pipeline_mode = #tpu.pipeline_mode<synchronous>, transform_indices = @transform_4, window_bounds = array<i64: 16, 64>}, {pipeline_mode = #tpu.pipeline_mode<synchronous>, transform_indices = @transform_5, window_bounds = array<i64: 4, 1>}]} {
    %c0 = arith.constant 0 : index
    %c0_0 = arith.constant 0 : index
    %0 = vector.load %arg1[%c0, %c0_0] : memref<64x512xbf16, #tpu.memory_space<vmem>>, vector<64x512xbf16>
    %c0_1 = arith.constant 0 : index
    %c0_2 = arith.constant 0 : index
    %1 = vector.load %arg2[%c0_1, %c0_2] : memref<512x64xbf16, #tpu.memory_space<vmem>>, vector<512x64xbf16>
    %cst = arith.constant dense<0.000000e+00> : vector<64x64xf32>
    %2 = tpu.matmul %0, %1, %cst {dimension_numbers = #tpu.dot_dimension_numbers<[1], [0], [0], [1], [0, 0, 1, 1], [], []>} : vector<64x512xbf16>, vector<512x64xbf16>, vector<64x64xf32> -> vector<64x64xf32>
    %3 = vector.shape_cast %2 : vector<64x64xf32> to vector<4x16x64xf32>
    %cst_3 = arith.constant dense<0.000000e+00> : vector<4x64xf32>
    %4 = vector.multi_reduction <add>, %3, %cst_3 [1] : vector<4x16x64xf32> to vector<4x64xf32>
    %5 = vector.shape_cast %4 : vector<4x64xf32> to vector<4x1x64xf32>
    %cst_4 = arith.constant 6.250000e-02 : f32
    %6 = vector.broadcast %cst_4 : f32 to vector<4x1x64xf32>
    %7 = arith.mulf %5, %6 : vector<4x1x64xf32>
    %8 = arith.mulf %3, %3 : vector<4x16x64xf32>
    %cst_5 = arith.constant dense<0.000000e+00> : vector<4x64xf32>
    %9 = vector.multi_reduction <add>, %8, %cst_5 [1] : vector<4x16x64xf32> to vector<4x64xf32>
    %10 = vector.shape_cast %9 : vector<4x64xf32> to vector<4x1x64xf32>
    %cst_6 = arith.constant 6.250000e-02 : f32
    %11 = vector.broadcast %cst_6 : f32 to vector<4x1x64xf32>
    %12 = arith.mulf %10, %11 : vector<4x1x64xf32>
    %13 = arith.mulf %7, %7 : vector<4x1x64xf32>
    %14 = arith.subf %12, %13 : vector<4x1x64xf32>
    %cst_7 = arith.constant 0.000000e+00 : f32
    %15 = vector.broadcast %cst_7 : f32 to vector<4x1x64xf32>
    %16 = arith.maximumf %14, %15 : vector<4x1x64xf32>
    %c0_8 = arith.constant 0 : index
    %c0_9 = arith.constant 0 : index
    %17 = vector.load %arg3[%c0_8, %c0_9] : memref<1x64xf32, #tpu.memory_space<vmem>>, vector<1x64xf32>
    %18 = vector.shape_cast %17 : vector<1x64xf32> to vector<1x1x64xf32>
    %cst_10 = arith.constant 9.99999974E-6 : f32
    %19 = vector.broadcast %cst_10 : f32 to vector<4x1x64xf32>
    %20 = arith.addf %16, %19 : vector<4x1x64xf32>
    %21 = math.rsqrt %20 : vector<4x1x64xf32>
    %22 = vector.broadcast %18 : vector<1x1x64xf32> to vector<4x1x64xf32>
    %23 = arith.mulf %22, %21 : vector<4x1x64xf32>
    %c0_11 = arith.constant 0 : index
    %c0_12 = arith.constant 0 : index
    %24 = vector.load %arg4[%c0_11, %c0_12] : memref<1x64xf32, #tpu.memory_space<vmem>>, vector<1x64xf32>
    %25 = vector.shape_cast %24 : vector<1x64xf32> to vector<1x1x64xf32>
    %26 = arith.mulf %7, %23 : vector<4x1x64xf32>
    %27 = vector.broadcast %25 : vector<1x1x64xf32> to vector<4x1x64xf32>
    %28 = arith.subf %27, %26 : vector<4x1x64xf32>
    %29 = vector.broadcast %23 : vector<4x1x64xf32> to vector<4x16x64xf32>
    %30 = arith.mulf %3, %29 : vector<4x16x64xf32>
    %31 = vector.broadcast %28 : vector<4x1x64xf32> to vector<4x16x64xf32>
    %32 = arith.addf %30, %31 : vector<4x16x64xf32>
    %cst_13 = arith.constant 2.000000e-01 : f32
    %33 = vector.broadcast %cst_13 : f32 to vector<4x16x64xf32>
    %34 = arith.mulf %33, %32 : vector<4x16x64xf32>
    %35 = arith.maximumf %32, %34 : vector<4x16x64xf32>
    %c0_14 = arith.constant 0 : index
    %c0_15 = arith.constant 0 : index
    %36 = vector.load %arg5[%c0_14, %c0_15] : memref<16x64xf32, #tpu.memory_space<vmem>>, vector<16x64xf32>
    %37 = vector.shape_cast %36 : vector<16x64xf32> to vector<1x16x64xf32>
    %38 = vector.broadcast %37 : vector<1x16x64xf32> to vector<4x16x64xf32>
    %39 = arith.mulf %35, %38 : vector<4x16x64xf32>
    %cst_16 = arith.constant dense<0.000000e+00> : vector<4x64xf32>
    %40 = vector.multi_reduction <add>, %39, %cst_16 [1] : vector<4x16x64xf32> to vector<4x64xf32>
    %cst_17 = arith.constant dense<0.000000e+00> : vector<4xf32>
    %41 = vector.multi_reduction <add>, %40, %cst_17 [1] : vector<4x64xf32> to vector<4xf32>
    %42 = vector.shape_cast %41 : vector<4xf32> to vector<4x1xf32>
    %c0_18 = arith.constant 0 : index
    %c0_19 = arith.constant 0 : index
    %43 = vector.load %arg6[%c0_18, %c0_19] : memref<4x1xf32, #tpu.memory_space<vmem>>, vector<4x1xf32>
    tpu.vector_store %arg6[%c0_18, %c0_19], %42 {strides = array<i32>} : memref<4x1xf32, #tpu.memory_space<vmem>>, vector<4x1xf32>,
    return
  }
  func.func @transform_0(%arg0: i32) -> (i32, i32) {
    %c0_i32 = arith.constant 0 : i32
    %c0_i32_0 = arith.constant 0 : i32
    %c0_i32_1 = arith.constant 0 : i32
    return %c0_i32, %c0_i32_0 : i32, i32
  }
  func.func @transform_1(%arg0: i32) -> (i32, i32) {
    %c0_i32 = arith.constant 0 : i32
    %c0_i32_0 = arith.constant 0 : i32
    %c0_i32_1 = arith.constant 0 : i32
    return %c0_i32, %c0_i32_0 : i32, i32
  }
  func.func @transform_2(%arg0: i32) -> (i32, i32) {
    %c0_i32 = arith.constant 0 : i32
    %c0_i32_0 = arith.constant 0 : i32
    %c0_i32_1 = arith.constant 0 : i32
    return %c0_i32, %c0_i32_0 : i32, i32
  }
  func.func @transform_3(%arg0: i32) -> (i32, i32) {
    %c0_i32 = arith.constant 0 : i32
    %c0_i32_0 = arith.constant 0 : i32
    %c0_i32_1 = arith.constant 0 : i32
    return %c0_i32, %c0_i32_0 : i32, i32
  }
  func.func @transform_4(%arg0: i32) -> (i32, i32) {
    %c0_i32 = arith.constant 0 : i32
    %c0_i32_0 = arith.constant 0 : i32
    %c0_i32_1 = arith.constant 0 : i32
    return %c0_i32, %c0_i32_0 : i32, i32
  }
  func.func @transform_5(%arg0: i32) -> (i32, i32) {
    %c0_i32 = arith.constant 0 : i32
    %c0_i32_0 = arith.constant 0 : i32
    %c0_i32_1 = arith.constant 0 : i32
    return %c0_i32, %c0_i32_0 : i32, i32
  }
}

</mosaic_0001>

<llo_original>
// kernel: critic_forward.4
$region0: #{critic_forward.4}
  #allocation0 [shape = 'u32[]', space=smem, size = 0x4, offset = 0x4, fixed_abs, tag = 'smem constant byte address 0x4 - core index']
  #allocation1 [shape = 'u32[72,128]{1,0:T(1,128)}', space=vmem, size = 0x9000, scoped, tag = 'internal scratch']
  %s0 = inlined_call_operand.vmem [shape: bf16[4096,128], index: 0, kind: input, shape index: {}]
  %s1 = inlined_call_operand.vmem [shape: bf16[128,8], index: 1, kind: input, shape index: {}]
  %s2 = inlined_call_operand.vmem [shape: bf16[4096,8], index: 2, kind: output, shape index: {}]
  %s3 = sld [smem:[#allocation0]]
  $region41: #{critic_forward.4} parent=0
    _
  %s5 = ssub.s32 1, %s3
  %s6 = scalar_select 0, %s5, %s3
  loop: start=0, step=1, limit=6
  $region2: #{critic_forward.4} parent=0 // loop_pre_header
    _
  $region3: #{critic_forward.4} parent=0 // loop_header
    %s8 = sphi 0, %s12
    %p9 = scmp.ge.s32.totalorder %s8, 6
    %s15 = sphi 0, %s27
    %s16 = sphi 0, %s23
    %s17 = sphi 0, %s15
    %s18 = sphi 0, %s16
    %s19 = sphi 0, %s17
    %s20 = sphi 0, %s18
    %s30 = sphi 0, %s32
    %s33 = sphi 0, %s30
    %s34 = sphi 0, %s33
    %s50 = sphi 0, %s34
    %s56 = sphi 0, %s58
    %s59 = sphi 0, %s56
    %s60 = sphi 0, %s59
    %s76 = sphi 0, %s60
    %s84 = sphi 0, %s86
    %s87 = sphi 0, %s84
    %s88 = sphi 0, %s87
    %s104 = sphi 0, %s88
  $region4: #{critic_forward.4} parent=0 // loop_header_branch
    %11 = sbr.rel (%p9) target = $region8
  $region5: #{critic_forward.4} parent=0 // loop_body
    %s13 = ssub.s32 %s8, 1
    %s14 = ssub.s32 %s8, 2
    %s21 = sadd.s32 1, %s16
    %p22 = scmp.ge.s32.totalorder %s21, 1
    %s23 = scalar_select %p22, 0, %s21
    %s24 = sadd.s32 1, %s15
    %s25 = scalar_select %p22, %s24, %s15
    %p26 = scmp.ge.s32.totalorder %s25, 4
    %s27 = scalar_select %p26, 0, %s25
    %s28 = ssub.s32 %s15, %s27
    %p29 = scmp.eq.s32.totalorder %s28, 0
    %s31 = sadd.s32 %s30, 1
    %s32 = scalar_select %p29, %s30, %s31
    %p35 = pneg %p29
    %p36 = scmp.eq.s32.totalorder %s8, 3
    %p37 = por %p35, %p36
    %p38 = scmp.ne.s32.totalorder %s30, %s33
    %p39 = scmp.eq.s32.totalorder %s8, 0
    %p40 = por %p38, %p39
    %p41 = scmp.ne.s32.totalorder %s30, %s33
    %p42 = scmp.eq.s32.totalorder %s13, 3
    %p43 = por %p41, %p42
    %p44 = scmp.ne.s32.totalorder %s33, %s34
    %p45 = scmp.eq.s32.totalorder %s13, 0
    %p46 = por %p44, %p45
    %p47 = scmp.ne.s32.totalorder %s33, %s34
    %p48 = scmp.eq.s32.totalorder %s14, 3
    %p49 = por %p47, %p48
    %p51 = scmp.ne.s32.totalorder %s34, %s50
    %p52 = scmp.eq.s32.totalorder %s14, 0
    %p53 = por %p51, %p52
    %s54 = ssub.s32 %s16, %s23
    %p55 = scmp.eq.s32.totalorder %s54, 0
    %s57 = sadd.s32 %s56, 1
    %s58 = scalar_select %p55, %s56, %s57
    %p61 = pneg %p55
    %p62 = scmp.eq.s32.totalorder %s8, 3
    %p63 = por %p61, %p62
    %p64 = scmp.ne.s32.totalorder %s56, %s59
    %p65 = scmp.eq.s32.totalorder %s8, 0
    %p66 = por %p64, %p65
    %p67 = scmp.ne.s32.totalorder %s56, %s59
    %p68 = scmp.eq.s32.totalorder %s13, 3
    %p69 = por %p67, %p68
    %p70 = scmp.ne.s32.totalorder %s59, %s60
    %p71 = scmp.eq.s32.totalorder %s13, 0
    %p72 = por %p70, %p71
    %p73 = scmp.ne.s32.totalorder %s59, %s60
    %p74 = scmp.eq.s32.totalorder %s14, 3
    %p75 = por %p73, %p74
    %p77 = scmp.ne.s32.totalorder %s60, %s76
    %p78 = scmp.eq.s32.totalorder %s14, 0
    %p79 = por %p77, %p78
    %s80 = ssub.s32 %s15, %s27
    %s81 = ssub.s32 %s16, %s23
    %s82 = sor.u32 %s80, %s81
    %p83 = scmp.eq.s32.totalorder %s82, 0
    %s85 = sadd.s32 %s84, 1
    %s86 = scalar_select %p83, %s84, %s85
    %p89 = pneg %p83
    %p90 = scmp.eq.s32.totalorder %s8, 3
    %p91 = por %p89, %p90
    %p92 = scmp.ne.s32.totalorder %s84, %s87
    %p93 = scmp.eq.s32.totalorder %s8, 0
    %p94 = por %p92, %p93
    %p95 = scmp.ne.s32.totalorder %s84, %s87
    %p96 = scmp.eq.s32.totalorder %s13, 3
    %p97 = por %p95, %p96
    %p98 = scmp.ne.s32.totalorder %s87, %s88
    %p99 = scmp.eq.s32.totalorder %s13, 0
    %p100 = por %p98, %p99
    %p101 = scmp.ne.s32.totalorder %s87, %s88
    %p102 = scmp.eq.s32.totalorder %s14, 3
    %p103 = por %p101, %p102
    %p105 = scmp.ne.s32.totalorder %s88, %s104
    %p106 = scmp.eq.s32.totalorder %s14, 0
    %p107 = por %p105, %p106
    %p108 = scmp.le.s32.totalorder 1, %s8
    %p109 = scmp.lt.s32.totalorder %s8, 5
    %p110 = pnand %p108, %p109
    %p111 = pneg %p110
    // Predicated region
    $region9: #{critic_forward.4} parent=5 // pred_check
      _
    $region10: #{critic_forward.4} parent=5 // pred_check_branch
      %113 = sbr.rel (%p110) target = $region12
    $region11: #{critic_forward.4} parent=5 // pred_region
      %s114 = ssub.s32 %s8, 1
      // Predicated region
      $region13: #{critic_forward.4} parent=11 // pred_check
        %p115 = pneg %p72
      $region14: #{critic_forward.4} parent=11 // pred_check_branch
        %117 = sbr.rel (%p115) target = $region16
      $region15: #{critic_forward.4} parent=11 // pred_region
        %p118 = scmp.lt.s32.totalorder %s18, 0
        %s119 = scalar_select %p118, %s18, 0
        %s120 = smul.addr %s119, 4
        %s121 = scalar_lea.vmem %s1, %s120
      $region16: #{critic_forward.4} parent=11 // pred_fallthru
        _
    $region12: #{critic_forward.4} parent=5 // pred_fallthru
      _
    %p122 = scmp.lt.s32.totalorder %s8, 4
    // Predicated region
    $region17: #{critic_forward.4} parent=5 // pred_check
      %p123 = pneg %p122
    $region18: #{critic_forward.4} parent=5 // pred_check_branch
      %125 = sbr.rel (%p123) target = $region20
    $region19: #{critic_forward.4} parent=5 // pred_region
      // Predicated region
      $region21: #{critic_forward.4} parent=19 // pred_check
        %p126 = pneg %p40
      $region22: #{critic_forward.4} parent=19 // pred_check_branch
        %128 = sbr.rel (%p126) target = $region24
      $region23: #{critic_forward.4} parent=19 // pred_region
        %s129 = smul.u32 128, %s15
        %p130 = scmp.lt.s32.totalorder %s129, 511
        %s131 = scalar_select %p130, %s129, 511
        %s132 = smul.addr %s131, 4
        %s133 = scalar_lea.vmem %s0, %s132
        %s134 = smul.u32 128, %s15
      $region24: #{critic_forward.4} parent=19 // pred_fallthru
        _
    $region20: #{critic_forward.4} parent=5 // pred_fallthru
      _
    %p135 = scmp.le.s32.totalorder 1, %s8
    %p136 = scmp.lt.s32.totalorder %s8, 5
    %p137 = pnand %p135, %p136
    %p138 = pneg %p137
    // Predicated region
    $region25: #{critic_forward.4} parent=5 // pred_check
      _
    $region26: #{critic_forward.4} parent=5 // pred_check_branch
      %140 = sbr.rel (%p137) target = $region28
    $region27: #{critic_forward.4} parent=5 // pred_region
      %s141 = ssub.s32 %s8, 1
      %s142 = smul.u32 128, %s17
      %p143 = scmp.lt.s32.totalorder %s142, 511
      %s144 = scalar_select %p143, %s142, 511
      %s145 = smul.addr %s144, 4
      %s146 = scalar_lea.vmem %s0, %s145
      %p147 = pneg %p46
      %p148 = pneg %p43
      %p149 = scmp.lt.s32.totalorder %s18, 0
      %s150 = scalar_select %p149, %s18, 0
      %s151 = smul.addr %s150, 4
      %s152 = scalar_lea.vmem %s1, %s151
      %p153 = pneg %p72
      %p154 = pneg %p69
      %p155 = pneg %p100
      %p156 = pneg %p97
      %s157 = smul.u32 128, %s17
      %p158 = scmp.lt.s32.totalorder %s157, 511
      %s159 = scalar_select %p158, %s157, 511
      %p160 = scmp.lt.s32.totalorder %s18, 0
      %s161 = scalar_select %p160, %s18, 0
      %s162 = sadd.s32 %s161, %s159
      %s163 = smul.addr %s162, 4
      %s164 = scalar_lea.vmem %s2, %s163
      %s165 = smul.u32 128, %s17
      %p166 = scmp.lt.s32.totalorder %s165, 511
      %s167 = scalar_select %p166, %s165, 511
      %s168 = smul.addr %s167, 4
      %s169 = scalar_lea.vmem %s0, %s168
      %s170 = smul.u32 128, %s17
      %p171 = scmp.lt.s32.totalorder %s18, 0
      %s172 = scalar_select %p171, %s18, 0
      %s173 = smul.addr %s172, 4
      %s174 = scalar_lea.vmem %s1, %s173
      %s175 = smul.u32 128, %s17
      %p176 = scmp.lt.s32.totalorder %s175, 511
      %s177 = scalar_select %p176, %s175, 511
      %p178 = scmp.lt.s32.totalorder %s18, 0
      %s179 = scalar_select %p178, %s18, 0
      %s180 = sadd.s32 %s179, %s177
      %s181 = smul.addr %s180, 4
      %s182 = scalar_lea.vmem %s2, %s181
      %s183 = smul.u32 128, %s17
      %v184 = vld [vmem:[%s169] sm:$0xf]
      %v185 = vld [vmem:[%s169 + $0x4] sm:$0xf]
      %v186 = vld [vmem:[%s169 + $0x8] sm:$0xf]
      %v187 = vld [vmem:[%s169 + $0xc] sm:$0xf]
      %v188 = vld [vmem:[%s169 + $0x10] sm:$0xf]
      %v189 = vld [vmem:[%s169 + $0x14] sm:$0xf]
      %v190 = vld [vmem:[%s169 + $0x18] sm:$0xf]
      %v191 = vld [vmem:[%s169 + $0x1c] sm:$0xf]
      %v192 = vld [vmem:[%s169 + $0x20] sm:$0xf]
      %v193 = vld [vmem:[%s169 + $0x24] sm:$0xf]
      %v194 = vld [vmem:[%s169 + $0x28] sm:$0xf]
      %v195 = vld [vmem:[%s169 + $0x2c] sm:$0xf]
      %v196 = vld [vmem:[%s169 + $0x30] sm:$0xf]
      %v197 = vld [vmem:[%s169 + $0x34] sm:$0xf]
      %v198 = vld [vmem:[%s169 + $0x38] sm:$0xf]
      %v199 = vld [vmem:[%s169 + $0x3c] sm:$0xf]
      %v200 = vld [vmem:[%s169 + $0x40] sm:$0xf]
      %v201 = vld [vmem:[%s169 + $0x44] sm:$0xf]
      %v202 = vld [vmem:[%s169 + $0x48] sm:$0xf]
      %v203 = vld [vmem:[%s169 + $0x4c] sm:$0xf]
      %v204 = vld [vmem:[%s169 + $0x50] sm:$0xf]
      %v205 = vld [vmem:[%s169 + $0x54] sm:$0xf]
      %v206 = vld [vmem:[%s169 + $0x58] sm:$0xf]
      %v207 = vld [vmem:[%s169 + $0x5c] sm:$0xf]
      %v208 = vld [vmem:[%s169 + $0x60] sm:$0xf]
      %v209 = vld [vmem:[%s169 + $0x64] sm:$0xf]
      %v210 = vld [vmem:[%s169 + $0x68] sm:$0xf]
      %v211 = vld [vmem:[%s169 + $0x6c] sm:$0xf]
      %v212 = vld [vmem:[%s169 + $0x70] sm:$0xf]
      %v213 = vld [vmem:[%s169 + $0x74] sm:$0xf]
      %v214 = vld [vmem:[%s169 + $0x78] sm:$0xf]
      %v215 = vld [vmem:[%s169 + $0x7c] sm:$0xf]
      %v216 = vld [vmem:[%s169 + $0x80] sm:$0xf]
      %v217 = vld [vmem:[%s169 + $0x84] sm:$0xf]
      %v218 = vld [vmem:[%s169 + $0x88] sm:$0xf]
      %v219 = vld [vmem:[%s169 + $0x8c] sm:$0xf]
      %v220 = vld [vmem:[%s169 + $0x90] sm:$0xf]
      %v221 = vld [vmem:[%s169 + $0x94] sm:$0xf]
      %v222 = vld [vmem:[%s169 + $0x98] sm:$0xf]
      %v223 = vld [vmem:[%s169 + $0x9c] sm:$0xf]
      %v224 = vld [vmem:[%s169 + $0xa0] sm:$0xf]
      %v225 = vld [vmem:[%s169 + $0xa4] sm:$0xf]
      %v226 = vld [vmem:[%s169 + $0xa8] sm:$0xf]
      %v227 = vld [vmem:[%s169 + $0xac] sm:$0xf]
      %v228 = vld [vmem:[%s169 + $0xb0] sm:$0xf]
      %v229 = vld [vmem:[%s169 + $0xb4] sm:$0xf]
      %v230 = vld [vmem:[%s169 + $0xb8] sm:$0xf]
      %v231 = vld [vmem:[%s169 + $0xbc] sm:$0xf]
      %v232 = vld [vmem:[%s169 + $0xc0] sm:$0xf]
      %v233 = vld [vmem:[%s169 + $0xc4] sm:$0xf]
      %v234 = vld [vmem:[%s169 + $0xc8] sm:$0xf]
      %v235 = vld [vmem:[%s169 + $0xcc] sm:$0xf]
      %v236 = vld [vmem:[%s169 + $0xd0] sm:$0xf]
      %v237 = vld [vmem:[%s169 + $0xd4] sm:$0xf]
      %v238 = vld [vmem:[%s169 + $0xd8] sm:$0xf]
      %v239 = vld [vmem:[%s169 + $0xdc] sm:$0xf]
      %v240 = vld [vmem:[%s169 + $0xe0] sm:$0xf]
      %v241 = vld [vmem:[%s169 + $0xe4] sm:$0xf]
      %v242 = vld [vmem:[%s169 + $0xe8] sm:$0xf]
      %v243 = vld [vmem:[%s169 + $0xec] sm:$0xf]
      %v244 = vld [vmem:[%s169 + $0xf0] sm:$0xf]
      %v245 = vld [vmem:[%s169 + $0xf4] sm:$0xf]
      %v246 = vld [vmem:[%s169 + $0xf8] sm:$0xf]
      %v247 = vld [vmem:[%s169 + $0xfc] sm:$0xf]
      %v248 = vld [vmem:[%s169 + $0x100] sm:$0xf]
      %v249 = vld [vmem:[%s169 + $0x104] sm:$0xf]
      %v250 = vld [vmem:[%s169 + $0x108] sm:$0xf]
      %v251 = vld [vmem:[%s169 + $0x10c] sm:$0xf]
      %v252 = vld [vmem:[%s169 + $0x110] sm:$0xf]
      %v253 = vld [vmem:[%s169 + $0x114] sm:$0xf]
      %v254 = vld [vmem:[%s169 + $0x118] sm:$0xf]
      %v255 = vld [vmem:[%s169 + $0x11c] sm:$0xf]
      %v256 = vld [vmem:[%s169 + $0x120] sm:$0xf]
      %v257 = vld [vmem:[%s169 + $0x124] sm:$0xf]
      %v258 = vld [vmem:[%s169 + $0x128] sm:$0xf]
      %v259 = vld [vmem:[%s169 + $0x12c] sm:$0xf]
      %v260 = vld [vmem:[%s169 + $0x130] sm:$0xf]
      %v261 = vld [vmem:[%s169 + $0x134] sm:$0xf]
      %v262 = vld [vmem:[%s169 + $0x138] sm:$0xf]
      %v263 = vld [vmem:[%s169 + $0x13c] sm:$0xf]
      %v264 = vld [vmem:[%s169 + $0x140] sm:$0xf]
      %v265 = vld [vmem:[%s169 + $0x144] sm:$0xf]
      %v266 = vld [vmem:[%s169 + $0x148] sm:$0xf]
      %v267 = vld [vmem:[%s169 + $0x14c] sm:$0xf]
      %v268 = vld [vmem:[%s169 + $0x150] sm:$0xf]
      %v269 = vld [vmem:[%s169 + $0x154] sm:$0xf]
      %v270 = vld [vmem:[%s169 + $0x158] sm:$0xf]
      %v271 = vld [vmem:[%s169 + $0x15c] sm:$0xf]
      %v272 = vld [vmem:[%s169 + $0x160] sm:$0xf]
      %v273 = vld [vmem:[%s169 + $0x164] sm:$0xf]
      %v274 = vld [vmem:[%s169 + $0x168] sm:$0xf]
      %v275 = vld [vmem:[%s169 + $0x16c] sm:$0xf]
      %v276 = vld [vmem:[%s169 + $0x170] sm:$0xf]
      %v277 = vld [vmem:[%s169 + $0x174] sm:$0xf]
      %v278 = vld [vmem:[%s169 + $0x178] sm:$0xf]
      %v279 = vld [vmem:[%s169 + $0x17c] sm:$0xf]
      %v280 = vld [vmem:[%s169 + $0x180] sm:$0xf]
      %v281 = vld [vmem:[%s169 + $0x184] sm:$0xf]
      %v282 = vld [vmem:[%s169 + $0x188] sm:$0xf]
      %v283 = vld [vmem:[%s169 + $0x18c] sm:$0xf]
      %v284 = vld [vmem:[%s169 + $0x190] sm:$0xf]
      %v285 = vld [vmem:[%s169 + $0x194] sm:$0xf]
      %v286 = vld [vmem:[%s169 + $0x198] sm:$0xf]
      %v287 = vld [vmem:[%s169 + $0x19c] sm:$0xf]
      %v288 = vld [vmem:[%s169 + $0x1a0] sm:$0xf]
      %v289 = vld [vmem:[%s169 + $0x1a4] sm:$0xf]
      %v290 = vld [vmem:[%s169 + $0x1a8] sm:$0xf]
      %v291 = vld [vmem:[%s169 + $0x1ac] sm:$0xf]
      %v292 = vld [vmem:[%s169 + $0x1b0] sm:$0xf]
      %v293 = vld [vmem:[%s169 + $0x1b4] sm:$0xf]
      %v294 = vld [vmem:[%s169 + $0x1b8] sm:$0xf]
      %v295 = vld [vmem:[%s169 + $0x1bc] sm:$0xf]
      %v296 = vld [vmem:[%s169 + $0x1c0] sm:$0xf]
      %v297 = vld [vmem:[%s169 + $0x1c4] sm:$0xf]
      %v298 = vld [vmem:[%s169 + $0x1c8] sm:$0xf]
      %v299 = vld [vmem:[%s169 + $0x1cc] sm:$0xf]
      %v300 = vld [vmem:[%s169 + $0x1d0] sm:$0xf]
      %v301 = vld [vmem:[%s169 + $0x1d4] sm:$0xf]
      %v302 = vld [vmem:[%s169 + $0x1d8] sm:$0xf]
      %v303 = vld [vmem:[%s169 + $0x1dc] sm:$0xf]
      %v304 = vld [vmem:[%s169 + $0x1e0] sm:$0xf]
      %v305 = vld [vmem:[%s169 + $0x1e4] sm:$0xf]
      %v306 = vld [vmem:[%s169 + $0x1e8] sm:$0xf]
      %v307 = vld [vmem:[%s169 + $0x1ec] sm:$0xf]
      %v308 = vld [vmem:[%s169 + $0x1f0] sm:$0xf]
      %v309 = vld [vmem:[%s169 + $0x1f4] sm:$0xf]
      %v310 = vld [vmem:[%s169 + $0x1f8] sm:$0xf]
      %v311 = vld [vmem:[%s169 + $0x1fc] sm:$0xf]
      %v312 = vld [vmem:[%s174] sm:$0xf]
      %v313 = vld [vmem:[%s174 + $0x4] sm:$0xf]
      %v314 = vld [vmem:[%s174 + $0x8] sm:$0xf]
      %v315 = vld [vmem:[%s174 + $0xc] sm:$0xf]
      %v316 = vld [vmem:[%s174 + $0x10] sm:$0xf]
      %v317 = vld [vmem:[%s174 + $0x14] sm:$0xf]
      %v318 = vld [vmem:[%s174 + $0x18] sm:$0xf]
      %v319 = vld [vmem:[%s174 + $0x1c] sm:$0xf]
      %v320 = vld [vmem:[%s174 + $0x20] sm:$0xf]
      %v321 = vld [vmem:[%s174 + $0x24] sm:$0xf]
      %v322 = vld [vmem:[%s174 + $0x28] sm:$0xf]
      %v323 = vld [vmem:[%s174 + $0x2c] sm:$0xf]
      %v324 = vld [vmem:[%s174 + $0x30] sm:$0xf]
      %v325 = vld [vmem:[%s174 + $0x34] sm:$0xf]
      %v326 = vld [vmem:[%s174 + $0x38] sm:$0xf]
      %v327 = vld [vmem:[%s174 + $0x3c] sm:$0xf]
      %v456 = vunpack.c.l.b16 %v184
      %v457 = vunpack.c.l.b16 %v185
      %v458 = vunpack.c.l.b16 %v186
      %v459 = vunpack.c.l.b16 %v187
      %v460 = vunpack.c.l.b16 %v188
      %v461 = vunpack.c.l.b16 %v189
      %v462 = vunpack.c.l.b16 %v190
      %v463 = vunpack.c.l.b16 %v191
      %v464 = vunpack.c.l.b16 %v192
      %v465 = vunpack.c.l.b16 %v193
      %v466 = vunpack.c.l.b16 %v194
      %v467 = vunpack.c.l.b16 %v195
      %v468 = vunpack.c.l.b16 %v196
      %v469 = vunpack.c.l.b16 %v197
      %v470 = vunpack.c.l.b16 %v198
      %v471 = vunpack.c.l.b16 %v199
      %v472 = vunpack.c.l.b16 %v200
      %v473 = vunpack.c.l.b16 %v201
      %v474 = vunpack.c.l.b16 %v202
      %v475 = vunpack.c.l.b16 %v203
      %v476 = vunpack.c.l.b16 %v204
      %v477 = vunpack.c.l.b16 %v205
      %v478 = vunpack.c.l.b16 %v206
      %v479 = vunpack.c.l.b16 %v207
      %v480 = vunpack.c.l.b16 %v208
      %v481 = vunpack.c.l.b16 %v209
      %v482 = vunpack.c.l.b16 %v210
      %v483 = vunpack.c.l.b16 %v211
      %v484 = vunpack.c.l.b16 %v212
      %v485 = vunpack.c.l.b16 %v213
      %v486 = vunpack.c.l.b16 %v214
      %v487 = vunpack.c.l.b16 %v215
      %v488 = vunpack.c.l.b16 %v216
      %v489 = vunpack.c.l.b16 %v217
      %v490 = vunpack.c.l.b16 %v218
      %v491 = vunpack.c.l.b16 %v219
      %v492 = vunpack.c.l.b16 %v220
      %v493 = vunpack.c.l.b16 %v221
      %v494 = vunpack.c.l.b16 %v222
      %v495 = vunpack.c.l.b16 %v223
      %v496 = vunpack.c.l.b16 %v224
      %v497 = vunpack.c.l.b16 %v225
      %v498 = vunpack.c.l.b16 %v226
      %v499 = vunpack.c.l.b16 %v227
      %v500 = vunpack.c.l.b16 %v228
      %v501 = vunpack.c.l.b16 %v229
      %v502 = vunpack.c.l.b16 %v230
      %v503 = vunpack.c.l.b16 %v231
      %v504 = vunpack.c.l.b16 %v232
      %v505 = vunpack.c.l.b16 %v233
      %v506 = vunpack.c.l.b16 %v234
      %v507 = vunpack.c.l.b16 %v235
      %v508 = vunpack.c.l.b16 %v236
      %v509 = vunpack.c.l.b16 %v237
      %v510 = vunpack.c.l.b16 %v238
      %v511 = vunpack.c.l.b16 %v239
      %v512 = vunpack.c.l.b16 %v240
      %v513 = vunpack.c.l.b16 %v241
      %v514 = vunpack.c.l.b16 %v242
      %v515 = vunpack.c.l.b16 %v243
      %v516 = vunpack.c.l.b16 %v244
      %v517 = vunpack.c.l.b16 %v245
      %v518 = vunpack.c.l.b16 %v246
      %v519 = vunpack.c.l.b16 %v247
      %v520 = vunpack.c.l.b16 %v248
      %v521 = vunpack.c.l.b16 %v249
      %v522 = vunpack.c.l.b16 %v250
      %v523 = vunpack.c.l.b16 %v251
      %v524 = vunpack.c.l.b16 %v252
      %v525 = vunpack.c.l.b16 %v253
      %v526 = vunpack.c.l.b16 %v254
      %v527 = vunpack.c.l.b16 %v255
      %v528 = vunpack.c.l.b16 %v256
      %v529 = vunpack.c.l.b16 %v257
      %v530 = vunpack.c.l.b16 %v258
      %v531 = vunpack.c.l.b16 %v259
      %v532 = vunpack.c.l.b16 %v260
      %v533 = vunpack.c.l.b16 %v261
      %v534 = vunpack.c.l.b16 %v262
      %v535 = vunpack.c.l.b16 %v263
      %v536 = vunpack.c.l.b16 %v264
      %v537 = vunpack.c.l.b16 %v265
      %v538 = vunpack.c.l.b16 %v266
      %v539 = vunpack.c.l.b16 %v267
      %v540 = vunpack.c.l.b16 %v268
      %v541 = vunpack.c.l.b16 %v269
      %v542 = vunpack.c.l.b16 %v270
      %v543 = vunpack.c.l.b16 %v271
      %v544 = vunpack.c.l.b16 %v272
      %v545 = vunpack.c.l.b16 %v273
      %v546 = vunpack.c.l.b16 %v274
      %v547 = vunpack.c.l.b16 %v275
      %v548 = vunpack.c.l.b16 %v276
      %v549 = vunpack.c.l.b16 %v277
      %v550 = vunpack.c.l.b16 %v278
      %v551 = vunpack.c.l.b16 %v279
      %v552 = vunpack.c.l.b16 %v280
      %v553 = vunpack.c.l.b16 %v281
      %v554 = vunpack.c.l.b16 %v282
      %v555 = vunpack.c.l.b16 %v283
      %v556 = vunpack.c.l.b16 %v284
      %v557 = vunpack.c.l.b16 %v285
      %v558 = vunpack.c.l.b16 %v286
      %v559 = vunpack.c.l.b16 %v287
      %v560 = vunpack.c.l.b16 %v288
      %v561 = vunpack.c.l.b16 %v289
      %v562 = vunpack.c.l.b16 %v290
      %v563 = vunpack.c.l.b16 %v291
      %v564 = vunpack.c.l.b16 %v292
      %v565 = vunpack.c.l.b16 %v293
      %v566 = vunpack.c.l.b16 %v294
      %v567 = vunpack.c.l.b16 %v295
      %v568 = vunpack.c.l.b16 %v296
      %v569 = vunpack.c.l.b16 %v297
      %v570 = vunpack.c.l.b16 %v298
      %v571 = vunpack.c.l.b16 %v299
      %v572 = vunpack.c.l.b16 %v300
      %v573 = vunpack.c.l.b16 %v301
      %v574 = vunpack.c.l.b16 %v302
      %v575 = vunpack.c.l.b16 %v303
      %v576 = vunpack.c.l.b16 %v304
      %v577 = vunpack.c.l.b16 %v305
      %v578 = vunpack.c.l.b16 %v306
      %v579 = vunpack.c.l.b16 %v307
      %v580 = vunpack.c.l.b16 %v308
      %v581 = vunpack.c.l.b16 %v309
      %v582 = vunpack.c.l.b16 %v310
      %v583 = vunpack.c.l.b16 %v311
      %v584 = vpack.c.b16 %v457, %v456
      %v585 = vpack.c.b16 %v459, %v458
      %v586 = vpack.c.b16 %v461, %v460
      %v587 = vpack.c.b16 %v463, %v462
      %v588 = vpack.c.b16 %v465, %v464
      %v589 = vpack.c.b16 %v467, %v466
      %v590 = vpack.c.b16 %v469, %v468
      %v591 = vpack.c.b16 %v471, %v470
      %v592 = vpack.c.b16 %v473, %v472
      %v593 = vpack.c.b16 %v475, %v474
      %v594 = vpack.c.b16 %v477, %v476
      %v595 = vpack.c.b16 %v479, %v478
      %v596 = vpack.c.b16 %v481, %v480
      %v597 = vpack.c.b16 %v483, %v482
      %v598 = vpack.c.b16 %v485, %v484
      %v599 = vpack.c.b16 %v487, %v486
      %v600 = vpack.c.b16 %v489, %v488
      %v601 = vpack.c.b16 %v491, %v490
      %v602 = vpack.c.b16 %v493, %v492
      %v603 = vpack.c.b16 %v495, %v494
      %v604 = vpack.c.b16 %v497, %v496
      %v605 = vpack.c.b16 %v499, %v498
      %v606 = vpack.c.b16 %v501, %v500
      %v607 = vpack.c.b16 %v503, %v502
      %v608 = vpack.c.b16 %v505, %v504
      %v609 = vpack.c.b16 %v507, %v506
      %v610 = vpack.c.b16 %v509, %v508
      %v611 = vpack.c.b16 %v511, %v510
      %v612 = vpack.c.b16 %v513, %v512
      %v613 = vpack.c.b16 %v515, %v514
      %v614 = vpack.c.b16 %v517, %v516
      %v615 = vpack.c.b16 %v519, %v518
      %v616 = vpack.c.b16 %v521, %v520
      %v617 = vpack.c.b16 %v523, %v522
      %v618 = vpack.c.b16 %v525, %v524
      %v619 = vpack.c.b16 %v527, %v526
      %v620 = vpack.c.b16 %v529, %v528
      %v621 = vpack.c.b16 %v531, %v530
      %v622 = vpack.c.b16 %v533, %v532
      %v623 = vpack.c.b16 %v535, %v534
      %v624 = vpack.c.b16 %v537, %v536
      %v625 = vpack.c.b16 %v539, %v538
      %v626 = vpack.c.b16 %v541, %v540
      %v627 = vpack.c.b16 %v543, %v542
      %v628 = vpack.c.b16 %v545, %v544
      %v629 = vpack.c.b16 %v547, %v546
      %v630 = vpack.c.b16 %v549, %v548
      %v631 = vpack.c.b16 %v551, %v550
      %v632 = vpack.c.b16 %v553, %v552
      %v633 = vpack.c.b16 %v555, %v554
      %v634 = vpack.c.b16 %v557, %v556
      %v635 = vpack.c.b16 %v559, %v558
      %v636 = vpack.c.b16 %v561, %v560
      %v637 = vpack.c.b16 %v563, %v562
      %v638 = vpack.c.b16 %v565, %v564
      %v639 = vpack.c.b16 %v567, %v566
      %v640 = vpack.c.b16 %v569, %v568
      %v641 = vpack.c.b16 %v571, %v570
      %v642 = vpack.c.b16 %v573, %v572
      %v643 = vpack.c.b16 %v575, %v574
      %v644 = vpack.c.b16 %v577, %v576
      %v645 = vpack.c.b16 %v579, %v578
      %v646 = vpack.c.b16 %v581, %v580
      %v647 = vpack.c.b16 %v583, %v582
      %v728 = vunpack.c.l.b16 %v312
      %v729 = vunpack.c.l.b16 %v313
      %v730 = vunpack.c.l.b16 %v314
      %v731 = vunpack.c.l.b16 %v315
      %v732 = vunpack.c.l.b16 %v316
      %v733 = vunpack.c.l.b16 %v317
      %v734 = vunpack.c.l.b16 %v318
      %v735 = vunpack.c.l.b16 %v319
      %v736 = vunpack.c.l.b16 %v320
      %v737 = vunpack.c.l.b16 %v321
      %v738 = vunpack.c.l.b16 %v322
      %v739 = vunpack.c.l.b16 %v323
      %v740 = vunpack.c.l.b16 %v324
      %v741 = vunpack.c.l.b16 %v325
      %v742 = vunpack.c.l.b16 %v326
      %v743 = vunpack.c.l.b16 %v327
      %v744 = vpack.c.b16 %v729, %v728
      %v745 = vpack.c.b16 %v731, %v730
      %v746 = vpack.c.b16 %v733, %v732
      %v747 = vpack.c.b16 %v735, %v734
      %v748 = vpack.c.b16 %v737, %v736
      %v749 = vpack.c.b16 %v739, %v738
      %v750 = vpack.c.b16 %v741, %v740
      %v751 = vpack.c.b16 %v743, %v742
      %760 = vmatpush.bf16.msra.mxu0 %v751
      %761 = vmatpush.bf16.msra.mxu0 %v750
      %762 = vmatpush.bf16.msra.mxu0 %v749
      %763 = vmatpush.bf16.msra.mxu0 %v748
      %764 = vmatpush.bf16.msra.mxu0 %v747
      %765 = vmatpush.bf16.msra.mxu0 %v746
      %766 = vmatpush.bf16.msra.mxu0 %v745
      %767 = vmatpush.bf16.msra.mxu0 %v744
      %768 = vmatmul.bf16.gmra.mxu0 %v584
      %v769 = vpop.f32.mrf.mxu0
      %v770 = vadd.f32 0.0, %v769
      %v771 = vpop.f32.mrf.mxu0
      %v772 = vadd.f32 0.0, %v771
      %773 = vmatmul.bf16.gmra.mxu0 %v585
      %v774 = vpop.f32.mrf.mxu0
      %v775 = vadd.f32 0.0, %v774
      %v776 = vpop.f32.mrf.mxu0
      %v777 = vadd.f32 0.0, %v776
      %778 = vmatmul.bf16.gmra.mxu0 %v586
      %v779 = vpop.f32.mrf.mxu0
      %v780 = vadd.f32 0.0, %v779
      %v781 = vpop.f32.mrf.mxu0
      %v782 = vadd.f32 0.0, %v781
      %783 = vmatmul.bf16.gmra.mxu0 %v587
      %v784 = vpop.f32.mrf.mxu0
      %v785 = vadd.f32 0.0, %v784
      %v786 = vpop.f32.mrf.mxu0
      %v787 = vadd.f32 0.0, %v786
      %788 = vmatmul.bf16.gmra.mxu0 %v588
      %v789 = vpop.f32.mrf.mxu0
      %v790 = vadd.f32 0.0, %v789
      %v791 = vpop.f32.mrf.mxu0
      %v792 = vadd.f32 0.0, %v791
      %793 = vmatmul.bf16.gmra.mxu0 %v589
      %v794 = vpop.f32.mrf.mxu0
      %v795 = vadd.f32 0.0, %v794
      %v796 = vpop.f32.mrf.mxu0
      %v797 = vadd.f32 0.0, %v796
      %798 = vmatmul.bf16.gmra.mxu0 %v590
      %v799 = vpop.f32.mrf.mxu0
      %v800 = vadd.f32 0.0, %v799
      %v801 = vpop.f32.mrf.mxu0
      %v802 = vadd.f32 0.0, %v801
      %803 = vmatmul.bf16.gmra.mxu0 %v591
      %v804 = vpop.f32.mrf.mxu0
      %v805 = vadd.f32 0.0, %v804
      %v806 = vpop.f32.mrf.mxu0
      %v807 = vadd.f32 0.0, %v806
      %808 = vmatmul.bf16.gmra.mxu0 %v592
      %v809 = vpop.f32.mrf.mxu0
      %v810 = vadd.f32 0.0, %v809
      %v811 = vpop.f32.mrf.mxu0
      %v812 = vadd.f32 0.0, %v811
      %813 = vmatmul.bf16.gmra.mxu0 %v593
      %v814 = vpop.f32.mrf.mxu0
      %v815 = vadd.f32 0.0, %v814
      %v816 = vpop.f32.mrf.mxu0
      %v817 = vadd.f32 0.0, %v816
      %818 = vmatmul.bf16.gmra.mxu0 %v594
      %v819 = vpop.f32.mrf.mxu0
      %v820 = vadd.f32 0.0, %v819
      %v821 = vpop.f32.mrf.mxu0
      %v822 = vadd.f32 0.0, %v821
      %823 = vmatmul.bf16.gmra.mxu0 %v595
      %v824 = vpop.f32.mrf.mxu0
      %v825 = vadd.f32 0.0, %v824
      %v826 = vpop.f32.mrf.mxu0
      %v827 = vadd.f32 0.0, %v826
      %828 = vmatmul.bf16.gmra.mxu0 %v596
      %v829 = vpop.f32.mrf.mxu0
      %v830 = vadd.f32 0.0, %v829
      %v831 = vpop.f32.mrf.mxu0
      %v832 = vadd.f32 0.0, %v831
      %833 = vmatmul.bf16.gmra.mxu0 %v597
      %v834 = vpop.f32.mrf.mxu0
      %v835 = vadd.f32 0.0, %v834
      %v836 = vpop.f32.mrf.mxu0
      %v837 = vadd.f32 0.0, %v836
      %838 = vmatmul.bf16.gmra.mxu0 %v598
      %v839 = vpop.f32.mrf.mxu0
      %v840 = vadd.f32 0.0, %v839
      %v841 = vpop.f32.mrf.mxu0
      %v842 = vadd.f32 0.0, %v841
      %843 = vmatmul.bf16.gmra.mxu0 %v599
      %v844 = vpop.f32.mrf.mxu0
      %v845 = vadd.f32 0.0, %v844
      %v846 = vpop.f32.mrf.mxu0
      %v847 = vadd.f32 0.0, %v846
      %848 = vmatmul.bf16.gmra.mxu0 %v600
      %v849 = vpop.f32.mrf.mxu0
      %v850 = vadd.f32 0.0, %v849
      %v851 = vpop.f32.mrf.mxu0
      %v852 = vadd.f32 0.0, %v851
      %853 = vmatmul.bf16.gmra.mxu0 %v601
      %v854 = vpop.f32.mrf.mxu0
      %v855 = vadd.f32 0.0, %v854
      %v856 = vpop.f32.mrf.mxu0
      %v857 = vadd.f32 0.0, %v856
      %858 = vmatmul.bf16.gmra.mxu0 %v602
      %v859 = vpop.f32.mrf.mxu0
      %v860 = vadd.f32 0.0, %v859
      %v861 = vpop.f32.mrf.mxu0
      %v862 = vadd.f32 0.0, %v861
      %863 = vmatmul.bf16.gmra.mxu0 %v603
      %v864 = vpop.f32.mrf.mxu0
      %v865 = vadd.f32 0.0, %v864
      %v866 = vpop.f32.mrf.mxu0
      %v867 = vadd.f32 0.0, %v866
      %868 = vmatmul.bf16.gmra.mxu0 %v604
      %v869 = vpop.f32.mrf.mxu0
      %v870 = vadd.f32 0.0, %v869
      %v871 = vpop.f32.mrf.mxu0
      %v872 = vadd.f32 0.0, %v871
      %873 = vmatmul.bf16.gmra.mxu0 %v605
      %v874 = vpop.f32.mrf.mxu0
      %v875 = vadd.f32 0.0, %v874
      %v876 = vpop.f32.mrf.mxu0
      %v877 = vadd.f32 0.0, %v876
      %878 = vmatmul.bf16.gmra.mxu0 %v606
      %v879 = vpop.f32.mrf.mxu0
      %v880 = vadd.f32 0.0, %v879
      %v881 = vpop.f32.mrf.mxu0
      %v882 = vadd.f32 0.0, %v881
      %883 = vmatmul.bf16.gmra.mxu0 %v607
      %v884 = vpop.f32.mrf.mxu0
      %v885 = vadd.f32 0.0, %v884
      %v886 = vpop.f32.mrf.mxu0
      %v887 = vadd.f32 0.0, %v886
      %888 = vmatmul.bf16.gmra.mxu0 %v608
      %v889 = vpop.f32.mrf.mxu0
      %v890 = vadd.f32 0.0, %v889
      %v891 = vpop.f32.mrf.mxu0
      %v892 = vadd.f32 0.0, %v891
      %893 = vmatmul.bf16.gmra.mxu0 %v609
      %v894 = vpop.f32.mrf.mxu0
      %v895 = vadd.f32 0.0, %v894
      %v896 = vpop.f32.mrf.mxu0
      %v897 = vadd.f32 0.0, %v896
      %898 = vmatmul.bf16.gmra.mxu0 %v610
      %v899 = vpop.f32.mrf.mxu0
      %v900 = vadd.f32 0.0, %v899
      %v901 = vpop.f32.mrf.mxu0
      %v902 = vadd.f32 0.0, %v901
      %903 = vmatmul.bf16.gmra.mxu0 %v611
      %v904 = vpop.f32.mrf.mxu0
      %v905 = vadd.f32 0.0, %v904
      %v906 = vpop.f32.mrf.mxu0
      %v907 = vadd.f32 0.0, %v906
      %908 = vmatmul.bf16.gmra.mxu0 %v612
      %v909 = vpop.f32.mrf.mxu0
      %v910 = vadd.f32 0.0, %v909
      %v911 = vpop.f32.mrf.mxu0
      %v912 = vadd.f32 0.0, %v911
      %913 = vmatmul.bf16.gmra.mxu0 %v613
      %v914 = vpop.f32.mrf.mxu0
      %v915 = vadd.f32 0.0, %v914
      %v916 = vpop.f32.mrf.mxu0
      %v917 = vadd.f32 0.0, %v916
      %918 = vmatmul.bf16.gmra.mxu0 %v614
      %v919 = vpop.f32.mrf.mxu0
      %v920 = vadd.f32 0.0, %v919
      %v921 = vpop.f32.mrf.mxu0
      %v922 = vadd.f32 0.0, %v921
      %923 = vmatmul.bf16.gmra.mxu0 %v615
      %v924 = vpop.f32.mrf.mxu0
      %v925 = vadd.f32 0.0, %v924
      %v926 = vpop.f32.mrf.mxu0
      %v927 = vadd.f32 0.0, %v926
      %928 = vmatmul.bf16.gmra.mxu0 %v616
      %v929 = vpop.f32.mrf.mxu0
      %v930 = vadd.f32 0.0, %v929
      %v931 = vpop.f32.mrf.mxu0
      %v932 = vadd.f32 0.0, %v931
      %933 = vmatmul.bf16.gmra.mxu0 %v617
      %v934 = vpop.f32.mrf.mxu0
      %v935 = vadd.f32 0.0, %v934
      %v936 = vpop.f32.mrf.mxu0
      %v937 = vadd.f32 0.0, %v936
      %938 = vmatmul.bf16.gmra.mxu0 %v618
      %v939 = vpop.f32.mrf.mxu0
      %v940 = vadd.f32 0.0, %v939
      %v941 = vpop.f32.mrf.mxu0
      %v942 = vadd.f32 0.0, %v941
      %943 = vmatmul.bf16.gmra.mxu0 %v619
      %v944 = vpop.f32.mrf.mxu0
      %v945 = vadd.f32 0.0, %v944
      %v946 = vpop.f32.mrf.mxu0
      %v947 = vadd.f32 0.0, %v946
      %948 = vmatmul.bf16.gmra.mxu0 %v620
      %v949 = vpop.f32.mrf.mxu0
      %v950 = vadd.f32 0.0, %v949
      %v951 = vpop.f32.mrf.mxu0
      %v952 = vadd.f32 0.0, %v951
      %953 = vmatmul.bf16.gmra.mxu0 %v621
      %v954 = vpop.f32.mrf.mxu0
      %v955 = vadd.f32 0.0, %v954
      %v956 = vpop.f32.mrf.mxu0
      %v957 = vadd.f32 0.0, %v956
      %958 = vmatmul.bf16.gmra.mxu0 %v622
      %v959 = vpop.f32.mrf.mxu0
      %v960 = vadd.f32 0.0, %v959
      %v961 = vpop.f32.mrf.mxu0
      %v962 = vadd.f32 0.0, %v961
      %963 = vmatmul.bf16.gmra.mxu0 %v623
      %v964 = vpop.f32.mrf.mxu0
      %v965 = vadd.f32 0.0, %v964
      %v966 = vpop.f32.mrf.mxu0
      %v967 = vadd.f32 0.0, %v966
      %968 = vmatmul.bf16.gmra.mxu0 %v624
      %v969 = vpop.f32.mrf.mxu0
      %v970 = vadd.f32 0.0, %v969
      %v971 = vpop.f32.mrf.mxu0
      %v972 = vadd.f32 0.0, %v971
      %973 = vmatmul.bf16.gmra.mxu0 %v625
      %v974 = vpop.f32.mrf.mxu0
      %v975 = vadd.f32 0.0, %v974
      %v976 = vpop.f32.mrf.mxu0
      %v977 = vadd.f32 0.0, %v976
      %978 = vmatmul.bf16.gmra.mxu0 %v626
      %v979 = vpop.f32.mrf.mxu0
      %v980 = vadd.f32 0.0, %v979
      %v981 = vpop.f32.mrf.mxu0
      %v982 = vadd.f32 0.0, %v981
      %983 = vmatmul.bf16.gmra.mxu0 %v627
      %v984 = vpop.f32.mrf.mxu0
      %v985 = vadd.f32 0.0, %v984
      %v986 = vpop.f32.mrf.mxu0
      %v987 = vadd.f32 0.0, %v986
      %988 = vmatmul.bf16.gmra.mxu0 %v628
      %v989 = vpop.f32.mrf.mxu0
      %v990 = vadd.f32 0.0, %v989
      %v991 = vpop.f32.mrf.mxu0
      %v992 = vadd.f32 0.0, %v991
      %993 = vmatmul.bf16.gmra.mxu0 %v629
      %v994 = vpop.f32.mrf.mxu0
      %v995 = vadd.f32 0.0, %v994
      %v996 = vpop.f32.mrf.mxu0
      %v997 = vadd.f32 0.0, %v996
      %998 = vmatmul.bf16.gmra.mxu0 %v630
      %v999 = vpop.f32.mrf.mxu0
      %v1000 = vadd.f32 0.0, %v999
      %v1001 = vpop.f32.mrf.mxu0
      %v1002 = vadd.f32 0.0, %v1001
      %1003 = vmatmul.bf16.gmra.mxu0 %v631
      %v1004 = vpop.f32.mrf.mxu0
      %v1005 = vadd.f32 0.0, %v1004
      %v1006 = vpop.f32.mrf.mxu0
      %v1007 = vadd.f32 0.0, %v1006
      %1008 = vmatmul.bf16.gmra.mxu0 %v632
      %v1009 = vpop.f32.mrf.mxu0
      %v1010 = vadd.f32 0.0, %v1009
      %v1011 = vpop.f32.mrf.mxu0
      %v1012 = vadd.f32 0.0, %v1011
      %1013 = vmatmul.bf16.gmra.mxu0 %v633
      %v1014 = vpop.f32.mrf.mxu0
      %v1015 = vadd.f32 0.0, %v1014
      %v1016 = vpop.f32.mrf.mxu0
      %v1017 = vadd.f32 0.0, %v1016
      %1018 = vmatmul.bf16.gmra.mxu0 %v634
      %v1019 = vpop.f32.mrf.mxu0
      %v1020 = vadd.f32 0.0, %v1019
      %v1021 = vpop.f32.mrf.mxu0
      %v1022 = vadd.f32 0.0, %v1021
      %1023 = vmatmul.bf16.gmra.mxu0 %v635
      %v1024 = vpop.f32.mrf.mxu0
      %v1025 = vadd.f32 0.0, %v1024
      %v1026 = vpop.f32.mrf.mxu0
      %v1027 = vadd.f32 0.0, %v1026
      %1028 = vmatmul.bf16.gmra.mxu0 %v636
      %v1029 = vpop.f32.mrf.mxu0
      %v1030 = vadd.f32 0.0, %v1029
      %v1031 = vpop.f32.mrf.mxu0
      %v1032 = vadd.f32 0.0, %v1031
      %1033 = vmatmul.bf16.gmra.mxu0 %v637
      %v1034 = vpop.f32.mrf.mxu0
      %v1035 = vadd.f32 0.0, %v1034
      %v1036 = vpop.f32.mrf.mxu0
      %v1037 = vadd.f32 0.0, %v1036
      %1038 = vmatmul.bf16.gmra.mxu0 %v638
      %v1039 = vpop.f32.mrf.mxu0
      %v1040 = vadd.f32 0.0, %v1039
      %v1041 = vpop.f32.mrf.mxu0
      %v1042 = vadd.f32 0.0, %v1041
      %1043 = vmatmul.bf16.gmra.mxu0 %v639
      %v1044 = vpop.f32.mrf.mxu0
      %v1045 = vadd.f32 0.0, %v1044
      %v1046 = vpop.f32.mrf.mxu0
      %v1047 = vadd.f32 0.0, %v1046
      %1048 = vmatmul.bf16.gmra.mxu0 %v640
      %v1049 = vpop.f32.mrf.mxu0
      %v1050 = vadd.f32 0.0, %v1049
      %v1051 = vpop.f32.mrf.mxu0
      %v1052 = vadd.f32 0.0, %v1051
      %1053 = vmatmul.bf16.gmra.mxu0 %v641
      %v1054 = vpop.f32.mrf.mxu0
      %v1055 = vadd.f32 0.0, %v1054
      %v1056 = vpop.f32.mrf.mxu0
      %v1057 = vadd.f32 0.0, %v1056
      %1058 = vmatmul.bf16.gmra.mxu0 %v642
      %v1059 = vpop.f32.mrf.mxu0
      %v1060 = vadd.f32 0.0, %v1059
      %v1061 = vpop.f32.mrf.mxu0
      %v1062 = vadd.f32 0.0, %v1061
      %1063 = vmatmul.bf16.gmra.mxu0 %v643
      %v1064 = vpop.f32.mrf.mxu0
      %v1065 = vadd.f32 0.0, %v1064
      %v1066 = vpop.f32.mrf.mxu0
      %v1067 = vadd.f32 0.0, %v1066
      %1068 = vmatmul.bf16.gmra.mxu0 %v644
      %v1069 = vpop.f32.mrf.mxu0
      %v1070 = vadd.f32 0.0, %v1069
      %v1071 = vpop.f32.mrf.mxu0
      %v1072 = vadd.f32 0.0, %v1071
      %1073 = vmatmul.bf16.gmra.mxu0 %v645
      %v1074 = vpop.f32.mrf.mxu0
      %v1075 = vadd.f32 0.0, %v1074
      %v1076 = vpop.f32.mrf.mxu0
      %v1077 = vadd.f32 0.0, %v1076
      %1078 = vmatmul.bf16.gmra.mxu0 %v646
      %v1079 = vpop.f32.mrf.mxu0
      %v1080 = vadd.f32 0.0, %v1079
      %v1081 = vpop.f32.mrf.mxu0
      %v1082 = vadd.f32 0.0, %v1081
      %1083 = vmatmul.bf16.gmra.mxu0 %v647
      %v1084 = vpop.f32.mrf.mxu0
      %v1085 = vadd.f32 0.0, %v1084
      %v1086 = vpop.f32.mrf.mxu0
      %v1087 = vadd.f32 0.0, %v1086
      %1088 = vdwg.mxu0
      %v1089 = vmul.f32 %v770, 0.2
      %v1090 = vmul.f32 %v772, 0.2
      %v1091 = vmul.f32 %v775, 0.2
      %v1092 = vmul.f32 %v777, 0.2
      %v1093 = vmul.f32 %v780, 0.2
      %v1094 = vmul.f32 %v782, 0.2
      %v1095 = vmul.f32 %v785, 0.2
      %v1096 = vmul.f32 %v787, 0.2
      %v1097 = vmul.f32 %v790, 0.2
      %v1098 = vmul.f32 %v792, 0.2
      %v1099 = vmul.f32 %v795, 0.2
      %v1100 = vmul.f32 %v797, 0.2
      %v1101 = vmul.f32 %v800, 0.2
      %v1102 = vmul.f32 %v802, 0.2
      %v1103 = vmul.f32 %v805, 0.2
      %v1104 = vmul.f32 %v807, 0.2
      %v1105 = vmul.f32 %v810, 0.2
      %v1106 = vmul.f32 %v812, 0.2
      %v1107 = vmul.f32 %v815, 0.2
      %v1108 = vmul.f32 %v817, 0.2
      %v1109 = vmul.f32 %v820, 0.2
      %v1110 = vmul.f32 %v822, 0.2
      %v1111 = vmul.f32 %v825, 0.2
      %v1112 = vmul.f32 %v827, 0.2
      %v1113 = vmul.f32 %v830, 0.2
      %v1114 = vmul.f32 %v832, 0.2
      %v1115 = vmul.f32 %v835, 0.2
      %v1116 = vmul.f32 %v837, 0.2
      %v1117 = vmul.f32 %v840, 0.2
      %v1118 = vmul.f32 %v842, 0.2
      %v1119 = vmul.f32 %v845, 0.2
      %v1120 = vmul.f32 %v847, 0.2
      %v1121 = vmul.f32 %v850, 0.2
      %v1122 = vmul.f32 %v852, 0.2
      %v1123 = vmul.f32 %v855, 0.2
      %v1124 = vmul.f32 %v857, 0.2
      %v1125 = vmul.f32 %v860, 0.2
      %v1126 = vmul.f32 %v862, 0.2
      %v1127 = vmul.f32 %v865, 0.2
      %v1128 = vmul.f32 %v867, 0.2
      %v1129 = vmul.f32 %v870, 0.2
      %v1130 = vmul.f32 %v872, 0.2
      %v1131 = vmul.f32 %v875, 0.2
      %v1132 = vmul.f32 %v877, 0.2
      %v1133 = vmul.f32 %v880, 0.2
      %v1134 = vmul.f32 %v882, 0.2
      %v1135 = vmul.f32 %v885, 0.2
      %v1136 = vmul.f32 %v887, 0.2
      %v1137 = vmul.f32 %v890, 0.2
      %v1138 = vmul.f32 %v892, 0.2
      %v1139 = vmul.f32 %v895, 0.2
      %v1140 = vmul.f32 %v897, 0.2
      %v1141 = vmul.f32 %v900, 0.2
      %v1142 = vmul.f32 %v902, 0.2
      %v1143 = vmul.f32 %v905, 0.2
      %v1144 = vmul.f32 %v907, 0.2
      %v1145 = vmul.f32 %v910, 0.2
      %v1146 = vmul.f32 %v912, 0.2
      %v1147 = vmul.f32 %v915, 0.2
      %v1148 = vmul.f32 %v917, 0.2
      %v1149 = vmul.f32 %v920, 0.2
      %v1150 = vmul.f32 %v922, 0.2
      %v1151 = vmul.f32 %v925, 0.2
      %v1152 = vmul.f32 %v927, 0.2
      %v1153 = vmul.f32 %v930, 0.2
      %v1154 = vmul.f32 %v932, 0.2
      %v1155 = vmul.f32 %v935, 0.2
      %v1156 = vmul.f32 %v937, 0.2
      %v1157 = vmul.f32 %v940, 0.2
      %v1158 = vmul.f32 %v942, 0.2
      %v1159 = vmul.f32 %v945, 0.2
      %v1160 = vmul.f32 %v947, 0.2
      %v1161 = vmul.f32 %v950, 0.2
      %v1162 = vmul.f32 %v952, 0.2
      %v1163 = vmul.f32 %v955, 0.2
      %v1164 = vmul.f32 %v957, 0.2
      %v1165 = vmul.f32 %v960, 0.2
      %v1166 = vmul.f32 %v962, 0.2
      %v1167 = vmul.f32 %v965, 0.2
      %v1168 = vmul.f32 %v967, 0.2
      %v1169 = vmul.f32 %v970, 0.2
      %v1170 = vmul.f32 %v972, 0.2
      %v1171 = vmul.f32 %v975, 0.2
      %v1172 = vmul.f32 %v977, 0.2
      %v1173 = vmul.f32 %v980, 0.2
      %v1174 = vmul.f32 %v982, 0.2
      %v1175 = vmul.f32 %v985, 0.2
      %v1176 = vmul.f32 %v987, 0.2
      %v1177 = vmul.f32 %v990, 0.2
      %v1178 = vmul.f32 %v992, 0.2
      %v1179 = vmul.f32 %v995, 0.2
      %v1180 = vmul.f32 %v997, 0.2
      %v1181 = vmul.f32 %v1000, 0.2
      %v1182 = vmul.f32 %v1002, 0.2
      %v1183 = vmul.f32 %v1005, 0.2
      %v1184 = vmul.f32 %v1007, 0.2
      %v1185 = vmul.f32 %v1010, 0.2
      %v1186 = vmul.f32 %v1012, 0.2
      %v1187 = vmul.f32 %v1015, 0.2
      %v1188 = vmul.f32 %v1017, 0.2
      %v1189 = vmul.f32 %v1020, 0.2
      %v1190 = vmul.f32 %v1022, 0.2
      %v1191 = vmul.f32 %v1025, 0.2
      %v1192 = vmul.f32 %v1027, 0.2
      %v1193 = vmul.f32 %v1030, 0.2
      %v1194 = vmul.f32 %v1032, 0.2
      %v1195 = vmul.f32 %v1035, 0.2
      %v1196 = vmul.f32 %v1037, 0.2
      %v1197 = vmul.f32 %v1040, 0.2
      %v1198 = vmul.f32 %v1042, 0.2
      %v1199 = vmul.f32 %v1045, 0.2
      %v1200 = vmul.f32 %v1047, 0.2
      %v1201 = vmul.f32 %v1050, 0.2
      %v1202 = vmul.f32 %v1052, 0.2
      %v1203 = vmul.f32 %v1055, 0.2
      %v1204 = vmul.f32 %v1057, 0.2
      %v1205 = vmul.f32 %v1060, 0.2
      %v1206 = vmul.f32 %v1062, 0.2
      %v1207 = vmul.f32 %v1065, 0.2
      %v1208 = vmul.f32 %v1067, 0.2
      %v1209 = vmul.f32 %v1070, 0.2
      %v1210 = vmul.f32 %v1072, 0.2
      %v1211 = vmul.f32 %v1075, 0.2
      %v1212 = vmul.f32 %v1077, 0.2
      %v1213 = vmul.f32 %v1080, 0.2
      %v1214 = vmul.f32 %v1082, 0.2
      %v1215 = vmul.f32 %v1085, 0.2
      %v1216 = vmul.f32 %v1087, 0.2
      %v1217 = vmax.f32 %v770, %v1089
      %v1218 = vmax.f32 %v772, %v1090
      %v1219 = vmax.f32 %v775, %v1091
      %v1220 = vmax.f32 %v777, %v1092
      %v1221 = vmax.f32 %v780, %v1093
      %v1222 = vmax.f32 %v782, %v1094
      %v1223 = vmax.f32 %v785, %v1095
      %v1224 = vmax.f32 %v787, %v1096
      %v1225 = vmax.f32 %v790, %v1097
      %v1226 = vmax.f32 %v792, %v1098
      %v1227 = vmax.f32 %v795, %v1099
      %v1228 = vmax.f32 %v797, %v1100
      %v1229 = vmax.f32 %v800, %v1101
      %v1230 = vmax.f32 %v802, %v1102
      %v1231 = vmax.f32 %v805, %v1103
      %v1232 = vmax.f32 %v807, %v1104
      %v1233 = vmax.f32 %v810, %v1105
      %v1234 = vmax.f32 %v812, %v1106
      %v1235 = vmax.f32 %v815, %v1107
      %v1236 = vmax.f32 %v817, %v1108
      %v1237 = vmax.f32 %v820, %v1109
      %v1238 = vmax.f32 %v822, %v1110
      %v1239 = vmax.f32 %v825, %v1111
      %v1240 = vmax.f32 %v827, %v1112
      %v1241 = vmax.f32 %v830, %v1113
      %v1242 = vmax.f32 %v832, %v1114
      %v1243 = vmax.f32 %v835, %v1115
      %v1244 = vmax.f32 %v837, %v1116
      %v1245 = vmax.f32 %v840, %v1117
      %v1246 = vmax.f32 %v842, %v1118
      %v1247 = vmax.f32 %v845, %v1119
      %v1248 = vmax.f32 %v847, %v1120
      %v1249 = vmax.f32 %v850, %v1121
      %v1250 = vmax.f32 %v852, %v1122
      %v1251 = vmax.f32 %v855, %v1123
      %v1252 = vmax.f32 %v857, %v1124
      %v1253 = vmax.f32 %v860, %v1125
      %v1254 = vmax.f32 %v862, %v1126
      %v1255 = vmax.f32 %v865, %v1127
      %v1256 = vmax.f32 %v867, %v1128
      %v1257 = vmax.f32 %v870, %v1129
      %v1258 = vmax.f32 %v872, %v1130
      %v1259 = vmax.f32 %v875, %v1131
      %v1260 = vmax.f32 %v877, %v1132
      %v1261 = vmax.f32 %v880, %v1133
      %v1262 = vmax.f32 %v882, %v1134
      %v1263 = vmax.f32 %v885, %v1135
      %v1264 = vmax.f32 %v887, %v1136
      %v1265 = vmax.f32 %v890, %v1137
      %v1266 = vmax.f32 %v892, %v1138
      %v1267 = vmax.f32 %v895, %v1139
      %v1268 = vmax.f32 %v897, %v1140
      %v1269 = vmax.f32 %v900, %v1141
      %v1270 = vmax.f32 %v902, %v1142
      %v1271 = vmax.f32 %v905, %v1143
      %v1272 = vmax.f32 %v907, %v1144
      %v1273 = vmax.f32 %v910, %v1145
      %v1274 = vmax.f32 %v912, %v1146
      %v1275 = vmax.f32 %v915, %v1147
      %v1276 = vmax.f32 %v917, %v1148
      %v1277 = vmax.f32 %v920, %v1149
      %v1278 = vmax.f32 %v922, %v1150
      %v1279 = vmax.f32 %v925, %v1151
      %v1280 = vmax.f32 %v927, %v1152
      %v1281 = vmax.f32 %v930, %v1153
      %v1282 = vmax.f32 %v932, %v1154
      %v1283 = vmax.f32 %v935, %v1155
      %v1284 = vmax.f32 %v937, %v1156
      %v1285 = vmax.f32 %v940, %v1157
      %v1286 = vmax.f32 %v942, %v1158
      %v1287 = vmax.f32 %v945, %v1159
      %v1288 = vmax.f32 %v947, %v1160
      %v1289 = vmax.f32 %v950, %v1161
      %v1290 = vmax.f32 %v952, %v1162
      %v1291 = vmax.f32 %v955, %v1163
      %v1292 = vmax.f32 %v957, %v1164
      %v1293 = vmax.f32 %v960, %v1165
      %v1294 = vmax.f32 %v962, %v1166
      %v1295 = vmax.f32 %v965, %v1167
      %v1296 = vmax.f32 %v967, %v1168
      %v1297 = vmax.f32 %v970, %v1169
      %v1298 = vmax.f32 %v972, %v1170
      %v1299 = vmax.f32 %v975, %v1171
      %v1300 = vmax.f32 %v977, %v1172
      %v1301 = vmax.f32 %v980, %v1173
      %v1302 = vmax.f32 %v982, %v1174
      %v1303 = vmax.f32 %v985, %v1175
      %v1304 = vmax.f32 %v987, %v1176
      %v1305 = vmax.f32 %v990, %v1177
      %v1306 = vmax.f32 %v992, %v1178
      %v1307 = vmax.f32 %v995, %v1179
      %v1308 = vmax.f32 %v997, %v1180
      %v1309 = vmax.f32 %v1000, %v1181
      %v1310 = vmax.f32 %v1002, %v1182
      %v1311 = vmax.f32 %v1005, %v1183
      %v1312 = vmax.f32 %v1007, %v1184
      %v1313 = vmax.f32 %v1010, %v1185
      %v1314 = vmax.f32 %v1012, %v1186
      %v1315 = vmax.f32 %v1015, %v1187
      %v1316 = vmax.f32 %v1017, %v1188
      %v1317 = vmax.f32 %v1020, %v1189
      %v1318 = vmax.f32 %v1022, %v1190
      %v1319 = vmax.f32 %v1025, %v1191
      %v1320 = vmax.f32 %v1027, %v1192
      %v1321 = vmax.f32 %v1030, %v1193
      %v1322 = vmax.f32 %v1032, %v1194
      %v1323 = vmax.f32 %v1035, %v1195
      %v1324 = vmax.f32 %v1037, %v1196
      %v1325 = vmax.f32 %v1040, %v1197
      %v1326 = vmax.f32 %v1042, %v1198
      %v1327 = vmax.f32 %v1045, %v1199
      %v1328 = vmax.f32 %v1047, %v1200
      %v1329 = vmax.f32 %v1050, %v1201
      %v1330 = vmax.f32 %v1052, %v1202
      %v1331 = vmax.f32 %v1055, %v1203
      %v1332 = vmax.f32 %v1057, %v1204
      %v1333 = vmax.f32 %v1060, %v1205
      %v1334 = vmax.f32 %v1062, %v1206
      %v1335 = vmax.f32 %v1065, %v1207
      %v1336 = vmax.f32 %v1067, %v1208
      %v1337 = vmax.f32 %v1070, %v1209
      %v1338 = vmax.f32 %v1072, %v1210
      %v1339 = vmax.f32 %v1075, %v1211
      %v1340 = vmax.f32 %v1077, %v1212
      %v1341 = vmax.f32 %v1080, %v1213
      %v1342 = vmax.f32 %v1082, %v1214
      %v1343 = vmax.f32 %v1085, %v1215
      %v1344 = vmax.f32 %v1087, %v1216
      %v1345 = vpack.c.bf16 %v1217, %v1217
      %v1346 = vpack.c.bf16 %v1218, %v1218
      %v1347 = vpack.c.bf16 %v1219, %v1219
      %v1348 = vpack.c.bf16 %v1220, %v1220
      %v1349 = vpack.c.bf16 %v1221, %v1221
      %v1350 = vpack.c.bf16 %v1222, %v1222
      %v1351 = vpack.c.bf16 %v1223, %v1223
      %v1352 = vpack.c.bf16 %v1224, %v1224
      %v1353 = vpack.c.bf16 %v1225, %v1225
      %v1354 = vpack.c.bf16 %v1226, %v1226
      %v1355 = vpack.c.bf16 %v1227, %v1227
      %v1356 = vpack.c.bf16 %v1228, %v1228
      %v1357 = vpack.c.bf16 %v1229, %v1229
      %v1358 = vpack.c.bf16 %v1230, %v1230
      %v1359 = vpack.c.bf16 %v1231, %v1231
      %v1360 = vpack.c.bf16 %v1232, %v1232
      %v1361 = vpack.c.bf16 %v1233, %v1233
      %v1362 = vpack.c.bf16 %v1234, %v1234
      %v1363 = vpack.c.bf16 %v1235, %v1235
      %v1364 = vpack.c.bf16 %v1236, %v1236
      %v1365 = vpack.c.bf16 %v1237, %v1237
      %v1366 = vpack.c.bf16 %v1238, %v1238
      %v1367 = vpack.c.bf16 %v1239, %v1239
      %v1368 = vpack.c.bf16 %v1240, %v1240
      %v1369 = vpack.c.bf16 %v1241, %v1241
      %v1370 = vpack.c.bf16 %v1242, %v1242
      %v1371 = vpack.c.bf16 %v1243, %v1243
      %v1372 = vpack.c.bf16 %v1244, %v1244
      %v1373 = vpack.c.bf16 %v1245, %v1245
      %v1374 = vpack.c.bf16 %v1246, %v1246
      %v1375 = vpack.c.bf16 %v1247, %v1247
      %v1376 = vpack.c.bf16 %v1248, %v1248
      %v1377 = vpack.c.bf16 %v1249, %v1249
      %v1378 = vpack.c.bf16 %v1250, %v1250
      %v1379 = vpack.c.bf16 %v1251, %v1251
      %v1380 = vpack.c.bf16 %v1252, %v1252
      %v1381 = vpack.c.bf16 %v1253, %v1253
      %v1382 = vpack.c.bf16 %v1254, %v1254
      %v1383 = vpack.c.bf16 %v1255, %v1255
      %v1384 = vpack.c.bf16 %v1256, %v1256
      %v1385 = vpack.c.bf16 %v1257, %v1257
      %v1386 = vpack.c.bf16 %v1258, %v1258
      %v1387 = vpack.c.bf16 %v1259, %v1259
      %v1388 = vpack.c.bf16 %v1260, %v1260
      %v1389 = vpack.c.bf16 %v1261, %v1261
      %v1390 = vpack.c.bf16 %v1262, %v1262
      %v1391 = vpack.c.bf16 %v1263, %v1263
      %v1392 = vpack.c.bf16 %v1264, %v1264
      %v1393 = vpack.c.bf16 %v1265, %v1265
      %v1394 = vpack.c.bf16 %v1266, %v1266
      %v1395 = vpack.c.bf16 %v1267, %v1267
      %v1396 = vpack.c.bf16 %v1268, %v1268
      %v1397 = vpack.c.bf16 %v1269, %v1269
      %v1398 = vpack.c.bf16 %v1270, %v1270
      %v1399 = vpack.c.bf16 %v1271, %v1271
      %v1400 = vpack.c.bf16 %v1272, %v1272
      %v1401 = vpack.c.bf16 %v1273, %v1273
      %v1402 = vpack.c.bf16 %v1274, %v1274
      %v1403 = vpack.c.bf16 %v1275, %v1275
      %v1404 = vpack.c.bf16 %v1276, %v1276
      %v1405 = vpack.c.bf16 %v1277, %v1277
      %v1406 = vpack.c.bf16 %v1278, %v1278
      %v1407 = vpack.c.bf16 %v1279, %v1279
      %v1408 = vpack.c.bf16 %v1280, %v1280
      %v1409 = vpack.c.bf16 %v1281, %v1281
      %v1410 = vpack.c.bf16 %v1282, %v1282
      %v1411 = vpack.c.bf16 %v1283, %v1283
      %v1412 = vpack.c.bf16 %v1284, %v1284
      %v1413 = vpack.c.bf16 %v1285, %v1285
      %v1414 = vpack.c.bf16 %v1286, %v1286
      %v1415 = vpack.c.bf16 %v1287, %v1287
      %v1416 = vpack.c.bf16 %v1288, %v1288
      %v1417 = vpack.c.bf16 %v1289, %v1289
      %v1418 = vpack.c.bf16 %v1290, %v1290
      %v1419 = vpack.c.bf16 %v1291, %v1291
      %v1420 = vpack.c.bf16 %v1292, %v1292
      %v1421 = vpack.c.bf16 %v1293, %v1293
      %v1422 = vpack.c.bf16 %v1294, %v1294
      %v1423 = vpack.c.bf16 %v1295, %v1295
      %v1424 = vpack.c.bf16 %v1296, %v1296
      %v1425 = vpack.c.bf16 %v1297, %v1297
      %v1426 = vpack.c.bf16 %v1298, %v1298
      %v1427 = vpack.c.bf16 %v1299, %v1299
      %v1428 = vpack.c.bf16 %v1300, %v1300
      %v1429 = vpack.c.bf16 %v1301, %v1301
      %v1430 = vpack.c.bf16 %v1302, %v1302
      %v1431 = vpack.c.bf16 %v1303, %v1303
      %v1432 = vpack.c.bf16 %v1304, %v1304
      %v1433 = vpack.c.bf16 %v1305, %v1305
      %v1434 = vpack.c.bf16 %v1306, %v1306
      %v1435 = vpack.c.bf16 %v1307, %v1307
      %v1436 = vpack.c.bf16 %v1308, %v1308
      %v1437 = vpack.c.bf16 %v1309, %v1309
      %v1438 = vpack.c.bf16 %v1310, %v1310
      %v1439 = vpack.c.bf16 %v1311, %v1311
      %v1440 = vpack.c.bf16 %v1312, %v1312
      %v1441 = vpack.c.bf16 %v1313, %v1313
      %v1442 = vpack.c.bf16 %v1314, %v1314
      %v1443 = vpack.c.bf16 %v1315, %v1315
      %v1444 = vpack.c.bf16 %v1316, %v1316
      %v1445 = vpack.c.bf16 %v1317, %v1317
      %v1446 = vpack.c.bf16 %v1318, %v1318
      %v1447 = vpack.c.bf16 %v1319, %v1319
      %v1448 = vpack.c.bf16 %v1320, %v1320
      %v1449 = vpack.c.bf16 %v1321, %v1321
      %v1450 = vpack.c.bf16 %v1322, %v1322
      %v1451 = vpack.c.bf16 %v1323, %v1323
      %v1452 = vpack.c.bf16 %v1324, %v1324
      %v1453 = vpack.c.bf16 %v1325, %v1325
      %v1454 = vpack.c.bf16 %v1326, %v1326
      %v1455 = vpack.c.bf16 %v1327, %v1327
      %v1456 = vpack.c.bf16 %v1328, %v1328
      %v1457 = vpack.c.bf16 %v1329, %v1329
      %v1458 = vpack.c.bf16 %v1330, %v1330
      %v1459 = vpack.c.bf16 %v1331, %v1331
      %v1460 = vpack.c.bf16 %v1332, %v1332
      %v1461 = vpack.c.bf16 %v1333, %v1333
      %v1462 = vpack.c.bf16 %v1334, %v1334
      %v1463 = vpack.c.bf16 %v1335, %v1335
      %v1464 = vpack.c.bf16 %v1336, %v1336
      %v1465 = vpack.c.bf16 %v1337, %v1337
      %v1466 = vpack.c.bf16 %v1338, %v1338
      %v1467 = vpack.c.bf16 %v1339, %v1339
      %v1468 = vpack.c.bf16 %v1340, %v1340
      %v1469 = vpack.c.bf16 %v1341, %v1341
      %v1470 = vpack.c.bf16 %v1342, %v1342
      %v1471 = vpack.c.bf16 %v1343, %v1343
      %v1472 = vpack.c.bf16 %v1344, %v1344
      %vm1473 = vcmask 60416
      %1474 = vst.msk [vmem:[%s182] sm:$0xf] %vm1473, %v1345
      %1475 = vst.msk [vmem:[%s182 + $0x4] sm:$0xf] %vm1473, %v1346
      %1476 = vst.msk [vmem:[%s182 + $0x8] sm:$0xf] %vm1473, %v1347
      %1477 = vst.msk [vmem:[%s182 + $0xc] sm:$0xf] %vm1473, %v1348
      %1478 = vst.msk [vmem:[%s182 + $0x10] sm:$0xf] %vm1473, %v1349
      %1479 = vst.msk [vmem:[%s182 + $0x14] sm:$0xf] %vm1473, %v1350
      %1480 = vst.msk [vmem:[%s182 + $0x18] sm:$0xf] %vm1473, %v1351
      %1481 = vst.msk [vmem:[%s182 + $0x1c] sm:$0xf] %vm1473, %v1352
      %1482 = vst.msk [vmem:[%s182 + $0x20] sm:$0xf] %vm1473, %v1353
      %1483 = vst.msk [vmem:[%s182 + $0x24] sm:$0xf] %vm1473, %v1354
      %1484 = vst.msk [vmem:[%s182 + $0x28] sm:$0xf] %vm1473, %v1355
      %1485 = vst.msk [vmem:[%s182 + $0x2c] sm:$0xf] %vm1473, %v1356
      %1486 = vst.msk [vmem:[%s182 + $0x30] sm:$0xf] %vm1473, %v1357
      %1487 = vst.msk [vmem:[%s182 + $0x34] sm:$0xf] %vm1473, %v1358
      %1488 = vst.msk [vmem:[%s182 + $0x38] sm:$0xf] %vm1473, %v1359
      %1489 = vst.msk [vmem:[%s182 + $0x3c] sm:$0xf] %vm1473, %v1360
      %1490 = vst.msk [vmem:[%s182 + $0x40] sm:$0xf] %vm1473, %v1361
      %1491 = vst.msk [vmem:[%s182 + $0x44] sm:$0xf] %vm1473, %v1362
      %1492 = vst.msk [vmem:[%s182 + $0x48] sm:$0xf] %vm1473, %v1363
      %1493 = vst.msk [vmem:[%s182 + $0x4c] sm:$0xf] %vm1473, %v1364
      %1494 = vst.msk [vmem:[%s182 + $0x50] sm:$0xf] %vm1473, %v1365
      %1495 = vst.msk [vmem:[%s182 + $0x54] sm:$0xf] %vm1473, %v1366
      %1496 = vst.msk [vmem:[%s182 + $0x58] sm:$0xf] %vm1473, %v1367
      %1497 = vst.msk [vmem:[%s182 + $0x5c] sm:$0xf] %vm1473, %v1368
      %1498 = vst.msk [vmem:[%s182 + $0x60] sm:$0xf] %vm1473, %v1369
      %1499 = vst.msk [vmem:[%s182 + $0x64] sm:$0xf] %vm1473, %v1370
      %1500 = vst.msk [vmem:[%s182 + $0x68] sm:$0xf] %vm1473, %v1371
      %1501 = vst.msk [vmem:[%s182 + $0x6c] sm:$0xf] %vm1473, %v1372
      %1502 = vst.msk [vmem:[%s182 + $0x70] sm:$0xf] %vm1473, %v1373
      %1503 = vst.msk [vmem:[%s182 + $0x74] sm:$0xf] %vm1473, %v1374
      %1504 = vst.msk [vmem:[%s182 + $0x78] sm:$0xf] %vm1473, %v1375
      %1505 = vst.msk [vmem:[%s182 + $0x7c] sm:$0xf] %vm1473, %v1376
      %1506 = vst.msk [vmem:[%s182 + $0x80] sm:$0xf] %vm1473, %v1377
      %1507 = vst.msk [vmem:[%s182 + $0x84] sm:$0xf] %vm1473, %v1378
      %1508 = vst.msk [vmem:[%s182 + $0x88] sm:$0xf] %vm1473, %v1379
      %1509 = vst.msk [vmem:[%s182 + $0x8c] sm:$0xf] %vm1473, %v1380
      %1510 = vst.msk [vmem:[%s182 + $0x90] sm:$0xf] %vm1473, %v1381
      %1511 = vst.msk [vmem:[%s182 + $0x94] sm:$0xf] %vm1473, %v1382
      %1512 = vst.msk [vmem:[%s182 + $0x98] sm:$0xf] %vm1473, %v1383
      %1513 = vst.msk [vmem:[%s182 + $0x9c] sm:$0xf] %vm1473, %v1384
      %1514 = vst.msk [vmem:[%s182 + $0xa0] sm:$0xf] %vm1473, %v1385
      %1515 = vst.msk [vmem:[%s182 + $0xa4] sm:$0xf] %vm1473, %v1386
      %1516 = vst.msk [vmem:[%s182 + $0xa8] sm:$0xf] %vm1473, %v1387
      %1517 = vst.msk [vmem:[%s182 + $0xac] sm:$0xf] %vm1473, %v1388
      %1518 = vst.msk [vmem:[%s182 + $0xb0] sm:$0xf] %vm1473, %v1389
      %1519 = vst.msk [vmem:[%s182 + $0xb4] sm:$0xf] %vm1473, %v1390
      %1520 = vst.msk [vmem:[%s182 + $0xb8] sm:$0xf] %vm1473, %v1391
      %1521 = vst.msk [vmem:[%s182 + $0xbc] sm:$0xf] %vm1473, %v1392
      %1522 = vst.msk [vmem:[%s182 + $0xc0] sm:$0xf] %vm1473, %v1393
      %1523 = vst.msk [vmem:[%s182 + $0xc4] sm:$0xf] %vm1473, %v1394
      %1524 = vst.msk [vmem:[%s182 + $0xc8] sm:$0xf] %vm1473, %v1395
      %1525 = vst.msk [vmem:[%s182 + $0xcc] sm:$0xf] %vm1473, %v1396
      %1526 = vst.msk [vmem:[%s182 + $0xd0] sm:$0xf] %vm1473, %v1397
      %1527 = vst.msk [vmem:[%s182 + $0xd4] sm:$0xf] %vm1473, %v1398
      %1528 = vst.msk [vmem:[%s182 + $0xd8] sm:$0xf] %vm1473, %v1399
      %1529 = vst.msk [vmem:[%s182 + $0xdc] sm:$0xf] %vm1473, %v1400
      %1530 = vst.msk [vmem:[%s182 + $0xe0] sm:$0xf] %vm1473, %v1401
      %1531 = vst.msk [vmem:[%s182 + $0xe4] sm:$0xf] %vm1473, %v1402
      %1532 = vst.msk [vmem:[%s182 + $0xe8] sm:$0xf] %vm1473, %v1403
      %1533 = vst.msk [vmem:[%s182 + $0xec] sm:$0xf] %vm1473, %v1404
      %1534 = vst.msk [vmem:[%s182 + $0xf0] sm:$0xf] %vm1473, %v1405
      %1535 = vst.msk [vmem:[%s182 + $0xf4] sm:$0xf] %vm1473, %v1406
      %1536 = vst.msk [vmem:[%s182 + $0xf8] sm:$0xf] %vm1473, %v1407
      %1537 = vst.msk [vmem:[%s182 + $0xfc] sm:$0xf] %vm1473, %v1408
      %1538 = vst.msk [vmem:[%s182 + $0x100] sm:$0xf] %vm1473, %v1409
      %1539 = vst.msk [vmem:[%s182 + $0x104] sm:$0xf] %vm1473, %v1410
      %1540 = vst.msk [vmem:[%s182 + $0x108] sm:$0xf] %vm1473, %v1411
      %1541 = vst.msk [vmem:[%s182 + $0x10c] sm:$0xf] %vm1473, %v1412
      %1542 = vst.msk [vmem:[%s182 + $0x110] sm:$0xf] %vm1473, %v1413
      %1543 = vst.msk [vmem:[%s182 + $0x114] sm:$0xf] %vm1473, %v1414
      %1544 = vst.msk [vmem:[%s182 + $0x118] sm:$0xf] %vm1473, %v1415
      %1545 = vst.msk [vmem:[%s182 + $0x11c] sm:$0xf] %vm1473, %v1416
      %1546 = vst.msk [vmem:[%s182 + $0x120] sm:$0xf] %vm1473, %v1417
      %1547 = vst.msk [vmem:[%s182 + $0x124] sm:$0xf] %vm1473, %v1418
      %1548 = vst.msk [vmem:[%s182 + $0x128] sm:$0xf] %vm1473, %v1419
      %1549 = vst.msk [vmem:[%s182 + $0x12c] sm:$0xf] %vm1473, %v1420
      %1550 = vst.msk [vmem:[%s182 + $0x130] sm:$0xf] %vm1473, %v1421
      %1551 = vst.msk [vmem:[%s182 + $0x134] sm:$0xf] %vm1473, %v1422
      %1552 = vst.msk [vmem:[%s182 + $0x138] sm:$0xf] %vm1473, %v1423
      %1553 = vst.msk [vmem:[%s182 + $0x13c] sm:$0xf] %vm1473, %v1424
      %1554 = vst.msk [vmem:[%s182 + $0x140] sm:$0xf] %vm1473, %v1425
      %1555 = vst.msk [vmem:[%s182 + $0x144] sm:$0xf] %vm1473, %v1426
      %1556 = vst.msk [vmem:[%s182 + $0x148] sm:$0xf] %vm1473, %v1427
      %1557 = vst.msk [vmem:[%s182 + $0x14c] sm:$0xf] %vm1473, %v1428
      %1558 = vst.msk [vmem:[%s182 + $0x150] sm:$0xf] %vm1473, %v1429
      %1559 = vst.msk [vmem:[%s182 + $0x154] sm:$0xf] %vm1473, %v1430
      %1560 = vst.msk [vmem:[%s182 + $0x158] sm:$0xf] %vm1473, %v1431
      %1561 = vst.msk [vmem:[%s182 + $0x15c] sm:$0xf] %vm1473, %v1432
      %1562 = vst.msk [vmem:[%s182 + $0x160] sm:$0xf] %vm1473, %v1433
      %1563 = vst.msk [vmem:[%s182 + $0x164] sm:$0xf] %vm1473, %v1434
      %1564 = vst.msk [vmem:[%s182 + $0x168] sm:$0xf] %vm1473, %v1435
      %1565 = vst.msk [vmem:[%s182 + $0x16c] sm:$0xf] %vm1473, %v1436
      %1566 = vst.msk [vmem:[%s182 + $0x170] sm:$0xf] %vm1473, %v1437
      %1567 = vst.msk [vmem:[%s182 + $0x174] sm:$0xf] %vm1473, %v1438
      %1568 = vst.msk [vmem:[%s182 + $0x178] sm:$0xf] %vm1473, %v1439
      %1569 = vst.msk [vmem:[%s182 + $0x17c] sm:$0xf] %vm1473, %v1440
      %1570 = vst.msk [vmem:[%s182 + $0x180] sm:$0xf] %vm1473, %v1441
      %1571 = vst.msk [vmem:[%s182 + $0x184] sm:$0xf] %vm1473, %v1442
      %1572 = vst.msk [vmem:[%s182 + $0x188] sm:$0xf] %vm1473, %v1443
      %1573 = vst.msk [vmem:[%s182 + $0x18c] sm:$0xf] %vm1473, %v1444
      %1574 = vst.msk [vmem:[%s182 + $0x190] sm:$0xf] %vm1473, %v1445
      %1575 = vst.msk [vmem:[%s182 + $0x194] sm:$0xf] %vm1473, %v1446
      %1576 = vst.msk [vmem:[%s182 + $0x198] sm:$0xf] %vm1473, %v1447
      %1577 = vst.msk [vmem:[%s182 + $0x19c] sm:$0xf] %vm1473, %v1448
      %1578 = vst.msk [vmem:[%s182 + $0x1a0] sm:$0xf] %vm1473, %v1449
      %1579 = vst.msk [vmem:[%s182 + $0x1a4] sm:$0xf] %vm1473, %v1450
      %1580 = vst.msk [vmem:[%s182 + $0x1a8] sm:$0xf] %vm1473, %v1451
      %1581 = vst.msk [vmem:[%s182 + $0x1ac] sm:$0xf] %vm1473, %v1452
      %1582 = vst.msk [vmem:[%s182 + $0x1b0] sm:$0xf] %vm1473, %v1453
      %1583 = vst.msk [vmem:[%s182 + $0x1b4] sm:$0xf] %vm1473, %v1454
      %1584 = vst.msk [vmem:[%s182 + $0x1b8] sm:$0xf] %vm1473, %v1455
      %1585 = vst.msk [vmem:[%s182 + $0x1bc] sm:$0xf] %vm1473, %v1456
      %1586 = vst.msk [vmem:[%s182 + $0x1c0] sm:$0xf] %vm1473, %v1457
      %1587 = vst.msk [vmem:[%s182 + $0x1c4] sm:$0xf] %vm1473, %v1458
      %1588 = vst.msk [vmem:[%s182 + $0x1c8] sm:$0xf] %vm1473, %v1459
      %1589 = vst.msk [vmem:[%s182 + $0x1cc] sm:$0xf] %vm1473, %v1460
      %1590 = vst.msk [vmem:[%s182 + $0x1d0] sm:$0xf] %vm1473, %v1461
      %1591 = vst.msk [vmem:[%s182 + $0x1d4] sm:$0xf] %vm1473, %v1462
      %1592 = vst.msk [vmem:[%s182 + $0x1d8] sm:$0xf] %vm1473, %v1463
      %1593 = vst.msk [vmem:[%s182 + $0x1dc] sm:$0xf] %vm1473, %v1464
      %1594 = vst.msk [vmem:[%s182 + $0x1e0] sm:$0xf] %vm1473, %v1465
      %1595 = vst.msk [vmem:[%s182 + $0x1e4] sm:$0xf] %vm1473, %v1466
      %1596 = vst.msk [vmem:[%s182 + $0x1e8] sm:$0xf] %vm1473, %v1467
      %1597 = vst.msk [vmem:[%s182 + $0x1ec] sm:$0xf] %vm1473, %v1468
      %1598 = vst.msk [vmem:[%s182 + $0x1f0] sm:$0xf] %vm1473, %v1469
      %1599 = vst.msk [vmem:[%s182 + $0x1f4] sm:$0xf] %vm1473, %v1470
      %1600 = vst.msk [vmem:[%s182 + $0x1f8] sm:$0xf] %vm1473, %v1471
      %1601 = vst.msk [vmem:[%s182 + $0x1fc] sm:$0xf] %vm1473, %v1472
      %s1602 = smul.u32 128, %s17
      %p1603 = scmp.lt.s32.totalorder %s1602, 511
      %s1604 = scalar_select %p1603, %s1602, 511
      %p1605 = scmp.lt.s32.totalorder %s18, 0
      %s1606 = scalar_select %p1605, %s18, 0
      %s1607 = sadd.s32 %s1606, %s1604
      %s1608 = smul.addr %s1607, 4
      %s1609 = scalar_lea.vmem %s2, %s1608
      // Predicated region
      $region29: #{critic_forward.4} parent=27 // pred_check
        %p1610 = pneg %p97
      $region30: #{critic_forward.4} parent=27 // pred_check_branch
        %1612 = sbr.rel (%p1610) target = $region32
      $region31: #{critic_forward.4} parent=27 // pred_region
        %s1613 = smul.u32 128, %s17
      $region32: #{critic_forward.4} parent=27 // pred_fallthru
        _
    $region28: #{critic_forward.4} parent=5 // pred_fallthru
      _
    %p1614 = scmp.le.s32.totalorder 2, %s8
    // Predicated region
    $region33: #{critic_forward.4} parent=5 // pred_check
      %p1615 = pneg %p1614
    $region34: #{critic_forward.4} parent=5 // pred_check_branch
      %1617 = sbr.rel (%p1615) target = $region36
    $region35: #{critic_forward.4} parent=5 // pred_region
      %s1618 = ssub.s32 %s8, 2
      // Predicated region
      $region37: #{critic_forward.4} parent=35 // pred_check
        %p1619 = pneg %p103
      $region38: #{critic_forward.4} parent=35 // pred_check_branch
        %1621 = sbr.rel (%p1619) target = $region40
      $region39: #{critic_forward.4} parent=35 // pred_region
        %s1622 = smul.u32 128, %s19
        %p1623 = scmp.lt.s32.totalorder %s1622, 511
        %s1624 = scalar_select %p1623, %s1622, 511
        %p1625 = scmp.lt.s32.totalorder %s20, 0
        %s1626 = scalar_select %p1625, %s20, 0
        %s1627 = sadd.s32 %s1626, %s1624
        %s1628 = smul.addr %s1627, 4
        %s1629 = scalar_lea.vmem %s2, %s1628
      $region40: #{critic_forward.4} parent=35 // pred_fallthru
        _
    $region36: #{critic_forward.4} parent=5 // pred_fallthru
      _
  $region6: #{critic_forward.4} parent=0 // loop_footer
    %s12 = sadd.s32 1, %s8
  $region7: #{critic_forward.4} parent=0 // loop_footer_branch
    %7 = sbr.rel target = $region3
  $region8: #{critic_forward.4} parent=0 // loop_exit
    _

// kernel: critic_forward.5
$region0: #{critic_forward.5}
  #allocation0 [shape = 'u32[]', space=smem, size = 0x4, offset = 0x4, fixed_abs, tag = 'smem constant byte address 0x4 - core index']
  #allocation1 [shape = 'u32[72,128]{1,0:T(1,128)}', space=vmem, size = 0x9000, scoped, tag = 'internal scratch']
  %s0 = inlined_call_operand.vmem [shape: bf16[1024,128], index: 0, kind: input, shape index: {}]
  %s1 = inlined_call_operand.vmem [shape: bf16[128,16], index: 1, kind: input, shape index: {}]
  %s2 = inlined_call_operand.vmem [shape: f32[1,16], index: 2, kind: input, shape index: {}]
  %s3 = inlined_call_operand.vmem [shape: f32[1,16], index: 3, kind: input, shape index: {}]
  %s4 = inlined_call_operand.vmem [shape: bf16[1024,16], index: 4, kind: output, shape index: {}]
  %s5 = sld [smem:[#allocation0]]
  $region49: #{critic_forward.5} parent=0
    _
  %s7 = ssub.s32 1, %s5
  %s8 = scalar_select 0, %s7, %s5
  loop: start=0, step=1, limit=6
  $region2: #{critic_forward.5} parent=0 // loop_pre_header
    _
  $region3: #{critic_forward.5} parent=0 // loop_header
    %s10 = sphi 0, %s14
    %p11 = scmp.ge.s32.totalorder %s10, 6
    %s17 = sphi 0, %s29
    %s18 = sphi 0, %s25
    %s19 = sphi 0, %s17
    %s20 = sphi 0, %s18
    %s21 = sphi 0, %s19
    %s22 = sphi 0, %s20
    %s32 = sphi 0, %s34
    %s35 = sphi 0, %s32
    %s36 = sphi 0, %s35
    %s52 = sphi 0, %s36
    %s58 = sphi 0, %s60
    %s61 = sphi 0, %s58
    %s62 = sphi 0, %s61
    %s78 = sphi 0, %s62
    %s84 = sphi 0, %s86
    %s87 = sphi 0, %s84
    %s88 = sphi 0, %s87
    %s104 = sphi 0, %s88
    %s110 = sphi 0, %s112
    %s113 = sphi 0, %s110
    %s114 = sphi 0, %s113
    %s130 = sphi 0, %s114
    %s138 = sphi 0, %s140
    %s141 = sphi 0, %s138
    %s142 = sphi 0, %s141
    %s158 = sphi 0, %s142
  $region4: #{critic_forward.5} parent=0 // loop_header_branch
    %13 = sbr.rel (%p11) target = $region8
  $region5: #{critic_forward.5} parent=0 // loop_body
    %s15 = ssub.s32 %s10, 1
    %s16 = ssub.s32 %s10, 2
    %s23 = sadd.s32 1, %s18
    %p24 = scmp.ge.s32.totalorder %s23, 1
    %s25 = scalar_select %p24, 0, %s23
    %s26 = sadd.s32 1, %s17
    %s27 = scalar_select %p24, %s26, %s17
    %p28 = scmp.ge.s32.totalorder %s27, 4
    %s29 = scalar_select %p28, 0, %s27
    %s30 = ssub.s32 %s17, %s29
    %p31 = scmp.eq.s32.totalorder %s30, 0
    %s33 = sadd.s32 %s32, 1
    %s34 = scalar_select %p31, %s32, %s33
    %p37 = pneg %p31
    %p38 = scmp.eq.s32.totalorder %s10, 3
    %p39 = por %p37, %p38
    %p40 = scmp.ne.s32.totalorder %s32, %s35
    %p41 = scmp.eq.s32.totalorder %s10, 0
    %p42 = por %p40, %p41
    %p43 = scmp.ne.s32.totalorder %s32, %s35
    %p44 = scmp.eq.s32.totalorder %s15, 3
    %p45 = por %p43, %p44
    %p46 = scmp.ne.s32.totalorder %s35, %s36
    %p47 = scmp.eq.s32.totalorder %s15, 0
    %p48 = por %p46, %p47
    %p49 = scmp.ne.s32.totalorder %s35, %s36
    %p50 = scmp.eq.s32.totalorder %s16, 3
    %p51 = por %p49, %p50
    %p53 = scmp.ne.s32.totalorder %s36, %s52
    %p54 = scmp.eq.s32.totalorder %s16, 0
    %p55 = por %p53, %p54
    %s56 = ssub.s32 %s18, %s25
    %p57 = scmp.eq.s32.totalorder %s56, 0
    %s59 = sadd.s32 %s58, 1
    %s60 = scalar_select %p57, %s58, %s59
    %p63 = pneg %p57
    %p64 = scmp.eq.s32.totalorder %s10, 3
    %p65 = por %p63, %p64
    %p66 = scmp.ne.s32.totalorder %s58, %s61
    %p67 = scmp.eq.s32.totalorder %s10, 0
    %p68 = por %p66, %p67
    %p69 = scmp.ne.s32.totalorder %s58, %s61
    %p70 = scmp.eq.s32.totalorder %s15, 3
    %p71 = por %p69, %p70
    %p72 = scmp.ne.s32.totalorder %s61, %s62
    %p73 = scmp.eq.s32.totalorder %s15, 0
    %p74 = por %p72, %p73
    %p75 = scmp.ne.s32.totalorder %s61, %s62
    %p76 = scmp.eq.s32.totalorder %s16, 3
    %p77 = por %p75, %p76
    %p79 = scmp.ne.s32.totalorder %s62, %s78
    %p80 = scmp.eq.s32.totalorder %s16, 0
    %p81 = por %p79, %p80
    %s82 = ssub.s32 %s18, %s25
    %p83 = scmp.eq.s32.totalorder %s82, 0
    %s85 = sadd.s32 %s84, 1
    %s86 = scalar_select %p83, %s84, %s85
    %p89 = pneg %p83
    %p90 = scmp.eq.s32.totalorder %s10, 3
    %p91 = por %p89, %p90
    %p92 = scmp.ne.s32.totalorder %s84, %s87
    %p93 = scmp.eq.s32.totalorder %s10, 0
    %p94 = por %p92, %p93
    %p95 = scmp.ne.s32.totalorder %s84, %s87
    %p96 = scmp.eq.s32.totalorder %s15, 3
    %p97 = por %p95, %p96
    %p98 = scmp.ne.s32.totalorder %s87, %s88
    %p99 = scmp.eq.s32.totalorder %s15, 0
    %p100 = por %p98, %p99
    %p101 = scmp.ne.s32.totalorder %s87, %s88
    %p102 = scmp.eq.s32.totalorder %s16, 3
    %p103 = por %p101, %p102
    %p105 = scmp.ne.s32.totalorder %s88, %s104
    %p106 = scmp.eq.s32.totalorder %s16, 0
    %p107 = por %p105, %p106
    %s108 = ssub.s32 %s18, %s25
    %p109 = scmp.eq.s32.totalorder %s108, 0
    %s111 = sadd.s32 %s110, 1
    %s112 = scalar_select %p109, %s110, %s111
    %p115 = pneg %p109
    %p116 = scmp.eq.s32.totalorder %s10, 3
    %p117 = por %p115, %p116
    %p118 = scmp.ne.s32.totalorder %s110, %s113
    %p119 = scmp.eq.s32.totalorder %s10, 0
    %p120 = por %p118, %p119
    %p121 = scmp.ne.s32.totalorder %s110, %s113
    %p122 = scmp.eq.s32.totalorder %s15, 3
    %p123 = por %p121, %p122
    %p124 = scmp.ne.s32.totalorder %s113, %s114
    %p125 = scmp.eq.s32.totalorder %s15, 0
    %p126 = por %p124, %p125
    %p127 = scmp.ne.s32.totalorder %s113, %s114
    %p128 = scmp.eq.s32.totalorder %s16, 3
    %p129 = por %p127, %p128
    %p131 = scmp.ne.s32.totalorder %s114, %s130
    %p132 = scmp.eq.s32.totalorder %s16, 0
    %p133 = por %p131, %p132
    %s134 = ssub.s32 %s17, %s29
    %s135 = ssub.s32 %s18, %s25
    %s136 = sor.u32 %s134, %s135
    %p137 = scmp.eq.s32.totalorder %s136, 0
    %s139 = sadd.s32 %s138, 1
    %s140 = scalar_select %p137, %s138, %s139
    %p143 = pneg %p137
    %p144 = scmp.eq.s32.totalorder %s10, 3
    %p145 = por %p143, %p144
    %p146 = scmp.ne.s32.totalorder %s138, %s141
    %p147 = scmp.eq.s32.totalorder %s10, 0
    %p148 = por %p146, %p147
    %p149 = scmp.ne.s32.totalorder %s138, %s141
    %p150 = scmp.eq.s32.totalorder %s15, 3
    %p151 = por %p149, %p150
    %p152 = scmp.ne.s32.totalorder %s141, %s142
    %p153 = scmp.eq.s32.totalorder %s15, 0
    %p154 = por %p152, %p153
    %p155 = scmp.ne.s32.totalorder %s141, %s142
    %p156 = scmp.eq.s32.totalorder %s16, 3
    %p157 = por %p155, %p156
    %p159 = scmp.ne.s32.totalorder %s142, %s158
    %p160 = scmp.eq.s32.totalorder %s16, 0
    %p161 = por %p159, %p160
    %p162 = scmp.le.s32.totalorder 1, %s10
    %p163 = scmp.lt.s32.totalorder %s10, 5
    %p164 = pnand %p162, %p163
    %p165 = pneg %p164
    // Predicated region
    $region9: #{critic_forward.5} parent=5 // pred_check
      _
    $region10: #{critic_forward.5} parent=5 // pred_check_branch
      %167 = sbr.rel (%p164) target = $region12
    $region11: #{critic_forward.5} parent=5 // pred_region
      %s168 = ssub.s32 %s10, 1
      // Predicated region
      $region13: #{critic_forward.5} parent=11 // pred_check
        %p169 = pneg %p74
      $region14: #{critic_forward.5} parent=11 // pred_check_branch
        %171 = sbr.rel (%p169) target = $region16
      $region15: #{critic_forward.5} parent=11 // pred_region
        %p172 = scmp.lt.s32.totalorder %s20, 0
        %s173 = scalar_select %p172, %s20, 0
        %s174 = smul.addr %s173, 4
        %s175 = scalar_lea.vmem %s1, %s174
      $region16: #{critic_forward.5} parent=11 // pred_fallthru
        _
      // Predicated region
      $region17: #{critic_forward.5} parent=11 // pred_check
        %p176 = pneg %p100
      $region18: #{critic_forward.5} parent=11 // pred_check_branch
        %178 = sbr.rel (%p176) target = $region20
      $region19: #{critic_forward.5} parent=11 // pred_region
        %p179 = scmp.lt.s32.totalorder %s20, 0
        %s180 = scalar_select %p179, %s20, 0
        %s181 = scalar_lea.vmem %s2, %s180
      $region20: #{critic_forward.5} parent=11 // pred_fallthru
        _
      // Predicated region
      $region21: #{critic_forward.5} parent=11 // pred_check
        %p182 = pneg %p126
      $region22: #{critic_forward.5} parent=11 // pred_check_branch
        %184 = sbr.rel (%p182) target = $region24
      $region23: #{critic_forward.5} parent=11 // pred_region
        %p185 = scmp.lt.s32.totalorder %s20, 0
        %s186 = scalar_select %p185, %s20, 0
        %s187 = scalar_lea.vmem %s3, %s186
      $region24: #{critic_forward.5} parent=11 // pred_fallthru
        _
    $region12: #{critic_forward.5} parent=5 // pred_fallthru
      _
    %p188 = scmp.lt.s32.totalorder %s10, 4
    // Predicated region
    $region25: #{critic_forward.5} parent=5 // pred_check
      %p189 = pneg %p188
    $region26: #{critic_forward.5} parent=5 // pred_check_branch
      %191 = sbr.rel (%p189) target = $region28
    $region27: #{critic_forward.5} parent=5 // pred_region
      // Predicated region
      $region29: #{critic_forward.5} parent=27 // pred_check
        %p192 = pneg %p42
      $region30: #{critic_forward.5} parent=27 // pred_check_branch
        %194 = sbr.rel (%p192) target = $region32
      $region31: #{critic_forward.5} parent=27 // pred_region
        %s195 = smul.u32 32, %s17
        %p196 = scmp.lt.s32.totalorder %s195, 127
        %s197 = scalar_select %p196, %s195, 127
        %s198 = smul.addr %s197, 4
        %s199 = scalar_lea.vmem %s0, %s198
        %s200 = smul.u32 32, %s17
      $region32: #{critic_forward.5} parent=27 // pred_fallthru
        _
    $region28: #{critic_forward.5} parent=5 // pred_fallthru
      _
    %p201 = scmp.le.s32.totalorder 1, %s10
    %p202 = scmp.lt.s32.totalorder %s10, 5
    %p203 = pnand %p201, %p202
    %p204 = pneg %p203
    // Predicated region
    $region33: #{critic_forward.5} parent=5 // pred_check
      _
    $region34: #{critic_forward.5} parent=5 // pred_check_branch
      %206 = sbr.rel (%p203) target = $region36
    $region35: #{critic_forward.5} parent=5 // pred_region
      %s207 = ssub.s32 %s10, 1
      %s208 = smul.u32 32, %s19
      %p209 = scmp.lt.s32.totalorder %s208, 127
      %s210 = scalar_select %p209, %s208, 127
      %s211 = smul.addr %s210, 4
      %s212 = scalar_lea.vmem %s0, %s211
      %p213 = pneg %p48
      %p214 = pneg %p45
      %p215 = scmp.lt.s32.totalorder %s20, 0
      %s216 = scalar_select %p215, %s20, 0
      %s217 = smul.addr %s216, 4
      %s218 = scalar_lea.vmem %s1, %s217
      %p219 = pneg %p74
      %p220 = pneg %p71
      %p221 = scmp.lt.s32.totalorder %s20, 0
      %s222 = scalar_select %p221, %s20, 0
      %s223 = scalar_lea.vmem %s2, %s222
      %p224 = pneg %p100
      %p225 = pneg %p97
      %p226 = scmp.lt.s32.totalorder %s20, 0
      %s227 = scalar_select %p226, %s20, 0
      %s228 = scalar_lea.vmem %s3, %s227
      %p229 = pneg %p126
      %p230 = pneg %p123
      %p231 = pneg %p154
      %p232 = pneg %p151
      %s233 = smul.u32 32, %s19
      %p234 = scmp.lt.s32.totalorder %s233, 127
      %s235 = scalar_select %p234, %s233, 127
      %p236 = scmp.lt.s32.totalorder %s20, 0
      %s237 = scalar_select %p236, %s20, 0
      %s238 = sadd.s32 %s237, %s235
      %s239 = smul.addr %s238, 4
      %s240 = scalar_lea.vmem %s4, %s239
      %s241 = smul.u32 32, %s19
      %p242 = scmp.lt.s32.totalorder %s241, 127
      %s243 = scalar_select %p242, %s241, 127
      %s244 = smul.addr %s243, 4
      %s245 = scalar_lea.vmem %s0, %s244
      %s246 = smul.u32 32, %s19
      %p247 = scmp.lt.s32.totalorder %s20, 0
      %s248 = scalar_select %p247, %s20, 0
      %s249 = smul.addr %s248, 4
      %s250 = scalar_lea.vmem %s1, %s249
      %p251 = scmp.lt.s32.totalorder %s20, 0
      %s252 = scalar_select %p251, %s20, 0
      %s253 = scalar_lea.vmem %s2, %s252
      %p254 = scmp.lt.s32.totalorder %s20, 0
      %s255 = scalar_select %p254, %s20, 0
      %s256 = scalar_lea.vmem %s3, %s255
      %s257 = smul.u32 32, %s19
      %p258 = scmp.lt.s32.totalorder %s257, 127
      %s259 = scalar_select %p258, %s257, 127
      %p260 = scmp.lt.s32.totalorder %s20, 0
      %s261 = scalar_select %p260, %s20, 0
      %s262 = sadd.s32 %s261, %s259
      %s263 = smul.addr %s262, 4
      %s264 = scalar_lea.vmem %s4, %s263
      %s265 = smul.u32 32, %s19
      %v266 = vld [vmem:[%s245] sm:$0xf]
      %v267 = vld [vmem:[%s245 + $0x4] sm:$0xf]
      %v268 = vld [vmem:[%s245 + $0x8] sm:$0xf]
      %v269 = vld [vmem:[%s245 + $0xc] sm:$0xf]
      %v270 = vld [vmem:[%s245 + $0x10] sm:$0xf]
      %v271 = vld [vmem:[%s245 + $0x14] sm:$0xf]
      %v272 = vld [vmem:[%s245 + $0x18] sm:$0xf]
      %v273 = vld [vmem:[%s245 + $0x1c] sm:$0xf]
      %v274 = vld [vmem:[%s245 + $0x20] sm:$0xf]
      %v275 = vld [vmem:[%s245 + $0x24] sm:$0xf]
      %v276 = vld [vmem:[%s245 + $0x28] sm:$0xf]
      %v277 = vld [vmem:[%s245 + $0x2c] sm:$0xf]
      %v278 = vld [vmem:[%s245 + $0x30] sm:$0xf]
      %v279 = vld [vmem:[%s245 + $0x34] sm:$0xf]
      %v280 = vld [vmem:[%s245 + $0x38] sm:$0xf]
      %v281 = vld [vmem:[%s245 + $0x3c] sm:$0xf]
      %v282 = vld [vmem:[%s245 + $0x40] sm:$0xf]
      %v283 = vld [vmem:[%s245 + $0x44] sm:$0xf]
      %v284 = vld [vmem:[%s245 + $0x48] sm:$0xf]
      %v285 = vld [vmem:[%s245 + $0x4c] sm:$0xf]
      %v286 = vld [vmem:[%s245 + $0x50] sm:$0xf]
      %v287 = vld [vmem:[%s245 + $0x54] sm:$0xf]
      %v288 = vld [vmem:[%s245 + $0x58] sm:$0xf]
      %v289 = vld [vmem:[%s245 + $0x5c] sm:$0xf]
      %v290 = vld [vmem:[%s245 + $0x60] sm:$0xf]
      %v291 = vld [vmem:[%s245 + $0x64] sm:$0xf]
      %v292 = vld [vmem:[%s245 + $0x68] sm:$0xf]
      %v293 = vld [vmem:[%s245 + $0x6c] sm:$0xf]
      %v294 = vld [vmem:[%s245 + $0x70] sm:$0xf]
      %v295 = vld [vmem:[%s245 + $0x74] sm:$0xf]
      %v296 = vld [vmem:[%s245 + $0x78] sm:$0xf]
      %v297 = vld [vmem:[%s245 + $0x7c] sm:$0xf]
      %v298 = vld [vmem:[%s250] sm:$0xf]
      %v299 = vld [vmem:[%s250 + $0x4] sm:$0xf]
      %v300 = vld [vmem:[%s250 + $0x8] sm:$0xf]
      %v301 = vld [vmem:[%s250 + $0xc] sm:$0xf]
      %v302 = vld [vmem:[%s250 + $0x10] sm:$0xf]
      %v303 = vld [vmem:[%s250 + $0x14] sm:$0xf]
      %v304 = vld [vmem:[%s250 + $0x18] sm:$0xf]
      %v305 = vld [vmem:[%s250 + $0x1c] sm:$0xf]
      %v306 = vld [vmem:[%s250 + $0x20] sm:$0xf]
      %v307 = vld [vmem:[%s250 + $0x24] sm:$0xf]
      %v308 = vld [vmem:[%s250 + $0x28] sm:$0xf]
      %v309 = vld [vmem:[%s250 + $0x2c] sm:$0xf]
      %v310 = vld [vmem:[%s250 + $0x30] sm:$0xf]
      %v311 = vld [vmem:[%s250 + $0x34] sm:$0xf]
      %v312 = vld [vmem:[%s250 + $0x38] sm:$0xf]
      %v313 = vld [vmem:[%s250 + $0x3c] sm:$0xf]
      %v346 = vunpack.c.l.b16 %v266
      %v347 = vunpack.c.l.b16 %v267
      %v348 = vunpack.c.l.b16 %v268
      %v349 = vunpack.c.l.b16 %v269
      %v350 = vunpack.c.l.b16 %v270
      %v351 = vunpack.c.l.b16 %v271
      %v352 = vunpack.c.l.b16 %v272
      %v353 = vunpack.c.l.b16 %v273
      %v354 = vunpack.c.l.b16 %v274
      %v355 = vunpack.c.l.b16 %v275
      %v356 = vunpack.c.l.b16 %v276
      %v357 = vunpack.c.l.b16 %v277
      %v358 = vunpack.c.l.b16 %v278
      %v359 = vunpack.c.l.b16 %v279
      %v360 = vunpack.c.l.b16 %v280
      %v361 = vunpack.c.l.b16 %v281
      %v362 = vunpack.c.l.b16 %v282
      %v363 = vunpack.c.l.b16 %v283
      %v364 = vunpack.c.l.b16 %v284
      %v365 = vunpack.c.l.b16 %v285
      %v366 = vunpack.c.l.b16 %v286
      %v367 = vunpack.c.l.b16 %v287
      %v368 = vunpack.c.l.b16 %v288
      %v369 = vunpack.c.l.b16 %v289
      %v370 = vunpack.c.l.b16 %v290
      %v371 = vunpack.c.l.b16 %v291
      %v372 = vunpack.c.l.b16 %v292
      %v373 = vunpack.c.l.b16 %v293
      %v374 = vunpack.c.l.b16 %v294
      %v375 = vunpack.c.l.b16 %v295
      %v376 = vunpack.c.l.b16 %v296
      %v377 = vunpack.c.l.b16 %v297
      %v378 = vpack.c.b16 %v347, %v346
      %v379 = vpack.c.b16 %v349, %v348
      %v380 = vpack.c.b16 %v351, %v350
      %v381 = vpack.c.b16 %v353, %v352
      %v382 = vpack.c.b16 %v355, %v354
      %v383 = vpack.c.b16 %v357, %v356
      %v384 = vpack.c.b16 %v359, %v358
      %v385 = vpack.c.b16 %v361, %v360
      %v386 = vpack.c.b16 %v363, %v362
      %v387 = vpack.c.b16 %v365, %v364
      %v388 = vpack.c.b16 %v367, %v366
      %v389 = vpack.c.b16 %v369, %v368
      %v390 = vpack.c.b16 %v371, %v370
      %v391 = vpack.c.b16 %v373, %v372
      %v392 = vpack.c.b16 %v375, %v374
      %v393 = vpack.c.b16 %v377, %v376
      %v426 = vunpack.c.l.b16 %v298
      %v427 = vunpack.c.l.b16 %v299
      %v428 = vunpack.c.l.b16 %v300
      %v429 = vunpack.c.l.b16 %v301
      %v430 = vunpack.c.l.b16 %v302
      %v431 = vunpack.c.l.b16 %v303
      %v432 = vunpack.c.l.b16 %v304
      %v433 = vunpack.c.l.b16 %v305
      %v434 = vunpack.c.l.b16 %v306
      %v435 = vunpack.c.l.b16 %v307
      %v436 = vunpack.c.l.b16 %v308
      %v437 = vunpack.c.l.b16 %v309
      %v438 = vunpack.c.l.b16 %v310
      %v439 = vunpack.c.l.b16 %v311
      %v440 = vunpack.c.l.b16 %v312
      %v441 = vunpack.c.l.b16 %v313
      %v442 = vpack.c.b16 %v427, %v426
      %v443 = vpack.c.b16 %v429, %v428
      %v444 = vpack.c.b16 %v431, %v430
      %v445 = vpack.c.b16 %v433, %v432
      %v446 = vpack.c.b16 %v435, %v434
      %v447 = vpack.c.b16 %v437, %v436
      %v448 = vpack.c.b16 %v439, %v438
      %v449 = vpack.c.b16 %v441, %v440
      %458 = vmatpush.bf16.msra.mxu0 %v449
      %459 = vmatpush.bf16.msra.mxu0 %v448
      %460 = vmatpush.bf16.msra.mxu0 %v447
      %461 = vmatpush.bf16.msra.mxu0 %v446
      %462 = vmatpush.bf16.msra.mxu0 %v445
      %463 = vmatpush.bf16.msra.mxu0 %v444
      %464 = vmatpush.bf16.msra.mxu0 %v443
      %465 = vmatpush.bf16.msra.mxu0 %v442
      %466 = vmatmul.bf16.gmra.mxu0 %v378
      %v467 = vpop.f32.mrf.mxu0
      %v468 = vadd.f32 0.0, %v467
      %v469 = vpop.f32.mrf.mxu0
      %v470 = vadd.f32 0.0, %v469
      %471 = vmatmul.bf16.gmra.mxu0 %v379
      %v472 = vpop.f32.mrf.mxu0
      %v473 = vadd.f32 0.0, %v472
      %v474 = vpop.f32.mrf.mxu0
      %v475 = vadd.f32 0.0, %v474
      %476 = vmatmul.bf16.gmra.mxu0 %v380
      %v477 = vpop.f32.mrf.mxu0
      %v478 = vadd.f32 0.0, %v477
      %v479 = vpop.f32.mrf.mxu0
      %v480 = vadd.f32 0.0, %v479
      %481 = vmatmul.bf16.gmra.mxu0 %v381
      %v482 = vpop.f32.mrf.mxu0
      %v483 = vadd.f32 0.0, %v482
      %v484 = vpop.f32.mrf.mxu0
      %v485 = vadd.f32 0.0, %v484
      %486 = vmatmul.bf16.gmra.mxu0 %v382
      %v487 = vpop.f32.mrf.mxu0
      %v488 = vadd.f32 0.0, %v487
      %v489 = vpop.f32.mrf.mxu0
      %v490 = vadd.f32 0.0, %v489
      %491 = vmatmul.bf16.gmra.mxu0 %v383
      %v492 = vpop.f32.mrf.mxu0
      %v493 = vadd.f32 0.0, %v492
      %v494 = vpop.f32.mrf.mxu0
      %v495 = vadd.f32 0.0, %v494
      %496 = vmatmul.bf16.gmra.mxu0 %v384
      %v497 = vpop.f32.mrf.mxu0
      %v498 = vadd.f32 0.0, %v497
      %v499 = vpop.f32.mrf.mxu0
      %v500 = vadd.f32 0.0, %v499
      %501 = vmatmul.bf16.gmra.mxu0 %v385
      %v502 = vpop.f32.mrf.mxu0
      %v503 = vadd.f32 0.0, %v502
      %v504 = vpop.f32.mrf.mxu0
      %v505 = vadd.f32 0.0, %v504
      %506 = vmatmul.bf16.gmra.mxu0 %v386
      %v507 = vpop.f32.mrf.mxu0
      %v508 = vadd.f32 0.0, %v507
      %v509 = vpop.f32.mrf.mxu0
      %v510 = vadd.f32 0.0, %v509
      %511 = vmatmul.bf16.gmra.mxu0 %v387
      %v512 = vpop.f32.mrf.mxu0
      %v513 = vadd.f32 0.0, %v512
      %v514 = vpop.f32.mrf.mxu0
      %v515 = vadd.f32 0.0, %v514
      %516 = vmatmul.bf16.gmra.mxu0 %v388
      %v517 = vpop.f32.mrf.mxu0
      %v518 = vadd.f32 0.0, %v517
      %v519 = vpop.f32.mrf.mxu0
      %v520 = vadd.f32 0.0, %v519
      %521 = vmatmul.bf16.gmra.mxu0 %v389
      %v522 = vpop.f32.mrf.mxu0
      %v523 = vadd.f32 0.0, %v522
      %v524 = vpop.f32.mrf.mxu0
      %v525 = vadd.f32 0.0, %v524
      %526 = vmatmul.bf16.gmra.mxu0 %v390
      %v527 = vpop.f32.mrf.mxu0
      %v528 = vadd.f32 0.0, %v527
      %v529 = vpop.f32.mrf.mxu0
      %v530 = vadd.f32 0.0, %v529
      %531 = vmatmul.bf16.gmra.mxu0 %v391
      %v532 = vpop.f32.mrf.mxu0
      %v533 = vadd.f32 0.0, %v532
      %v534 = vpop.f32.mrf.mxu0
      %v535 = vadd.f32 0.0, %v534
      %536 = vmatmul.bf16.gmra.mxu0 %v392
      %v537 = vpop.f32.mrf.mxu0
      %v538 = vadd.f32 0.0, %v537
      %v539 = vpop.f32.mrf.mxu0
      %v540 = vadd.f32 0.0, %v539
      %541 = vmatmul.bf16.gmra.mxu0 %v393
      %v542 = vpop.f32.mrf.mxu0
      %v543 = vadd.f32 0.0, %v542
      %v544 = vpop.f32.mrf.mxu0
      %v545 = vadd.f32 0.0, %v544
      %546 = vdwg.mxu0
      %vm547 = vcmask 130048
      %v548 = vsel %vm547, %v468, 0.0
      %v549 = vsel %vm547, %v470, 0.0
      %v550 = vadd.f32 %v548, %v549
      %v551 = vsel %vm547, %v473, 0.0
      %v552 = vadd.f32 %v550, %v551
      %v553 = vsel %vm547, %v475, 0.0
      %v554 = vadd.f32 %v552, %v553
      %v555 = vsel %vm547, %v478, 0.0
      %v556 = vadd.f32 %v554, %v555
      %v557 = vsel %vm547, %v480, 0.0
      %v558 = vadd.f32 %v556, %v557
      %v559 = vsel %vm547, %v483, 0.0
      %v560 = vadd.f32 %v558, %v559
      %v561 = vsel %vm547, %v485, 0.0
      %v562 = vadd.f32 %v560, %v561
      %v563 = vsel %vm547, %v488, 0.0
      %v564 = vadd.f32 %v562, %v563
      %v565 = vsel %vm547, %v490, 0.0
      %v566 = vadd.f32 %v564, %v565
      %v567 = vsel %vm547, %v493, 0.0
      %v568 = vadd.f32 %v566, %v567
      %v569 = vsel %vm547, %v495, 0.0
      %v570 = vadd.f32 %v568, %v569
      %v571 = vsel %vm547, %v498, 0.0
      %v572 = vadd.f32 %v570, %v571
      %v573 = vsel %vm547, %v500, 0.0
      %v574 = vadd.f32 %v572, %v573
      %v575 = vsel %vm547, %v503, 0.0
      %v576 = vadd.f32 %v574, %v575
      %v577 = vsel %vm547, %v505, 0.0
      %v578 = vadd.f32 %v576, %v577
      %v579 = vsel %vm547, %v508, 0.0
      %v580 = vadd.f32 %v578, %v579
      %v581 = vsel %vm547, %v510, 0.0
      %v582 = vadd.f32 %v580, %v581
      %v583 = vsel %vm547, %v513, 0.0
      %v584 = vadd.f32 %v582, %v583
      %v585 = vsel %vm547, %v515, 0.0
      %v586 = vadd.f32 %v584, %v585
      %v587 = vsel %vm547, %v518, 0.0
      %v588 = vadd.f32 %v586, %v587
      %v589 = vsel %vm547, %v520, 0.0
      %v590 = vadd.f32 %v588, %v589
      %v591 = vsel %vm547, %v523, 0.0
      %v592 = vadd.f32 %v590, %v591
      %v593 = vsel %vm547, %v525, 0.0
      %v594 = vadd.f32 %v592, %v593
      %v595 = vsel %vm547, %v528, 0.0
      %v596 = vadd.f32 %v594, %v595
      %v597 = vsel %vm547, %v530, 0.0
      %v598 = vadd.f32 %v596, %v597
      %v599 = vsel %vm547, %v533, 0.0
      %v600 = vadd.f32 %v598, %v599
      %v601 = vsel %vm547, %v535, 0.0
      %v602 = vadd.f32 %v600, %v601
      %v603 = vsel %vm547, %v538, 0.0
      %v604 = vadd.f32 %v602, %v603
      %v605 = vsel %vm547, %v540, 0.0
      %v606 = vadd.f32 %v604, %v605
      %v607 = vsel %vm547, %v543, 0.0
      %v608 = vadd.f32 %v606, %v607
      %v609 = vsel %vm547, %v545, 0.0
      %v610 = vadd.f32 %v608, %v609
      %v611 = vrot.slane %v610, 4
      %v612 = vadd.f32 %v610, %v611
      %v613 = vrot.slane %v612, 2
      %v614 = vadd.f32 %v612, %v613
      %v615 = vrot.slane %v614, 1
      %v616 = vadd.f32 %v614, %v615
      %v617 = vmul.f32 %v616, 0.00390625
      %v618 = vmul.f32 %v468, %v468
      %v619 = vmul.f32 %v470, %v470
      %v620 = vmul.f32 %v473, %v473
      %v621 = vmul.f32 %v475, %v475
      %v622 = vmul.f32 %v478, %v478
      %v623 = vmul.f32 %v480, %v480
      %v624 = vmul.f32 %v483, %v483
      %v625 = vmul.f32 %v485, %v485
      %v626 = vmul.f32 %v488, %v488
      %v627 = vmul.f32 %v490, %v490
      %v628 = vmul.f32 %v493, %v493
      %v629 = vmul.f32 %v495, %v495
      %v630 = vmul.f32 %v498, %v498
      %v631 = vmul.f32 %v500, %v500
      %v632 = vmul.f32 %v503, %v503
      %v633 = vmul.f32 %v505, %v505
      %v634 = vmul.f32 %v508, %v508
      %v635 = vmul.f32 %v510, %v510
      %v636 = vmul.f32 %v513, %v513
      %v637 = vmul.f32 %v515, %v515
      %v638 = vmul.f32 %v518, %v518
      %v639 = vmul.f32 %v520, %v520
      %v640 = vmul.f32 %v523, %v523
      %v641 = vmul.f32 %v525, %v525
      %v642 = vmul.f32 %v528, %v528
      %v643 = vmul.f32 %v530, %v530
      %v644 = vmul.f32 %v533, %v533
      %v645 = vmul.f32 %v535, %v535
      %v646 = vmul.f32 %v538, %v538
      %v647 = vmul.f32 %v540, %v540
      %v648 = vmul.f32 %v543, %v543
      %v649 = vmul.f32 %v545, %v545
      %v650 = vsel %vm547, %v618, 0.0
      %v651 = vsel %vm547, %v619, 0.0
      %v652 = vadd.f32 %v650, %v651
      %v653 = vsel %vm547, %v620, 0.0
      %v654 = vadd.f32 %v652, %v653
      %v655 = vsel %vm547, %v621, 0.0
      %v656 = vadd.f32 %v654, %v655
      %v657 = vsel %vm547, %v622, 0.0
      %v658 = vadd.f32 %v656, %v657
      %v659 = vsel %vm547, %v623, 0.0
      %v660 = vadd.f32 %v658, %v659
      %v661 = vsel %vm547, %v624, 0.0
      %v662 = vadd.f32 %v660, %v661
      %v663 = vsel %vm547, %v625, 0.0
      %v664 = vadd.f32 %v662, %v663
      %v665 = vsel %vm547, %v626, 0.0
      %v666 = vadd.f32 %v664, %v665
      %v667 = vsel %vm547, %v627, 0.0
      %v668 = vadd.f32 %v666, %v667
      %v669 = vsel %vm547, %v628, 0.0
      %v670 = vadd.f32 %v668, %v669
      %v671 = vsel %vm547, %v629, 0.0
      %v672 = vadd.f32 %v670, %v671
      %v673 = vsel %vm547, %v630, 0.0
      %v674 = vadd.f32 %v672, %v673
      %v675 = vsel %vm547, %v631, 0.0
      %v676 = vadd.f32 %v674, %v675
      %v677 = vsel %vm547, %v632, 0.0
      %v678 = vadd.f32 %v676, %v677
      %v679 = vsel %vm547, %v633, 0.0
      %v680 = vadd.f32 %v678, %v679
      %v681 = vsel %vm547, %v634, 0.0
      %v682 = vadd.f32 %v680, %v681
      %v683 = vsel %vm547, %v635, 0.0
      %v684 = vadd.f32 %v682, %v683
      %v685 = vsel %vm547, %v636, 0.0
      %v686 = vadd.f32 %v684, %v685
      %v687 = vsel %vm547, %v637, 0.0
      %v688 = vadd.f32 %v686, %v687
      %v689 = vsel %vm547, %v638, 0.0
      %v690 = vadd.f32 %v688, %v689
      %v691 = vsel %vm547, %v639, 0.0
      %v692 = vadd.f32 %v690, %v691
      %v693 = vsel %vm547, %v640, 0.0
      %v694 = vadd.f32 %v692, %v693
      %v695 = vsel %vm547, %v641, 0.0
      %v696 = vadd.f32 %v694, %v695
      %v697 = vsel %vm547, %v642, 0.0
      %v698 = vadd.f32 %v696, %v697
      %v699 = vsel %vm547, %v643, 0.0
      %v700 = vadd.f32 %v698, %v699
      %v701 = vsel %vm547, %v644, 0.0
      %v702 = vadd.f32 %v700, %v701
      %v703 = vsel %vm547, %v645, 0.0
      %v704 = vadd.f32 %v702, %v703
      %v705 = vsel %vm547, %v646, 0.0
      %v706 = vadd.f32 %v704, %v705
      %v707 = vsel %vm547, %v647, 0.0
      %v708 = vadd.f32 %v706, %v707
      %v709 = vsel %vm547, %v648, 0.0
      %v710 = vadd.f32 %v708, %v709
      %v711 = vsel %vm547, %v649, 0.0
      %v712 = vadd.f32 %v710, %v711
      %v713 = vrot.slane %v712, 4
      %v714 = vadd.f32 %v712, %v713
      %v715 = vrot.slane %v714, 2
      %v716 = vadd.f32 %v714, %v715
      %v717 = vrot.slane %v716, 1
      %v718 = vadd.f32 %v716, %v717
      %v719 = vmul.f32 %v718, 0.00390625
      %v720 = vmul.f32 %v617, %v617
      %v721 = vsub.f32 %v719, %v720
      %v722 = vmax.f32 %v721, 0.0
      %v723 = vld [vmem:[%s253] sm:$0x1]
      %v724 = vadd.f32 %v722, 1e-05
      %v725 = vrsqrt.pop %v724
      %v726 = vmul.f32 %v725, %v724
      %v727 = vmul.f32 %v726, %v725
      %v728 = vmul.f32 0.5, %v727
      %v729 = vsub.f32 1.5, %v728
      %v730 = vmul.f32 %v725, %v729
      %vm731 = vweird.f32 %v724
      %vm732 = vweird.f32 %v725
      %vm733 = vmor %vm731, %vm732
      %v734 = vsel %vm733, %v725, %v730
      %v735 = vmul.f32 %v723, %v734
      %v736 = vld [vmem:[%s256] sm:$0x1]
      %v737 = vmul.f32 %v617, %v735
      %v738 = vsub.f32 %v736, %v737
      %v740 = vperm.slane %v735, 0
      %v742 = vmul.f32 %v468, %v740
      %v743 = vmul.f32 %v470, %v740
      %v744 = vmul.f32 %v473, %v740
      %v745 = vmul.f32 %v475, %v740
      %v746 = vmul.f32 %v478, %v740
      %v747 = vmul.f32 %v480, %v740
      %v748 = vmul.f32 %v483, %v740
      %v749 = vmul.f32 %v485, %v740
      %v750 = vmul.f32 %v488, %v740
      %v751 = vmul.f32 %v490, %v740
      %v752 = vmul.f32 %v493, %v740
      %v753 = vmul.f32 %v495, %v740
      %v754 = vmul.f32 %v498, %v740
      %v755 = vmul.f32 %v500, %v740
      %v756 = vmul.f32 %v503, %v740
      %v757 = vmul.f32 %v505, %v740
      %v758 = vmul.f32 %v508, %v740
      %v759 = vmul.f32 %v510, %v740
      %v760 = vmul.f32 %v513, %v740
      %v761 = vmul.f32 %v515, %v740
      %v762 = vmul.f32 %v518, %v740
      %v763 = vmul.f32 %v520, %v740
      %v764 = vmul.f32 %v523, %v740
      %v765 = vmul.f32 %v525, %v740
      %v766 = vmul.f32 %v528, %v740
      %v767 = vmul.f32 %v530, %v740
      %v768 = vmul.f32 %v533, %v740
      %v769 = vmul.f32 %v535, %v740
      %v770 = vmul.f32 %v538, %v740
      %v771 = vmul.f32 %v540, %v740
      %v772 = vmul.f32 %v543, %v740
      %v773 = vmul.f32 %v545, %v740
      %v775 = vperm.slane %v738, 0
      %v777 = vadd.f32 %v742, %v775
      %v778 = vadd.f32 %v743, %v775
      %v779 = vadd.f32 %v744, %v775
      %v780 = vadd.f32 %v745, %v775
      %v781 = vadd.f32 %v746, %v775
      %v782 = vadd.f32 %v747, %v775
      %v783 = vadd.f32 %v748, %v775
      %v784 = vadd.f32 %v749, %v775
      %v785 = vadd.f32 %v750, %v775
      %v786 = vadd.f32 %v751, %v775
      %v787 = vadd.f32 %v752, %v775
      %v788 = vadd.f32 %v753, %v775
      %v789 = vadd.f32 %v754, %v775
      %v790 = vadd.f32 %v755, %v775
      %v791 = vadd.f32 %v756, %v775
      %v792 = vadd.f32 %v757, %v775
      %v793 = vadd.f32 %v758, %v775
      %v794 = vadd.f32 %v759, %v775
      %v795 = vadd.f32 %v760, %v775
      %v796 = vadd.f32 %v761, %v775
      %v797 = vadd.f32 %v762, %v775
      %v798 = vadd.f32 %v763, %v775
      %v799 = vadd.f32 %v764, %v775
      %v800 = vadd.f32 %v765, %v775
      %v801 = vadd.f32 %v766, %v775
      %v802 = vadd.f32 %v767, %v775
      %v803 = vadd.f32 %v768, %v775
      %v804 = vadd.f32 %v769, %v775
      %v805 = vadd.f32 %v770, %v775
      %v806 = vadd.f32 %v771, %v775
      %v807 = vadd.f32 %v772, %v775
      %v808 = vadd.f32 %v773, %v775
      %v809 = vmul.f32 %v777, 0.2
      %v810 = vmul.f32 %v778, 0.2
      %v811 = vmul.f32 %v779, 0.2
      %v812 = vmul.f32 %v780, 0.2
      %v813 = vmul.f32 %v781, 0.2
      %v814 = vmul.f32 %v782, 0.2
      %v815 = vmul.f32 %v783, 0.2
      %v816 = vmul.f32 %v784, 0.2
      %v817 = vmul.f32 %v785, 0.2
      %v818 = vmul.f32 %v786, 0.2
      %v819 = vmul.f32 %v787, 0.2
      %v820 = vmul.f32 %v788, 0.2
      %v821 = vmul.f32 %v789, 0.2
      %v822 = vmul.f32 %v790, 0.2
      %v823 = vmul.f32 %v791, 0.2
      %v824 = vmul.f32 %v792, 0.2
      %v825 = vmul.f32 %v793, 0.2
      %v826 = vmul.f32 %v794, 0.2
      %v827 = vmul.f32 %v795, 0.2
      %v828 = vmul.f32 %v796, 0.2
      %v829 = vmul.f32 %v797, 0.2
      %v830 = vmul.f32 %v798, 0.2
      %v831 = vmul.f32 %v799, 0.2
      %v832 = vmul.f32 %v800, 0.2
      %v833 = vmul.f32 %v801, 0.2
      %v834 = vmul.f32 %v802, 0.2
      %v835 = vmul.f32 %v803, 0.2
      %v836 = vmul.f32 %v804, 0.2
      %v837 = vmul.f32 %v805, 0.2
      %v838 = vmul.f32 %v806, 0.2
      %v839 = vmul.f32 %v807, 0.2
      %v840 = vmul.f32 %v808, 0.2
      %v841 = vmax.f32 %v777, %v809
      %v842 = vmax.f32 %v778, %v810
      %v843 = vmax.f32 %v779, %v811
      %v844 = vmax.f32 %v780, %v812
      %v845 = vmax.f32 %v781, %v813
      %v846 = vmax.f32 %v782, %v814
      %v847 = vmax.f32 %v783, %v815
      %v848 = vmax.f32 %v784, %v816
      %v849 = vmax.f32 %v785, %v817
      %v850 = vmax.f32 %v786, %v818
      %v851 = vmax.f32 %v787, %v819
      %v852 = vmax.f32 %v788, %v820
      %v853 = vmax.f32 %v789, %v821
      %v854 = vmax.f32 %v790, %v822
      %v855 = vmax.f32 %v791, %v823
      %v856 = vmax.f32 %v792, %v824
      %v857 = vmax.f32 %v793, %v825
      %v858 = vmax.f32 %v794, %v826
      %v859 = vmax.f32 %v795, %v827
      %v860 = vmax.f32 %v796, %v828
      %v861 = vmax.f32 %v797, %v829
      %v862 = vmax.f32 %v798, %v830
      %v863 = vmax.f32 %v799, %v831
      %v864 = vmax.f32 %v800, %v832
      %v865 = vmax.f32 %v801, %v833
      %v866 = vmax.f32 %v802, %v834
      %v867 = vmax.f32 %v803, %v835
      %v868 = vmax.f32 %v804, %v836
      %v869 = vmax.f32 %v805, %v837
      %v870 = vmax.f32 %v806, %v838
      %v871 = vmax.f32 %v807, %v839
      %v872 = vmax.f32 %v808, %v840
      %v873 = vpack.c.bf16 %v841, %v841
      %v874 = vpack.c.bf16 %v842, %v842
      %v875 = vpack.c.bf16 %v843, %v843
      %v876 = vpack.c.bf16 %v844, %v844
      %v877 = vpack.c.bf16 %v845, %v845
      %v878 = vpack.c.bf16 %v846, %v846
      %v879 = vpack.c.bf16 %v847, %v847
      %v880 = vpack.c.bf16 %v848, %v848
      %v881 = vpack.c.bf16 %v849, %v849
      %v882 = vpack.c.bf16 %v850, %v850
      %v883 = vpack.c.bf16 %v851, %v851
      %v884 = vpack.c.bf16 %v852, %v852
      %v885 = vpack.c.bf16 %v853, %v853
      %v886 = vpack.c.bf16 %v854, %v854
      %v887 = vpack.c.bf16 %v855, %v855
      %v888 = vpack.c.bf16 %v856, %v856
      %v889 = vpack.c.bf16 %v857, %v857
      %v890 = vpack.c.bf16 %v858, %v858
      %v891 = vpack.c.bf16 %v859, %v859
      %v892 = vpack.c.bf16 %v860, %v860
      %v893 = vpack.c.bf16 %v861, %v861
      %v894 = vpack.c.bf16 %v862, %v862
      %v895 = vpack.c.bf16 %v863, %v863
      %v896 = vpack.c.bf16 %v864, %v864
      %v897 = vpack.c.bf16 %v865, %v865
      %v898 = vpack.c.bf16 %v866, %v866
      %v899 = vpack.c.bf16 %v867, %v867
      %v900 = vpack.c.bf16 %v868, %v868
      %v901 = vpack.c.bf16 %v869, %v869
      %v902 = vpack.c.bf16 %v870, %v870
      %v903 = vpack.c.bf16 %v871, %v871
      %v904 = vpack.c.bf16 %v872, %v872
      %vm905 = vcmask 125952
      %906 = vst.msk [vmem:[%s264] sm:$0xf] %vm905, %v873
      %907 = vst.msk [vmem:[%s264 + $0x4] sm:$0xf] %vm905, %v874
      %908 = vst.msk [vmem:[%s264 + $0x8] sm:$0xf] %vm905, %v875
      %909 = vst.msk [vmem:[%s264 + $0xc] sm:$0xf] %vm905, %v876
      %910 = vst.msk [vmem:[%s264 + $0x10] sm:$0xf] %vm905, %v877
      %911 = vst.msk [vmem:[%s264 + $0x14] sm:$0xf] %vm905, %v878
      %912 = vst.msk [vmem:[%s264 + $0x18] sm:$0xf] %vm905, %v879
      %913 = vst.msk [vmem:[%s264 + $0x1c] sm:$0xf] %vm905, %v880
      %914 = vst.msk [vmem:[%s264 + $0x20] sm:$0xf] %vm905, %v881
      %915 = vst.msk [vmem:[%s264 + $0x24] sm:$0xf] %vm905, %v882
      %916 = vst.msk [vmem:[%s264 + $0x28] sm:$0xf] %vm905, %v883
      %917 = vst.msk [vmem:[%s264 + $0x2c] sm:$0xf] %vm905, %v884
      %918 = vst.msk [vmem:[%s264 + $0x30] sm:$0xf] %vm905, %v885
      %919 = vst.msk [vmem:[%s264 + $0x34] sm:$0xf] %vm905, %v886
      %920 = vst.msk [vmem:[%s264 + $0x38] sm:$0xf] %vm905, %v887
      %921 = vst.msk [vmem:[%s264 + $0x3c] sm:$0xf] %vm905, %v888
      %922 = vst.msk [vmem:[%s264 + $0x40] sm:$0xf] %vm905, %v889
      %923 = vst.msk [vmem:[%s264 + $0x44] sm:$0xf] %vm905, %v890
      %924 = vst.msk [vmem:[%s264 + $0x48] sm:$0xf] %vm905, %v891
      %925 = vst.msk [vmem:[%s264 + $0x4c] sm:$0xf] %vm905, %v892
      %926 = vst.msk [vmem:[%s264 + $0x50] sm:$0xf] %vm905, %v893
      %927 = vst.msk [vmem:[%s264 + $0x54] sm:$0xf] %vm905, %v894
      %928 = vst.msk [vmem:[%s264 + $0x58] sm:$0xf] %vm905, %v895
      %929 = vst.msk [vmem:[%s264 + $0x5c] sm:$0xf] %vm905, %v896
      %930 = vst.msk [vmem:[%s264 + $0x60] sm:$0xf] %vm905, %v897
      %931 = vst.msk [vmem:[%s264 + $0x64] sm:$0xf] %vm905, %v898
      %932 = vst.msk [vmem:[%s264 + $0x68] sm:$0xf] %vm905, %v899
      %933 = vst.msk [vmem:[%s264 + $0x6c] sm:$0xf] %vm905, %v900
      %934 = vst.msk [vmem:[%s264 + $0x70] sm:$0xf] %vm905, %v901
      %935 = vst.msk [vmem:[%s264 + $0x74] sm:$0xf] %vm905, %v902
      %936 = vst.msk [vmem:[%s264 + $0x78] sm:$0xf] %vm905, %v903
      %937 = vst.msk [vmem:[%s264 + $0x7c] sm:$0xf] %vm905, %v904
      %s938 = smul.u32 32, %s19
      %p939 = scmp.lt.s32.totalorder %s938, 127
      %s940 = scalar_select %p939, %s938, 127
      %p941 = scmp.lt.s32.totalorder %s20, 0
      %s942 = scalar_select %p941, %s20, 0
      %s943 = sadd.s32 %s942, %s940
      %s944 = smul.addr %s943, 4
      %s945 = scalar_lea.vmem %s4, %s944
      // Predicated region
      $region37: #{critic_forward.5} parent=35 // pred_check
        %p946 = pneg %p151
      $region38: #{critic_forward.5} parent=35 // pred_check_branch
        %948 = sbr.rel (%p946) target = $region40
      $region39: #{critic_forward.5} parent=35 // pred_region
        %s949 = smul.u32 32, %s19
      $region40: #{critic_forward.5} parent=35 // pred_fallthru
        _
    $region36: #{critic_forward.5} parent=5 // pred_fallthru
      _
    %p950 = scmp.le.s32.totalorder 2, %s10
    // Predicated region
    $region41: #{critic_forward.5} parent=5 // pred_check
      %p951 = pneg %p950
    $region42: #{critic_forward.5} parent=5 // pred_check_branch
      %953 = sbr.rel (%p951) target = $region44
    $region43: #{critic_forward.5} parent=5 // pred_region
      %s954 = ssub.s32 %s10, 2
      // Predicated region
      $region45: #{critic_forward.5} parent=43 // pred_check
        %p955 = pneg %p157
      $region46: #{critic_forward.5} parent=43 // pred_check_branch
        %957 = sbr.rel (%p955) target = $region48
      $region47: #{critic_forward.5} parent=43 // pred_region
        %s958 = smul.u32 32, %s21
        %p959 = scmp.lt.s32.totalorder %s958, 127
        %s960 = scalar_select %p959, %s958, 127
        %p961 = scmp.lt.s32.totalorder %s22, 0
        %s962 = scalar_select %p961, %s22, 0
        %s963 = sadd.s32 %s962, %s960
        %s964 = smul.addr %s963, 4
        %s965 = scalar_lea.vmem %s4, %s964
      $region48: #{critic_forward.5} parent=43 // pred_fallthru
        _
    $region44: #{critic_forward.5} parent=5 // pred_fallthru
      _
  $region6: #{critic_forward.5} parent=0 // loop_footer
    %s14 = sadd.s32 1, %s10
  $region7: #{critic_forward.5} parent=0 // loop_footer_branch
    %9 = sbr.rel target = $region3
  $region8: #{critic_forward.5} parent=0 // loop_exit
    _

// kernel: critic_forward.6
$region0: #{critic_forward.6}
  #allocation0 [shape = 'u32[]', space=smem, size = 0x4, offset = 0x4, fixed_abs, tag = 'smem constant byte address 0x4 - core index']
  #allocation1 [shape = 'u32[72,128]{1,0:T(1,128)}', space=vmem, size = 0x9000, scoped, tag = 'internal scratch']
  %s0 = inlined_call_operand.vmem [shape: bf16[256,256], index: 0, kind: input, shape index: {}]
  %s1 = inlined_call_operand.vmem [shape: bf16[256,32], index: 1, kind: input, shape index: {}]
  %s2 = inlined_call_operand.vmem [shape: f32[1,32], index: 2, kind: input, shape index: {}]
  %s3 = inlined_call_operand.vmem [shape: f32[1,32], index: 3, kind: input, shape index: {}]
  %s4 = inlined_call_operand.vmem [shape: bf16[256,32], index: 4, kind: output, shape index: {}]
  %s5 = sld [smem:[#allocation0]]
  $region49: #{critic_forward.6} parent=0
    _
  %s7 = ssub.s32 1, %s5
  %s8 = scalar_select 0, %s7, %s5
  loop: start=0, step=1, limit=4
  $region2: #{critic_forward.6} parent=0 // loop_pre_header
    _
  $region3: #{critic_forward.6} parent=0 // loop_header
    %s10 = sphi 0, %s14
    %p11 = scmp.ge.s32.totalorder %s10, 4
    %s17 = sphi 0, %s29
    %s18 = sphi 0, %s25
    %s19 = sphi 0, %s17
    %s20 = sphi 0, %s18
    %s21 = sphi 0, %s19
    %s22 = sphi 0, %s20
    %s32 = sphi 0, %s34
    %s35 = sphi 0, %s32
    %s36 = sphi 0, %s35
    %s52 = sphi 0, %s36
    %s58 = sphi 0, %s60
    %s61 = sphi 0, %s58
    %s62 = sphi 0, %s61
    %s78 = sphi 0, %s62
    %s84 = sphi 0, %s86
    %s87 = sphi 0, %s84
    %s88 = sphi 0, %s87
    %s104 = sphi 0, %s88
    %s110 = sphi 0, %s112
    %s113 = sphi 0, %s110
    %s114 = sphi 0, %s113
    %s130 = sphi 0, %s114
    %s138 = sphi 0, %s140
    %s141 = sphi 0, %s138
    %s142 = sphi 0, %s141
    %s158 = sphi 0, %s142
  $region4: #{critic_forward.6} parent=0 // loop_header_branch
    %13 = sbr.rel (%p11) target = $region8
  $region5: #{critic_forward.6} parent=0 // loop_body
    %s15 = ssub.s32 %s10, 1
    %s16 = ssub.s32 %s10, 2
    %s23 = sadd.s32 1, %s18
    %p24 = scmp.ge.s32.totalorder %s23, 1
    %s25 = scalar_select %p24, 0, %s23
    %s26 = sadd.s32 1, %s17
    %s27 = scalar_select %p24, %s26, %s17
    %p28 = scmp.ge.s32.totalorder %s27, 2
    %s29 = scalar_select %p28, 0, %s27
    %s30 = ssub.s32 %s17, %s29
    %p31 = scmp.eq.s32.totalorder %s30, 0
    %s33 = sadd.s32 %s32, 1
    %s34 = scalar_select %p31, %s32, %s33
    %p37 = pneg %p31
    %p38 = scmp.eq.s32.totalorder %s10, 1
    %p39 = por %p37, %p38
    %p40 = scmp.ne.s32.totalorder %s32, %s35
    %p41 = scmp.eq.s32.totalorder %s10, 0
    %p42 = por %p40, %p41
    %p43 = scmp.ne.s32.totalorder %s32, %s35
    %p44 = scmp.eq.s32.totalorder %s15, 1
    %p45 = por %p43, %p44
    %p46 = scmp.ne.s32.totalorder %s35, %s36
    %p47 = scmp.eq.s32.totalorder %s15, 0
    %p48 = por %p46, %p47
    %p49 = scmp.ne.s32.totalorder %s35, %s36
    %p50 = scmp.eq.s32.totalorder %s16, 1
    %p51 = por %p49, %p50
    %p53 = scmp.ne.s32.totalorder %s36, %s52
    %p54 = scmp.eq.s32.totalorder %s16, 0
    %p55 = por %p53, %p54
    %s56 = ssub.s32 %s18, %s25
    %p57 = scmp.eq.s32.totalorder %s56, 0
    %s59 = sadd.s32 %s58, 1
    %s60 = scalar_select %p57, %s58, %s59
    %p63 = pneg %p57
    %p64 = scmp.eq.s32.totalorder %s10, 1
    %p65 = por %p63, %p64
    %p66 = scmp.ne.s32.totalorder %s58, %s61
    %p67 = scmp.eq.s32.totalorder %s10, 0
    %p68 = por %p66, %p67
    %p69 = scmp.ne.s32.totalorder %s58, %s61
    %p70 = scmp.eq.s32.totalorder %s15, 1
    %p71 = por %p69, %p70
    %p72 = scmp.ne.s32.totalorder %s61, %s62
    %p73 = scmp.eq.s32.totalorder %s15, 0
    %p74 = por %p72, %p73
    %p75 = scmp.ne.s32.totalorder %s61, %s62
    %p76 = scmp.eq.s32.totalorder %s16, 1
    %p77 = por %p75, %p76
    %p79 = scmp.ne.s32.totalorder %s62, %s78
    %p80 = scmp.eq.s32.totalorder %s16, 0
    %p81 = por %p79, %p80
    %s82 = ssub.s32 %s18, %s25
    %p83 = scmp.eq.s32.totalorder %s82, 0
    %s85 = sadd.s32 %s84, 1
    %s86 = scalar_select %p83, %s84, %s85
    %p89 = pneg %p83
    %p90 = scmp.eq.s32.totalorder %s10, 1
    %p91 = por %p89, %p90
    %p92 = scmp.ne.s32.totalorder %s84, %s87
    %p93 = scmp.eq.s32.totalorder %s10, 0
    %p94 = por %p92, %p93
    %p95 = scmp.ne.s32.totalorder %s84, %s87
    %p96 = scmp.eq.s32.totalorder %s15, 1
    %p97 = por %p95, %p96
    %p98 = scmp.ne.s32.totalorder %s87, %s88
    %p99 = scmp.eq.s32.totalorder %s15, 0
    %p100 = por %p98, %p99
    %p101 = scmp.ne.s32.totalorder %s87, %s88
    %p102 = scmp.eq.s32.totalorder %s16, 1
    %p103 = por %p101, %p102
    %p105 = scmp.ne.s32.totalorder %s88, %s104
    %p106 = scmp.eq.s32.totalorder %s16, 0
    %p107 = por %p105, %p106
    %s108 = ssub.s32 %s18, %s25
    %p109 = scmp.eq.s32.totalorder %s108, 0
    %s111 = sadd.s32 %s110, 1
    %s112 = scalar_select %p109, %s110, %s111
    %p115 = pneg %p109
    %p116 = scmp.eq.s32.totalorder %s10, 1
    %p117 = por %p115, %p116
    %p118 = scmp.ne.s32.totalorder %s110, %s113
    %p119 = scmp.eq.s32.totalorder %s10, 0
    %p120 = por %p118, %p119
    %p121 = scmp.ne.s32.totalorder %s110, %s113
    %p122 = scmp.eq.s32.totalorder %s15, 1
    %p123 = por %p121, %p122
    %p124 = scmp.ne.s32.totalorder %s113, %s114
    %p125 = scmp.eq.s32.totalorder %s15, 0
    %p126 = por %p124, %p125
    %p127 = scmp.ne.s32.totalorder %s113, %s114
    %p128 = scmp.eq.s32.totalorder %s16, 1
    %p129 = por %p127, %p128
    %p131 = scmp.ne.s32.totalorder %s114, %s130
    %p132 = scmp.eq.s32.totalorder %s16, 0
    %p133 = por %p131, %p132
    %s134 = ssub.s32 %s17, %s29
    %s135 = ssub.s32 %s18, %s25
    %s136 = sor.u32 %s134, %s135
    %p137 = scmp.eq.s32.totalorder %s136, 0
    %s139 = sadd.s32 %s138, 1
    %s140 = scalar_select %p137, %s138, %s139
    %p143 = pneg %p137
    %p144 = scmp.eq.s32.totalorder %s10, 1
    %p145 = por %p143, %p144
    %p146 = scmp.ne.s32.totalorder %s138, %s141
    %p147 = scmp.eq.s32.totalorder %s10, 0
    %p148 = por %p146, %p147
    %p149 = scmp.ne.s32.totalorder %s138, %s141
    %p150 = scmp.eq.s32.totalorder %s15, 1
    %p151 = por %p149, %p150
    %p152 = scmp.ne.s32.totalorder %s141, %s142
    %p153 = scmp.eq.s32.totalorder %s15, 0
    %p154 = por %p152, %p153
    %p155 = scmp.ne.s32.totalorder %s141, %s142
    %p156 = scmp.eq.s32.totalorder %s16, 1
    %p157 = por %p155, %p156
    %p159 = scmp.ne.s32.totalorder %s142, %s158
    %p160 = scmp.eq.s32.totalorder %s16, 0
    %p161 = por %p159, %p160
    %p162 = scmp.le.s32.totalorder 1, %s10
    %p163 = scmp.lt.s32.totalorder %s10, 3
    %p164 = pnand %p162, %p163
    %p165 = pneg %p164
    // Predicated region
    $region9: #{critic_forward.6} parent=5 // pred_check
      _
    $region10: #{critic_forward.6} parent=5 // pred_check_branch
      %167 = sbr.rel (%p164) target = $region12
    $region11: #{critic_forward.6} parent=5 // pred_region
      %s168 = ssub.s32 %s10, 1
      // Predicated region
      $region13: #{critic_forward.6} parent=11 // pred_check
        %p169 = pneg %p74
      $region14: #{critic_forward.6} parent=11 // pred_check_branch
        %171 = sbr.rel (%p169) target = $region16
      $region15: #{critic_forward.6} parent=11 // pred_region
        %p172 = scmp.lt.s32.totalorder %s20, 0
        %s173 = scalar_select %p172, %s20, 0
        %s174 = smul.addr %s173, 4
        %s175 = scalar_lea.vmem %s1, %s174
      $region16: #{critic_forward.6} parent=11 // pred_fallthru
        _
      // Predicated region
      $region17: #{critic_forward.6} parent=11 // pred_check
        %p176 = pneg %p100
      $region18: #{critic_forward.6} parent=11 // pred_check_branch
        %178 = sbr.rel (%p176) target = $region20
      $region19: #{critic_forward.6} parent=11 // pred_region
        %p179 = scmp.lt.s32.totalorder %s20, 0
        %s180 = scalar_select %p179, %s20, 0
        %s181 = scalar_lea.vmem %s2, %s180
      $region20: #{critic_forward.6} parent=11 // pred_fallthru
        _
      // Predicated region
      $region21: #{critic_forward.6} parent=11 // pred_check
        %p182 = pneg %p126
      $region22: #{critic_forward.6} parent=11 // pred_check_branch
        %184 = sbr.rel (%p182) target = $region24
      $region23: #{critic_forward.6} parent=11 // pred_region
        %p185 = scmp.lt.s32.totalorder %s20, 0
        %s186 = scalar_select %p185, %s20, 0
        %s187 = scalar_lea.vmem %s3, %s186
      $region24: #{critic_forward.6} parent=11 // pred_fallthru
        _
    $region12: #{critic_forward.6} parent=5 // pred_fallthru
      _
    %p188 = scmp.lt.s32.totalorder %s10, 2
    // Predicated region
    $region25: #{critic_forward.6} parent=5 // pred_check
      %p189 = pneg %p188
    $region26: #{critic_forward.6} parent=5 // pred_check_branch
      %191 = sbr.rel (%p189) target = $region28
    $region27: #{critic_forward.6} parent=5 // pred_region
      // Predicated region
      $region29: #{critic_forward.6} parent=27 // pred_check
        %p192 = pneg %p42
      $region30: #{critic_forward.6} parent=27 // pred_check_branch
        %194 = sbr.rel (%p192) target = $region32
      $region31: #{critic_forward.6} parent=27 // pred_region
        %s195 = smul.u32 16, %s17
        %p196 = scmp.lt.s32.totalorder %s195, 31
        %s197 = scalar_select %p196, %s195, 31
        %s198 = smul.addr %s197, 2
        %s199 = smul.addr %s198, 4
        %s200 = scalar_lea.vmem %s0, %s199
        %s201 = smul.u32 16, %s17
      $region32: #{critic_forward.6} parent=27 // pred_fallthru
        _
    $region28: #{critic_forward.6} parent=5 // pred_fallthru
      _
    %p202 = scmp.le.s32.totalorder 1, %s10
    %p203 = scmp.lt.s32.totalorder %s10, 3
    %p204 = pnand %p202, %p203
    %p205 = pneg %p204
    // Predicated region
    $region33: #{critic_forward.6} parent=5 // pred_check
      _
    $region34: #{critic_forward.6} parent=5 // pred_check_branch
      %207 = sbr.rel (%p204) target = $region36
    $region35: #{critic_forward.6} parent=5 // pred_region
      %s208 = ssub.s32 %s10, 1
      %s209 = smul.u32 16, %s19
      %p210 = scmp.lt.s32.totalorder %s209, 31
      %s211 = scalar_select %p210, %s209, 31
      %s212 = smul.addr %s211, 2
      %s213 = smul.addr %s212, 4
      %s214 = scalar_lea.vmem %s0, %s213
      %p215 = pneg %p48
      %p216 = pneg %p45
      %p217 = scmp.lt.s32.totalorder %s20, 0
      %s218 = scalar_select %p217, %s20, 0
      %s219 = smul.addr %s218, 4
      %s220 = scalar_lea.vmem %s1, %s219
      %p221 = pneg %p74
      %p222 = pneg %p71
      %p223 = scmp.lt.s32.totalorder %s20, 0
      %s224 = scalar_select %p223, %s20, 0
      %s225 = scalar_lea.vmem %s2, %s224
      %p226 = pneg %p100
      %p227 = pneg %p97
      %p228 = scmp.lt.s32.totalorder %s20, 0
      %s229 = scalar_select %p228, %s20, 0
      %s230 = scalar_lea.vmem %s3, %s229
      %p231 = pneg %p126
      %p232 = pneg %p123
      %p233 = pneg %p154
      %p234 = pneg %p151
      %s235 = smul.u32 16, %s19
      %p236 = scmp.lt.s32.totalorder %s235, 31
      %s237 = scalar_select %p236, %s235, 31
      %p238 = scmp.lt.s32.totalorder %s20, 0
      %s239 = scalar_select %p238, %s20, 0
      %s240 = sadd.s32 %s239, %s237
      %s241 = smul.addr %s240, 4
      %s242 = scalar_lea.vmem %s4, %s241
      %s243 = smul.u32 16, %s19
      %p244 = scmp.lt.s32.totalorder %s243, 31
      %s245 = scalar_select %p244, %s243, 31
      %s246 = smul.addr %s245, 2
      %s247 = smul.addr %s246, 4
      %s248 = scalar_lea.vmem %s0, %s247
      %s249 = smul.u32 16, %s19
      %p250 = scmp.lt.s32.totalorder %s20, 0
      %s251 = scalar_select %p250, %s20, 0
      %s252 = smul.addr %s251, 4
      %s253 = scalar_lea.vmem %s1, %s252
      %p254 = scmp.lt.s32.totalorder %s20, 0
      %s255 = scalar_select %p254, %s20, 0
      %s256 = scalar_lea.vmem %s2, %s255
      %p257 = scmp.lt.s32.totalorder %s20, 0
      %s258 = scalar_select %p257, %s20, 0
      %s259 = scalar_lea.vmem %s3, %s258
      %s260 = smul.u32 16, %s19
      %p261 = scmp.lt.s32.totalorder %s260, 31
      %s262 = scalar_select %p261, %s260, 31
      %p263 = scmp.lt.s32.totalorder %s20, 0
      %s264 = scalar_select %p263, %s20, 0
      %s265 = sadd.s32 %s264, %s262
      %s266 = smul.addr %s265, 4
      %s267 = scalar_lea.vmem %s4, %s266
      %s268 = smul.u32 16, %s19
      %v269 = vld [vmem:[%s248] sm:$0xff]
      %v270 = vld [vmem:[%s248 + $0x8] sm:$0xff]
      %v271 = vld [vmem:[%s248 + $0x10] sm:$0xff]
      %v272 = vld [vmem:[%s248 + $0x18] sm:$0xff]
      %v273 = vld [vmem:[%s248 + $0x20] sm:$0xff]
      %v274 = vld [vmem:[%s248 + $0x28] sm:$0xff]
      %v275 = vld [vmem:[%s248 + $0x30] sm:$0xff]
      %v276 = vld [vmem:[%s248 + $0x38] sm:$0xff]
      %v277 = vld [vmem:[%s248 + $0x40] sm:$0xff]
      %v278 = vld [vmem:[%s248 + $0x48] sm:$0xff]
      %v279 = vld [vmem:[%s248 + $0x50] sm:$0xff]
      %v280 = vld [vmem:[%s248 + $0x58] sm:$0xff]
      %v281 = vld [vmem:[%s248 + $0x60] sm:$0xff]
      %v282 = vld [vmem:[%s248 + $0x68] sm:$0xff]
      %v283 = vld [vmem:[%s248 + $0x70] sm:$0xff]
      %v284 = vld [vmem:[%s248 + $0x78] sm:$0xff]
      %v285 = vld [vmem:[%s253] sm:$0xf]
      %v286 = vld [vmem:[%s253 + $0x4] sm:$0xf]
      %v287 = vld [vmem:[%s253 + $0x8] sm:$0xf]
      %v288 = vld [vmem:[%s253 + $0xc] sm:$0xf]
      %v289 = vld [vmem:[%s253 + $0x10] sm:$0xf]
      %v290 = vld [vmem:[%s253 + $0x14] sm:$0xf]
      %v291 = vld [vmem:[%s253 + $0x18] sm:$0xf]
      %v292 = vld [vmem:[%s253 + $0x1c] sm:$0xf]
      %v293 = vld [vmem:[%s253 + $0x20] sm:$0xf]
      %v294 = vld [vmem:[%s253 + $0x24] sm:$0xf]
      %v295 = vld [vmem:[%s253 + $0x28] sm:$0xf]
      %v296 = vld [vmem:[%s253 + $0x2c] sm:$0xf]
      %v297 = vld [vmem:[%s253 + $0x30] sm:$0xf]
      %v298 = vld [vmem:[%s253 + $0x34] sm:$0xf]
      %v299 = vld [vmem:[%s253 + $0x38] sm:$0xf]
      %v300 = vld [vmem:[%s253 + $0x3c] sm:$0xf]
      %v301 = vld [vmem:[%s253 + $0x40] sm:$0xf]
      %v302 = vld [vmem:[%s253 + $0x44] sm:$0xf]
      %v303 = vld [vmem:[%s253 + $0x48] sm:$0xf]
      %v304 = vld [vmem:[%s253 + $0x4c] sm:$0xf]
      %v305 = vld [vmem:[%s253 + $0x50] sm:$0xf]
      %v306 = vld [vmem:[%s253 + $0x54] sm:$0xf]
      %v307 = vld [vmem:[%s253 + $0x58] sm:$0xf]
      %v308 = vld [vmem:[%s253 + $0x5c] sm:$0xf]
      %v309 = vld [vmem:[%s253 + $0x60] sm:$0xf]
      %v310 = vld [vmem:[%s253 + $0x64] sm:$0xf]
      %v311 = vld [vmem:[%s253 + $0x68] sm:$0xf]
      %v312 = vld [vmem:[%s253 + $0x6c] sm:$0xf]
      %v313 = vld [vmem:[%s253 + $0x70] sm:$0xf]
      %v314 = vld [vmem:[%s253 + $0x74] sm:$0xf]
      %v315 = vld [vmem:[%s253 + $0x78] sm:$0xf]
      %v316 = vld [vmem:[%s253 + $0x7c] sm:$0xf]
      %v333 = vunpack.c.l.b16 %v269
      %v334 = vunpack.c.h.b16 %v269
      %v335 = vunpack.c.l.b16 %v270
      %v336 = vunpack.c.h.b16 %v270
      %v337 = vunpack.c.l.b16 %v271
      %v338 = vunpack.c.h.b16 %v271
      %v339 = vunpack.c.l.b16 %v272
      %v340 = vunpack.c.h.b16 %v272
      %v341 = vunpack.c.l.b16 %v273
      %v342 = vunpack.c.h.b16 %v273
      %v343 = vunpack.c.l.b16 %v274
      %v344 = vunpack.c.h.b16 %v274
      %v345 = vunpack.c.l.b16 %v275
      %v346 = vunpack.c.h.b16 %v275
      %v347 = vunpack.c.l.b16 %v276
      %v348 = vunpack.c.h.b16 %v276
      %v349 = vunpack.c.l.b16 %v277
      %v350 = vunpack.c.h.b16 %v277
      %v351 = vunpack.c.l.b16 %v278
      %v352 = vunpack.c.h.b16 %v278
      %v353 = vunpack.c.l.b16 %v279
      %v354 = vunpack.c.h.b16 %v279
      %v355 = vunpack.c.l.b16 %v280
      %v356 = vunpack.c.h.b16 %v280
      %v357 = vunpack.c.l.b16 %v281
      %v358 = vunpack.c.h.b16 %v281
      %v359 = vunpack.c.l.b16 %v282
      %v360 = vunpack.c.h.b16 %v282
      %v361 = vunpack.c.l.b16 %v283
      %v362 = vunpack.c.h.b16 %v283
      %v363 = vunpack.c.l.b16 %v284
      %v364 = vunpack.c.h.b16 %v284
      %v365 = vpack.c.b16 %v335, %v333
      %v366 = vpack.c.b16 %v336, %v334
      %v367 = vpack.c.b16 %v339, %v337
      %v368 = vpack.c.b16 %v340, %v338
      %v369 = vpack.c.b16 %v343, %v341
      %v370 = vpack.c.b16 %v344, %v342
      %v371 = vpack.c.b16 %v347, %v345
      %v372 = vpack.c.b16 %v348, %v346
      %v373 = vpack.c.b16 %v351, %v349
      %v374 = vpack.c.b16 %v352, %v350
      %v375 = vpack.c.b16 %v355, %v353
      %v376 = vpack.c.b16 %v356, %v354
      %v377 = vpack.c.b16 %v359, %v357
      %v378 = vpack.c.b16 %v360, %v358
      %v379 = vpack.c.b16 %v363, %v361
      %v380 = vpack.c.b16 %v364, %v362
      %v429 = vunpack.c.l.b16 %v285
      %v430 = vunpack.c.l.b16 %v286
      %v431 = vunpack.c.l.b16 %v287
      %v432 = vunpack.c.l.b16 %v288
      %v433 = vunpack.c.l.b16 %v289
      %v434 = vunpack.c.l.b16 %v290
      %v435 = vunpack.c.l.b16 %v291
      %v436 = vunpack.c.l.b16 %v292
      %v437 = vunpack.c.l.b16 %v293
      %v438 = vunpack.c.l.b16 %v294
      %v439 = vunpack.c.l.b16 %v295
      %v440 = vunpack.c.l.b16 %v296
      %v441 = vunpack.c.l.b16 %v297
      %v442 = vunpack.c.l.b16 %v298
      %v443 = vunpack.c.l.b16 %v299
      %v444 = vunpack.c.l.b16 %v300
      %v445 = vunpack.c.l.b16 %v301
      %v446 = vunpack.c.l.b16 %v302
      %v447 = vunpack.c.l.b16 %v303
      %v448 = vunpack.c.l.b16 %v304
      %v449 = vunpack.c.l.b16 %v305
      %v450 = vunpack.c.l.b16 %v306
      %v451 = vunpack.c.l.b16 %v307
      %v452 = vunpack.c.l.b16 %v308
      %v453 = vunpack.c.l.b16 %v309
      %v454 = vunpack.c.l.b16 %v310
      %v455 = vunpack.c.l.b16 %v311
      %v456 = vunpack.c.l.b16 %v312
      %v457 = vunpack.c.l.b16 %v313
      %v458 = vunpack.c.l.b16 %v314
      %v459 = vunpack.c.l.b16 %v315
      %v460 = vunpack.c.l.b16 %v316
      %v461 = vpack.c.b16 %v430, %v429
      %v462 = vpack.c.b16 %v432, %v431
      %v463 = vpack.c.b16 %v434, %v433
      %v464 = vpack.c.b16 %v436, %v435
      %v465 = vpack.c.b16 %v438, %v437
      %v466 = vpack.c.b16 %v440, %v439
      %v467 = vpack.c.b16 %v442, %v441
      %v468 = vpack.c.b16 %v444, %v443
      %v469 = vpack.c.b16 %v446, %v445
      %v470 = vpack.c.b16 %v448, %v447
      %v471 = vpack.c.b16 %v450, %v449
      %v472 = vpack.c.b16 %v452, %v451
      %v473 = vpack.c.b16 %v454, %v453
      %v474 = vpack.c.b16 %v456, %v455
      %v475 = vpack.c.b16 %v458, %v457
      %v476 = vpack.c.b16 %v460, %v459
      %493 = vmatpush.bf16.msra.mxu0 %v468
      %494 = vmatpush.bf16.msra.mxu0 %v467
      %495 = vmatpush.bf16.msra.mxu0 %v466
      %496 = vmatpush.bf16.msra.mxu0 %v465
      %497 = vmatpush.bf16.msra.mxu0 %v464
      %498 = vmatpush.bf16.msra.mxu0 %v463
      %499 = vmatpush.bf16.msra.mxu0 %v462
      %500 = vmatpush.bf16.msra.mxu0 %v461
      %501 = vmatmul.bf16.gmra.mxu0 %v365
      %v502 = vpop.f32.mrf.mxu0
      %v503 = vadd.f32 0.0, %v502
      %v504 = vpop.f32.mrf.mxu0
      %v505 = vadd.f32 0.0, %v504
      %506 = vmatmul.bf16.gmra.mxu0 %v367
      %v507 = vpop.f32.mrf.mxu0
      %v508 = vadd.f32 0.0, %v507
      %v509 = vpop.f32.mrf.mxu0
      %v510 = vadd.f32 0.0, %v509
      %511 = vmatmul.bf16.gmra.mxu0 %v369
      %v512 = vpop.f32.mrf.mxu0
      %v513 = vadd.f32 0.0, %v512
      %v514 = vpop.f32.mrf.mxu0
      %v515 = vadd.f32 0.0, %v514
      %516 = vmatmul.bf16.gmra.mxu0 %v371
      %v517 = vpop.f32.mrf.mxu0
      %v518 = vadd.f32 0.0, %v517
      %v519 = vpop.f32.mrf.mxu0
      %v520 = vadd.f32 0.0, %v519
      %521 = vmatmul.bf16.gmra.mxu0 %v373
      %v522 = vpop.f32.mrf.mxu0
      %v523 = vadd.f32 0.0, %v522
      %v524 = vpop.f32.mrf.mxu0
      %v525 = vadd.f32 0.0, %v524
      %526 = vmatmul.bf16.gmra.mxu0 %v375
      %v527 = vpop.f32.mrf.mxu0
      %v528 = vadd.f32 0.0, %v527
      %v529 = vpop.f32.mrf.mxu0
      %v530 = vadd.f32 0.0, %v529
      %531 = vmatmul.bf16.gmra.mxu0 %v377
      %v532 = vpop.f32.mrf.mxu0
      %v533 = vadd.f32 0.0, %v532
      %v534 = vpop.f32.mrf.mxu0
      %v535 = vadd.f32 0.0, %v534
      %536 = vmatmul.bf16.gmra.mxu0 %v379
      %v537 = vpop.f32.mrf.mxu0
      %v538 = vadd.f32 0.0, %v537
      %v539 = vpop.f32.mrf.mxu0
      %v540 = vadd.f32 0.0, %v539
      %541 = vdwg.mxu0
      %542 = vmatpush.bf16.msra.mxu0 %v476
      %543 = vmatpush.bf16.msra.mxu0 %v475
      %544 = vmatpush.bf16.msra.mxu0 %v474
      %545 = vmatpush.bf16.msra.mxu0 %v473
      %546 = vmatpush.bf16.msra.mxu0 %v472
      %547 = vmatpush.bf16.msra.mxu0 %v471
      %548 = vmatpush.bf16.msra.mxu0 %v470
      %549 = vmatpush.bf16.msra.mxu0 %v469
      %550 = vmatmul.bf16.gmra.mxu0 %v366
      %v551 = vpop.f32.mrf.mxu0
      %v552 = vadd.f32 %v503, %v551
      %v553 = vpop.f32.mrf.mxu0
      %v554 = vadd.f32 %v505, %v553
      %555 = vmatmul.bf16.gmra.mxu0 %v368
      %v556 = vpop.f32.mrf.mxu0
      %v557 = vadd.f32 %v508, %v556
      %v558 = vpop.f32.mrf.mxu0
      %v559 = vadd.f32 %v510, %v558
      %560 = vmatmul.bf16.gmra.mxu0 %v370
      %v561 = vpop.f32.mrf.mxu0
      %v562 = vadd.f32 %v513, %v561
      %v563 = vpop.f32.mrf.mxu0
      %v564 = vadd.f32 %v515, %v563
      %565 = vmatmul.bf16.gmra.mxu0 %v372
      %v566 = vpop.f32.mrf.mxu0
      %v567 = vadd.f32 %v518, %v566
      %v568 = vpop.f32.mrf.mxu0
      %v569 = vadd.f32 %v520, %v568
      %570 = vmatmul.bf16.gmra.mxu0 %v374
      %v571 = vpop.f32.mrf.mxu0
      %v572 = vadd.f32 %v523, %v571
      %v573 = vpop.f32.mrf.mxu0
      %v574 = vadd.f32 %v525, %v573
      %575 = vmatmul.bf16.gmra.mxu0 %v376
      %v576 = vpop.f32.mrf.mxu0
      %v577 = vadd.f32 %v528, %v576
      %v578 = vpop.f32.mrf.mxu0
      %v579 = vadd.f32 %v530, %v578
      %580 = vmatmul.bf16.gmra.mxu0 %v378
      %v581 = vpop.f32.mrf.mxu0
      %v582 = vadd.f32 %v533, %v581
      %v583 = vpop.f32.mrf.mxu0
      %v584 = vadd.f32 %v535, %v583
      %585 = vmatmul.bf16.gmra.mxu0 %v380
      %v586 = vpop.f32.mrf.mxu0
      %v587 = vadd.f32 %v538, %v586
      %v588 = vpop.f32.mrf.mxu0
      %v589 = vadd.f32 %v540, %v588
      %590 = vdwg.mxu0
      %vm591 = vcmask 261120
      %v592 = vsel %vm591, %v552, 0.0
      %v593 = vsel %vm591, %v554, 0.0
      %v594 = vadd.f32 %v592, %v593
      %v595 = vsel %vm591, %v557, 0.0
      %v596 = vadd.f32 %v594, %v595
      %v597 = vsel %vm591, %v559, 0.0
      %v598 = vadd.f32 %v596, %v597
      %v599 = vsel %vm591, %v562, 0.0
      %v600 = vadd.f32 %v598, %v599
      %v601 = vsel %vm591, %v564, 0.0
      %v602 = vadd.f32 %v600, %v601
      %v603 = vsel %vm591, %v567, 0.0
      %v604 = vadd.f32 %v602, %v603
      %v605 = vsel %vm591, %v569, 0.0
      %v606 = vadd.f32 %v604, %v605
      %v607 = vrot.slane %v606, 4
      %v608 = vadd.f32 %v606, %v607
      %v609 = vrot.slane %v608, 2
      %v610 = vadd.f32 %v608, %v609
      %v611 = vrot.slane %v610, 1
      %v612 = vadd.f32 %v610, %v611
      %v613 = vsel %vm591, %v572, 0.0
      %v614 = vsel %vm591, %v574, 0.0
      %v615 = vadd.f32 %v613, %v614
      %v616 = vsel %vm591, %v577, 0.0
      %v617 = vadd.f32 %v615, %v616
      %v618 = vsel %vm591, %v579, 0.0
      %v619 = vadd.f32 %v617, %v618
      %v620 = vsel %vm591, %v582, 0.0
      %v621 = vadd.f32 %v619, %v620
      %v622 = vsel %vm591, %v584, 0.0
      %v623 = vadd.f32 %v621, %v622
      %v624 = vsel %vm591, %v587, 0.0
      %v625 = vadd.f32 %v623, %v624
      %v626 = vsel %vm591, %v589, 0.0
      %v627 = vadd.f32 %v625, %v626
      %v628 = vrot.slane %v627, 4
      %v629 = vadd.f32 %v627, %v628
      %v630 = vrot.slane %v629, 2
      %v631 = vadd.f32 %v629, %v630
      %v632 = vrot.slane %v631, 1
      %v633 = vadd.f32 %v631, %v632
      %v634 = vmul.f32 %v612, 0.015625
      %v635 = vmul.f32 %v633, 0.015625
      %v636 = vmul.f32 %v552, %v552
      %v637 = vmul.f32 %v554, %v554
      %v638 = vmul.f32 %v557, %v557
      %v639 = vmul.f32 %v559, %v559
      %v640 = vmul.f32 %v562, %v562
      %v641 = vmul.f32 %v564, %v564
      %v642 = vmul.f32 %v567, %v567
      %v643 = vmul.f32 %v569, %v569
      %v644 = vmul.f32 %v572, %v572
      %v645 = vmul.f32 %v574, %v574
      %v646 = vmul.f32 %v577, %v577
      %v647 = vmul.f32 %v579, %v579
      %v648 = vmul.f32 %v582, %v582
      %v649 = vmul.f32 %v584, %v584
      %v650 = vmul.f32 %v587, %v587
      %v651 = vmul.f32 %v589, %v589
      %v652 = vsel %vm591, %v636, 0.0
      %v653 = vsel %vm591, %v637, 0.0
      %v654 = vadd.f32 %v652, %v653
      %v655 = vsel %vm591, %v638, 0.0
      %v656 = vadd.f32 %v654, %v655
      %v657 = vsel %vm591, %v639, 0.0
      %v658 = vadd.f32 %v656, %v657
      %v659 = vsel %vm591, %v640, 0.0
      %v660 = vadd.f32 %v658, %v659
      %v661 = vsel %vm591, %v641, 0.0
      %v662 = vadd.f32 %v660, %v661
      %v663 = vsel %vm591, %v642, 0.0
      %v664 = vadd.f32 %v662, %v663
      %v665 = vsel %vm591, %v643, 0.0
      %v666 = vadd.f32 %v664, %v665
      %v667 = vrot.slane %v666, 4
      %v668 = vadd.f32 %v666, %v667
      %v669 = vrot.slane %v668, 2
      %v670 = vadd.f32 %v668, %v669
      %v671 = vrot.slane %v670, 1
      %v672 = vadd.f32 %v670, %v671
      %v673 = vsel %vm591, %v644, 0.0
      %v674 = vsel %vm591, %v645, 0.0
      %v675 = vadd.f32 %v673, %v674
      %v676 = vsel %vm591, %v646, 0.0
      %v677 = vadd.f32 %v675, %v676
      %v678 = vsel %vm591, %v647, 0.0
      %v679 = vadd.f32 %v677, %v678
      %v680 = vsel %vm591, %v648, 0.0
      %v681 = vadd.f32 %v679, %v680
      %v682 = vsel %vm591, %v649, 0.0
      %v683 = vadd.f32 %v681, %v682
      %v684 = vsel %vm591, %v650, 0.0
      %v685 = vadd.f32 %v683, %v684
      %v686 = vsel %vm591, %v651, 0.0
      %v687 = vadd.f32 %v685, %v686
      %v688 = vrot.slane %v687, 4
      %v689 = vadd.f32 %v687, %v688
      %v690 = vrot.slane %v689, 2
      %v691 = vadd.f32 %v689, %v690
      %v692 = vrot.slane %v691, 1
      %v693 = vadd.f32 %v691, %v692
      %v694 = vmul.f32 %v672, 0.015625
      %v695 = vmul.f32 %v693, 0.015625
      %v696 = vmul.f32 %v634, %v634
      %v697 = vmul.f32 %v635, %v635
      %v698 = vsub.f32 %v694, %v696
      %v699 = vsub.f32 %v695, %v697
      %v700 = vmax.f32 %v698, 0.0
      %v701 = vmax.f32 %v699, 0.0
      %v702 = vld [vmem:[%s256] sm:$0x1]
      %v703 = vadd.f32 %v700, 1e-05
      %v704 = vadd.f32 %v701, 1e-05
      %v705 = vrsqrt.pop %v703
      %v706 = vmul.f32 %v705, %v703
      %v707 = vmul.f32 %v706, %v705
      %v708 = vmul.f32 0.5, %v707
      %v709 = vsub.f32 1.5, %v708
      %v710 = vmul.f32 %v705, %v709
      %vm711 = vweird.f32 %v703
      %vm712 = vweird.f32 %v705
      %vm713 = vmor %vm711, %vm712
      %v714 = vsel %vm713, %v705, %v710
      %v715 = vrsqrt.pop %v704
      %v716 = vmul.f32 %v715, %v704
      %v717 = vmul.f32 %v716, %v715
      %v718 = vmul.f32 0.5, %v717
      %v719 = vsub.f32 1.5, %v718
      %v720 = vmul.f32 %v715, %v719
      %vm721 = vweird.f32 %v704
      %vm722 = vweird.f32 %v715
      %vm723 = vmor %vm721, %vm722
      %v724 = vsel %vm723, %v715, %v720
      %v725 = vmul.f32 %v702, %v714
      %v726 = vmul.f32 %v702, %v724
      %v727 = vld [vmem:[%s259] sm:$0x1]
      %v728 = vmul.f32 %v634, %v725
      %v729 = vmul.f32 %v635, %v726
      %v730 = vsub.f32 %v727, %v728
      %v731 = vsub.f32 %v727, %v729
      %v734 = vperm.slane %v725, 0
      %v735 = vperm.slane %v726, 0
      %v738 = vmul.f32 %v552, %v734
      %v739 = vmul.f32 %v554, %v734
      %v740 = vmul.f32 %v557, %v734
      %v741 = vmul.f32 %v559, %v734
      %v742 = vmul.f32 %v562, %v734
      %v743 = vmul.f32 %v564, %v734
      %v744 = vmul.f32 %v567, %v734
      %v745 = vmul.f32 %v569, %v734
      %v746 = vmul.f32 %v572, %v735
      %v747 = vmul.f32 %v574, %v735
      %v748 = vmul.f32 %v577, %v735
      %v749 = vmul.f32 %v579, %v735
      %v750 = vmul.f32 %v582, %v735
      %v751 = vmul.f32 %v584, %v735
      %v752 = vmul.f32 %v587, %v735
      %v753 = vmul.f32 %v589, %v735
      %v756 = vperm.slane %v730, 0
      %v757 = vperm.slane %v731, 0
      %v760 = vadd.f32 %v738, %v756
      %v761 = vadd.f32 %v739, %v756
      %v762 = vadd.f32 %v740, %v756
      %v763 = vadd.f32 %v741, %v756
      %v764 = vadd.f32 %v742, %v756
      %v765 = vadd.f32 %v743, %v756
      %v766 = vadd.f32 %v744, %v756
      %v767 = vadd.f32 %v745, %v756
      %v768 = vadd.f32 %v746, %v757
      %v769 = vadd.f32 %v747, %v757
      %v770 = vadd.f32 %v748, %v757
      %v771 = vadd.f32 %v749, %v757
      %v772 = vadd.f32 %v750, %v757
      %v773 = vadd.f32 %v751, %v757
      %v774 = vadd.f32 %v752, %v757
      %v775 = vadd.f32 %v753, %v757
      %v776 = vmul.f32 %v760, 0.2
      %v777 = vmul.f32 %v761, 0.2
      %v778 = vmul.f32 %v762, 0.2
      %v779 = vmul.f32 %v763, 0.2
      %v780 = vmul.f32 %v764, 0.2
      %v781 = vmul.f32 %v765, 0.2
      %v782 = vmul.f32 %v766, 0.2
      %v783 = vmul.f32 %v767, 0.2
      %v784 = vmul.f32 %v768, 0.2
      %v785 = vmul.f32 %v769, 0.2
      %v786 = vmul.f32 %v770, 0.2
      %v787 = vmul.f32 %v771, 0.2
      %v788 = vmul.f32 %v772, 0.2
      %v789 = vmul.f32 %v773, 0.2
      %v790 = vmul.f32 %v774, 0.2
      %v791 = vmul.f32 %v775, 0.2
      %v792 = vmax.f32 %v760, %v776
      %v793 = vmax.f32 %v761, %v777
      %v794 = vmax.f32 %v762, %v778
      %v795 = vmax.f32 %v763, %v779
      %v796 = vmax.f32 %v764, %v780
      %v797 = vmax.f32 %v765, %v781
      %v798 = vmax.f32 %v766, %v782
      %v799 = vmax.f32 %v767, %v783
      %v800 = vmax.f32 %v768, %v784
      %v801 = vmax.f32 %v769, %v785
      %v802 = vmax.f32 %v770, %v786
      %v803 = vmax.f32 %v771, %v787
      %v804 = vmax.f32 %v772, %v788
      %v805 = vmax.f32 %v773, %v789
      %v806 = vmax.f32 %v774, %v790
      %v807 = vmax.f32 %v775, %v791
      %v808 = vpack.c.bf16 %v792, %v792
      %v809 = vpack.c.bf16 %v793, %v793
      %v810 = vpack.c.bf16 %v794, %v794
      %v811 = vpack.c.bf16 %v795, %v795
      %v812 = vpack.c.bf16 %v796, %v796
      %v813 = vpack.c.bf16 %v797, %v797
      %v814 = vpack.c.bf16 %v798, %v798
      %v815 = vpack.c.bf16 %v799, %v799
      %v816 = vpack.c.bf16 %v800, %v800
      %v817 = vpack.c.bf16 %v801, %v801
      %v818 = vpack.c.bf16 %v802, %v802
      %v819 = vpack.c.bf16 %v803, %v803
      %v820 = vpack.c.bf16 %v804, %v804
      %v821 = vpack.c.bf16 %v805, %v805
      %v822 = vpack.c.bf16 %v806, %v806
      %v823 = vpack.c.bf16 %v807, %v807
      %vm824 = vcmask 257024
      %825 = vst.msk [vmem:[%s267] sm:$0xf] %vm824, %v808
      %826 = vst.msk [vmem:[%s267 + $0x4] sm:$0xf] %vm824, %v809
      %827 = vst.msk [vmem:[%s267 + $0x8] sm:$0xf] %vm824, %v810
      %828 = vst.msk [vmem:[%s267 + $0xc] sm:$0xf] %vm824, %v811
      %829 = vst.msk [vmem:[%s267 + $0x10] sm:$0xf] %vm824, %v812
      %830 = vst.msk [vmem:[%s267 + $0x14] sm:$0xf] %vm824, %v813
      %831 = vst.msk [vmem:[%s267 + $0x18] sm:$0xf] %vm824, %v814
      %832 = vst.msk [vmem:[%s267 + $0x1c] sm:$0xf] %vm824, %v815
      %833 = vst.msk [vmem:[%s267 + $0x20] sm:$0xf] %vm824, %v816
      %834 = vst.msk [vmem:[%s267 + $0x24] sm:$0xf] %vm824, %v817
      %835 = vst.msk [vmem:[%s267 + $0x28] sm:$0xf] %vm824, %v818
      %836 = vst.msk [vmem:[%s267 + $0x2c] sm:$0xf] %vm824, %v819
      %837 = vst.msk [vmem:[%s267 + $0x30] sm:$0xf] %vm824, %v820
      %838 = vst.msk [vmem:[%s267 + $0x34] sm:$0xf] %vm824, %v821
      %839 = vst.msk [vmem:[%s267 + $0x38] sm:$0xf] %vm824, %v822
      %840 = vst.msk [vmem:[%s267 + $0x3c] sm:$0xf] %vm824, %v823
      %s841 = smul.u32 16, %s19
      %p842 = scmp.lt.s32.totalorder %s841, 31
      %s843 = scalar_select %p842, %s841, 31
      %p844 = scmp.lt.s32.totalorder %s20, 0
      %s845 = scalar_select %p844, %s20, 0
      %s846 = sadd.s32 %s845, %s843
      %s847 = smul.addr %s846, 4
      %s848 = scalar_lea.vmem %s4, %s847
      // Predicated region
      $region37: #{critic_forward.6} parent=35 // pred_check
        %p849 = pneg %p151
      $region38: #{critic_forward.6} parent=35 // pred_check_branch
        %851 = sbr.rel (%p849) target = $region40
      $region39: #{critic_forward.6} parent=35 // pred_region
        %s852 = smul.u32 16, %s19
      $region40: #{critic_forward.6} parent=35 // pred_fallthru
        _
    $region36: #{critic_forward.6} parent=5 // pred_fallthru
      _
    %p853 = scmp.le.s32.totalorder 2, %s10
    // Predicated region
    $region41: #{critic_forward.6} parent=5 // pred_check
      %p854 = pneg %p853
    $region42: #{critic_forward.6} parent=5 // pred_check_branch
      %856 = sbr.rel (%p854) target = $region44
    $region43: #{critic_forward.6} parent=5 // pred_region
      %s857 = ssub.s32 %s10, 2
      // Predicated region
      $region45: #{critic_forward.6} parent=43 // pred_check
        %p858 = pneg %p157
      $region46: #{critic_forward.6} parent=43 // pred_check_branch
        %860 = sbr.rel (%p858) target = $region48
      $region47: #{critic_forward.6} parent=43 // pred_region
        %s861 = smul.u32 16, %s21
        %p862 = scmp.lt.s32.totalorder %s861, 31
        %s863 = scalar_select %p862, %s861, 31
        %p864 = scmp.lt.s32.totalorder %s22, 0
        %s865 = scalar_select %p864, %s22, 0
        %s866 = sadd.s32 %s865, %s863
        %s867 = smul.addr %s866, 4
        %s868 = scalar_lea.vmem %s4, %s867
      $region48: #{critic_forward.6} parent=43 // pred_fallthru
        _
    $region44: #{critic_forward.6} parent=5 // pred_fallthru
      _
  $region6: #{critic_forward.6} parent=0 // loop_footer
    %s14 = sadd.s32 1, %s10
  $region7: #{critic_forward.6} parent=0 // loop_footer_branch
    %9 = sbr.rel target = $region3
  $region8: #{critic_forward.6} parent=0 // loop_exit
    _

// kernel: critic_forward.7
$region0: #{critic_forward.7}
  #allocation0 [shape = 'u32[]', space=smem, size = 0x4, offset = 0x4, fixed_abs, tag = 'smem constant byte address 0x4 - core index']
  #allocation1 [shape = 'u32[72,128]{1,0:T(1,128)}', space=vmem, size = 0x9000, scoped, tag = 'internal scratch']
  %s0 = inlined_call_operand.vmem [shape: bf16[64,512], index: 0, kind: input, shape index: {}]
  %s1 = inlined_call_operand.vmem [shape: bf16[512,64], index: 1, kind: input, shape index: {}]
  %s2 = inlined_call_operand.vmem [shape: f32[1,64], index: 2, kind: input, shape index: {}]
  %s3 = inlined_call_operand.vmem [shape: f32[1,64], index: 3, kind: input, shape index: {}]
  %s4 = inlined_call_operand.vmem [shape: f32[16,64], index: 4, kind: input, shape index: {}]
  %s5 = inlined_call_operand.vmem [shape: f32[4,1], index: 5, kind: output, shape index: {}]
  %s6 = sld [smem:[#allocation0]]
  $region30: #{critic_forward.7} parent=0
    _
  %s8 = ssub.s32 1, %s6
  %s9 = scalar_select 0, %s8, %s6
  // Predicated region
  $region2: #{critic_forward.7} parent=0 // pred_check
    _
  $region3: #{critic_forward.7} parent=0 // pred_check_branch
    %11 = sbr.rel (0) target = $region5
  $region4: #{critic_forward.7} parent=0 // pred_region
    _
  $region5: #{critic_forward.7} parent=0 // pred_fallthru
    _
  // Predicated region
  $region6: #{critic_forward.7} parent=0 // pred_check
    _
  $region7: #{critic_forward.7} parent=0 // pred_check_branch
    %13 = sbr.rel (0) target = $region9
  $region8: #{critic_forward.7} parent=0 // pred_region
    _
  $region9: #{critic_forward.7} parent=0 // pred_fallthru
    _
  // Predicated region
  $region10: #{critic_forward.7} parent=0 // pred_check
    _
  $region11: #{critic_forward.7} parent=0 // pred_check_branch
    %15 = sbr.rel (0) target = $region13
  $region12: #{critic_forward.7} parent=0 // pred_region
    _
  $region13: #{critic_forward.7} parent=0 // pred_fallthru
    _
  // Predicated region
  $region14: #{critic_forward.7} parent=0 // pred_check
    _
  $region15: #{critic_forward.7} parent=0 // pred_check_branch
    %17 = sbr.rel (0) target = $region17
  $region16: #{critic_forward.7} parent=0 // pred_region
    _
  $region17: #{critic_forward.7} parent=0 // pred_fallthru
    _
  // Predicated region
  $region18: #{critic_forward.7} parent=0 // pred_check
    _
  $region19: #{critic_forward.7} parent=0 // pred_check_branch
    %19 = sbr.rel (0) target = $region21
  $region20: #{critic_forward.7} parent=0 // pred_region
    _
  $region21: #{critic_forward.7} parent=0 // pred_fallthru
    _
  %v20 = vld [vmem:[%s0] sm:$0xff]
  %v21 = vld [vmem:[%s0 + $0x8] sm:$0xff]
  %v22 = vld [vmem:[%s0 + $0x10] sm:$0xff]
  %v23 = vld [vmem:[%s0 + $0x18] sm:$0xff]
  %v24 = vld [vmem:[%s0 + $0x20] sm:$0xff]
  %v25 = vld [vmem:[%s0 + $0x28] sm:$0xff]
  %v26 = vld [vmem:[%s0 + $0x30] sm:$0xff]
  %v27 = vld [vmem:[%s0 + $0x38] sm:$0xff]
  %v28 = vld [vmem:[%s0 + $0x40] sm:$0xff]
  %v29 = vld [vmem:[%s0 + $0x48] sm:$0xff]
  %v30 = vld [vmem:[%s0 + $0x50] sm:$0xff]
  %v31 = vld [vmem:[%s0 + $0x58] sm:$0xff]
  %v32 = vld [vmem:[%s0 + $0x60] sm:$0xff]
  %v33 = vld [vmem:[%s0 + $0x68] sm:$0xff]
  %v34 = vld [vmem:[%s0 + $0x70] sm:$0xff]
  %v35 = vld [vmem:[%s0 + $0x78] sm:$0xff]
  %v36 = vld [vmem:[%s1] sm:$0xf]
  %v37 = vld [vmem:[%s1 + $0x4] sm:$0xf]
  %v38 = vld [vmem:[%s1 + $0x8] sm:$0xf]
  %v39 = vld [vmem:[%s1 + $0xc] sm:$0xf]
  %v40 = vld [vmem:[%s1 + $0x10] sm:$0xf]
  %v41 = vld [vmem:[%s1 + $0x14] sm:$0xf]
  %v42 = vld [vmem:[%s1 + $0x18] sm:$0xf]
  %v43 = vld [vmem:[%s1 + $0x1c] sm:$0xf]
  %v44 = vld [vmem:[%s1 + $0x20] sm:$0xf]
  %v45 = vld [vmem:[%s1 + $0x24] sm:$0xf]
  %v46 = vld [vmem:[%s1 + $0x28] sm:$0xf]
  %v47 = vld [vmem:[%s1 + $0x2c] sm:$0xf]
  %v48 = vld [vmem:[%s1 + $0x30] sm:$0xf]
  %v49 = vld [vmem:[%s1 + $0x34] sm:$0xf]
  %v50 = vld [vmem:[%s1 + $0x38] sm:$0xf]
  %v51 = vld [vmem:[%s1 + $0x3c] sm:$0xf]
  %v52 = vld [vmem:[%s1 + $0x40] sm:$0xf]
  %v53 = vld [vmem:[%s1 + $0x44] sm:$0xf]
  %v54 = vld [vmem:[%s1 + $0x48] sm:$0xf]
  %v55 = vld [vmem:[%s1 + $0x4c] sm:$0xf]
  %v56 = vld [vmem:[%s1 + $0x50] sm:$0xf]
  %v57 = vld [vmem:[%s1 + $0x54] sm:$0xf]
  %v58 = vld [vmem:[%s1 + $0x58] sm:$0xf]
  %v59 = vld [vmem:[%s1 + $0x5c] sm:$0xf]
  %v60 = vld [vmem:[%s1 + $0x60] sm:$0xf]
  %v61 = vld [vmem:[%s1 + $0x64] sm:$0xf]
  %v62 = vld [vmem:[%s1 + $0x68] sm:$0xf]
  %v63 = vld [vmem:[%s1 + $0x6c] sm:$0xf]
  %v64 = vld [vmem:[%s1 + $0x70] sm:$0xf]
  %v65 = vld [vmem:[%s1 + $0x74] sm:$0xf]
  %v66 = vld [vmem:[%s1 + $0x78] sm:$0xf]
  %v67 = vld [vmem:[%s1 + $0x7c] sm:$0xf]
  %v68 = vld [vmem:[%s1 + $0x80] sm:$0xf]
  %v69 = vld [vmem:[%s1 + $0x84] sm:$0xf]
  %v70 = vld [vmem:[%s1 + $0x88] sm:$0xf]
  %v71 = vld [vmem:[%s1 + $0x8c] sm:$0xf]
  %v72 = vld [vmem:[%s1 + $0x90] sm:$0xf]
  %v73 = vld [vmem:[%s1 + $0x94] sm:$0xf]
  %v74 = vld [vmem:[%s1 + $0x98] sm:$0xf]
  %v75 = vld [vmem:[%s1 + $0x9c] sm:$0xf]
  %v76 = vld [vmem:[%s1 + $0xa0] sm:$0xf]
  %v77 = vld [vmem:[%s1 + $0xa4] sm:$0xf]
  %v78 = vld [vmem:[%s1 + $0xa8] sm:$0xf]
  %v79 = vld [vmem:[%s1 + $0xac] sm:$0xf]
  %v80 = vld [vmem:[%s1 + $0xb0] sm:$0xf]
  %v81 = vld [vmem:[%s1 + $0xb4] sm:$0xf]
  %v82 = vld [vmem:[%s1 + $0xb8] sm:$0xf]
  %v83 = vld [vmem:[%s1 + $0xbc] sm:$0xf]
  %v84 = vld [vmem:[%s1 + $0xc0] sm:$0xf]
  %v85 = vld [vmem:[%s1 + $0xc4] sm:$0xf]
  %v86 = vld [vmem:[%s1 + $0xc8] sm:$0xf]
  %v87 = vld [vmem:[%s1 + $0xcc] sm:$0xf]
  %v88 = vld [vmem:[%s1 + $0xd0] sm:$0xf]
  %v89 = vld [vmem:[%s1 + $0xd4] sm:$0xf]
  %v90 = vld [vmem:[%s1 + $0xd8] sm:$0xf]
  %v91 = vld [vmem:[%s1 + $0xdc] sm:$0xf]
  %v92 = vld [vmem:[%s1 + $0xe0] sm:$0xf]
  %v93 = vld [vmem:[%s1 + $0xe4] sm:$0xf]
  %v94 = vld [vmem:[%s1 + $0xe8] sm:$0xf]
  %v95 = vld [vmem:[%s1 + $0xec] sm:$0xf]
  %v96 = vld [vmem:[%s1 + $0xf0] sm:$0xf]
  %v97 = vld [vmem:[%s1 + $0xf4] sm:$0xf]
  %v98 = vld [vmem:[%s1 + $0xf8] sm:$0xf]
  %v99 = vld [vmem:[%s1 + $0xfc] sm:$0xf]
  %v116 = vunpack.c.l.b16 %v20
  %v117 = vunpack.c.h.b16 %v20
  %v118 = vunpack.c.l.b16 %v21
  %v119 = vunpack.c.h.b16 %v21
  %v120 = vunpack.c.l.b16 %v22
  %v121 = vunpack.c.h.b16 %v22
  %v122 = vunpack.c.l.b16 %v23
  %v123 = vunpack.c.h.b16 %v23
  %v124 = vunpack.c.l.b16 %v24
  %v125 = vunpack.c.h.b16 %v24
  %v126 = vunpack.c.l.b16 %v25
  %v127 = vunpack.c.h.b16 %v25
  %v128 = vunpack.c.l.b16 %v26
  %v129 = vunpack.c.h.b16 %v26
  %v130 = vunpack.c.l.b16 %v27
  %v131 = vunpack.c.h.b16 %v27
  %v132 = vunpack.c.l.b16 %v28
  %v133 = vunpack.c.h.b16 %v28
  %v134 = vunpack.c.l.b16 %v29
  %v135 = vunpack.c.h.b16 %v29
  %v136 = vunpack.c.l.b16 %v30
  %v137 = vunpack.c.h.b16 %v30
  %v138 = vunpack.c.l.b16 %v31
  %v139 = vunpack.c.h.b16 %v31
  %v140 = vunpack.c.l.b16 %v32
  %v141 = vunpack.c.h.b16 %v32
  %v142 = vunpack.c.l.b16 %v33
  %v143 = vunpack.c.h.b16 %v33
  %v144 = vunpack.c.l.b16 %v34
  %v145 = vunpack.c.h.b16 %v34
  %v146 = vunpack.c.l.b16 %v35
  %v147 = vunpack.c.h.b16 %v35
  %v148 = vpack.c.b16 %v120, %v116
  %v149 = vpack.c.b16 %v121, %v117
  %v150 = vpack.c.b16 %v122, %v118
  %v151 = vpack.c.b16 %v123, %v119
  %v152 = vpack.c.b16 %v128, %v124
  %v153 = vpack.c.b16 %v129, %v125
  %v154 = vpack.c.b16 %v130, %v126
  %v155 = vpack.c.b16 %v131, %v127
  %v156 = vpack.c.b16 %v136, %v132
  %v157 = vpack.c.b16 %v137, %v133
  %v158 = vpack.c.b16 %v138, %v134
  %v159 = vpack.c.b16 %v139, %v135
  %v160 = vpack.c.b16 %v144, %v140
  %v161 = vpack.c.b16 %v145, %v141
  %v162 = vpack.c.b16 %v146, %v142
  %v163 = vpack.c.b16 %v147, %v143
  %v244 = vunpack.c.l.b16 %v36
  %v245 = vunpack.c.l.b16 %v37
  %v246 = vunpack.c.l.b16 %v38
  %v247 = vunpack.c.l.b16 %v39
  %v248 = vunpack.c.l.b16 %v40
  %v249 = vunpack.c.l.b16 %v41
  %v250 = vunpack.c.l.b16 %v42
  %v251 = vunpack.c.l.b16 %v43
  %v252 = vunpack.c.l.b16 %v44
  %v253 = vunpack.c.l.b16 %v45
  %v254 = vunpack.c.l.b16 %v46
  %v255 = vunpack.c.l.b16 %v47
  %v256 = vunpack.c.l.b16 %v48
  %v257 = vunpack.c.l.b16 %v49
  %v258 = vunpack.c.l.b16 %v50
  %v259 = vunpack.c.l.b16 %v51
  %v260 = vunpack.c.l.b16 %v52
  %v261 = vunpack.c.l.b16 %v53
  %v262 = vunpack.c.l.b16 %v54
  %v263 = vunpack.c.l.b16 %v55
  %v264 = vunpack.c.l.b16 %v56
  %v265 = vunpack.c.l.b16 %v57
  %v266 = vunpack.c.l.b16 %v58
  %v267 = vunpack.c.l.b16 %v59
  %v268 = vunpack.c.l.b16 %v60
  %v269 = vunpack.c.l.b16 %v61
  %v270 = vunpack.c.l.b16 %v62
  %v271 = vunpack.c.l.b16 %v63
  %v272 = vunpack.c.l.b16 %v64
  %v273 = vunpack.c.l.b16 %v65
  %v274 = vunpack.c.l.b16 %v66
  %v275 = vunpack.c.l.b16 %v67
  %v276 = vunpack.c.l.b16 %v68
  %v277 = vunpack.c.l.b16 %v69
  %v278 = vunpack.c.l.b16 %v70
  %v279 = vunpack.c.l.b16 %v71
  %v280 = vunpack.c.l.b16 %v72
  %v281 = vunpack.c.l.b16 %v73
  %v282 = vunpack.c.l.b16 %v74
  %v283 = vunpack.c.l.b16 %v75
  %v284 = vunpack.c.l.b16 %v76
  %v285 = vunpack.c.l.b16 %v77
  %v286 = vunpack.c.l.b16 %v78
  %v287 = vunpack.c.l.b16 %v79
  %v288 = vunpack.c.l.b16 %v80
  %v289 = vunpack.c.l.b16 %v81
  %v290 = vunpack.c.l.b16 %v82
  %v291 = vunpack.c.l.b16 %v83
  %v292 = vunpack.c.l.b16 %v84
  %v293 = vunpack.c.l.b16 %v85
  %v294 = vunpack.c.l.b16 %v86
  %v295 = vunpack.c.l.b16 %v87
  %v296 = vunpack.c.l.b16 %v88
  %v297 = vunpack.c.l.b16 %v89
  %v298 = vunpack.c.l.b16 %v90
  %v299 = vunpack.c.l.b16 %v91
  %v300 = vunpack.c.l.b16 %v92
  %v301 = vunpack.c.l.b16 %v93
  %v302 = vunpack.c.l.b16 %v94
  %v303 = vunpack.c.l.b16 %v95
  %v304 = vunpack.c.l.b16 %v96
  %v305 = vunpack.c.l.b16 %v97
  %v306 = vunpack.c.l.b16 %v98
  %v307 = vunpack.c.l.b16 %v99
  %v308 = vpack.c.b16 %v245, %v244
  %v309 = vpack.c.b16 %v247, %v246
  %v310 = vpack.c.b16 %v249, %v248
  %v311 = vpack.c.b16 %v251, %v250
  %v312 = vpack.c.b16 %v253, %v252
  %v313 = vpack.c.b16 %v255, %v254
  %v314 = vpack.c.b16 %v257, %v256
  %v315 = vpack.c.b16 %v259, %v258
  %v316 = vpack.c.b16 %v261, %v260
  %v317 = vpack.c.b16 %v263, %v262
  %v318 = vpack.c.b16 %v265, %v264
  %v319 = vpack.c.b16 %v267, %v266
  %v320 = vpack.c.b16 %v269, %v268
  %v321 = vpack.c.b16 %v271, %v270
  %v322 = vpack.c.b16 %v273, %v272
  %v323 = vpack.c.b16 %v275, %v274
  %v324 = vpack.c.b16 %v277, %v276
  %v325 = vpack.c.b16 %v279, %v278
  %v326 = vpack.c.b16 %v281, %v280
  %v327 = vpack.c.b16 %v283, %v282
  %v328 = vpack.c.b16 %v285, %v284
  %v329 = vpack.c.b16 %v287, %v286
  %v330 = vpack.c.b16 %v289, %v288
  %v331 = vpack.c.b16 %v291, %v290
  %v332 = vpack.c.b16 %v293, %v292
  %v333 = vpack.c.b16 %v295, %v294
  %v334 = vpack.c.b16 %v297, %v296
  %v335 = vpack.c.b16 %v299, %v298
  %v336 = vpack.c.b16 %v301, %v300
  %v337 = vpack.c.b16 %v303, %v302
  %v338 = vpack.c.b16 %v305, %v304
  %v339 = vpack.c.b16 %v307, %v306
  %372 = vmatpush.bf16.msra.mxu0 %v315
  %373 = vmatpush.bf16.msra.mxu0 %v314
  %374 = vmatpush.bf16.msra.mxu0 %v313
  %375 = vmatpush.bf16.msra.mxu0 %v312
  %376 = vmatpush.bf16.msra.mxu0 %v311
  %377 = vmatpush.bf16.msra.mxu0 %v310
  %378 = vmatpush.bf16.msra.mxu0 %v309
  %379 = vmatpush.bf16.msra.mxu0 %v308
  %380 = vmatmul.bf16.gmra.mxu0 %v148
  %v381 = vpop.f32.mrf.mxu0
  %v382 = vadd.f32 0.0, %v381
  %v383 = vpop.f32.mrf.mxu0
  %v384 = vadd.f32 0.0, %v383
  %385 = vmatmul.bf16.gmra.mxu0 %v152
  %v386 = vpop.f32.mrf.mxu0
  %v387 = vadd.f32 0.0, %v386
  %v388 = vpop.f32.mrf.mxu0
  %v389 = vadd.f32 0.0, %v388
  %390 = vmatmul.bf16.gmra.mxu0 %v156
  %v391 = vpop.f32.mrf.mxu0
  %v392 = vadd.f32 0.0, %v391
  %v393 = vpop.f32.mrf.mxu0
  %v394 = vadd.f32 0.0, %v393
  %395 = vmatmul.bf16.gmra.mxu0 %v160
  %v396 = vpop.f32.mrf.mxu0
  %v397 = vadd.f32 0.0, %v396
  %v398 = vpop.f32.mrf.mxu0
  %v399 = vadd.f32 0.0, %v398
  %400 = vdwg.mxu0
  %401 = vmatpush.bf16.msra.mxu0 %v323
  %402 = vmatpush.bf16.msra.mxu0 %v322
  %403 = vmatpush.bf16.msra.mxu0 %v321
  %404 = vmatpush.bf16.msra.mxu0 %v320
  %405 = vmatpush.bf16.msra.mxu0 %v319
  %406 = vmatpush.bf16.msra.mxu0 %v318
  %407 = vmatpush.bf16.msra.mxu0 %v317
  %408 = vmatpush.bf16.msra.mxu0 %v316
  %409 = vmatmul.bf16.gmra.mxu0 %v149
  %v410 = vpop.f32.mrf.mxu0
  %v411 = vadd.f32 %v382, %v410
  %v412 = vpop.f32.mrf.mxu0
  %v413 = vadd.f32 %v384, %v412
  %414 = vmatmul.bf16.gmra.mxu0 %v153
  %v415 = vpop.f32.mrf.mxu0
  %v416 = vadd.f32 %v387, %v415
  %v417 = vpop.f32.mrf.mxu0
  %v418 = vadd.f32 %v389, %v417
  %419 = vmatmul.bf16.gmra.mxu0 %v157
  %v420 = vpop.f32.mrf.mxu0
  %v421 = vadd.f32 %v392, %v420
  %v422 = vpop.f32.mrf.mxu0
  %v423 = vadd.f32 %v394, %v422
  %424 = vmatmul.bf16.gmra.mxu0 %v161
  %v425 = vpop.f32.mrf.mxu0
  %v426 = vadd.f32 %v397, %v425
  %v427 = vpop.f32.mrf.mxu0
  %v428 = vadd.f32 %v399, %v427
  %429 = vdwg.mxu0
  %430 = vmatpush.bf16.msra.mxu0 %v331
  %431 = vmatpush.bf16.msra.mxu0 %v330
  %432 = vmatpush.bf16.msra.mxu0 %v329
  %433 = vmatpush.bf16.msra.mxu0 %v328
  %434 = vmatpush.bf16.msra.mxu0 %v327
  %435 = vmatpush.bf16.msra.mxu0 %v326
  %436 = vmatpush.bf16.msra.mxu0 %v325
  %437 = vmatpush.bf16.msra.mxu0 %v324
  %438 = vmatmul.bf16.gmra.mxu0 %v150
  %v439 = vpop.f32.mrf.mxu0
  %v440 = vadd.f32 %v411, %v439
  %v441 = vpop.f32.mrf.mxu0
  %v442 = vadd.f32 %v413, %v441
  %443 = vmatmul.bf16.gmra.mxu0 %v154
  %v444 = vpop.f32.mrf.mxu0
  %v445 = vadd.f32 %v416, %v444
  %v446 = vpop.f32.mrf.mxu0
  %v447 = vadd.f32 %v418, %v446
  %448 = vmatmul.bf16.gmra.mxu0 %v158
  %v449 = vpop.f32.mrf.mxu0
  %v450 = vadd.f32 %v421, %v449
  %v451 = vpop.f32.mrf.mxu0
  %v452 = vadd.f32 %v423, %v451
  %453 = vmatmul.bf16.gmra.mxu0 %v162
  %v454 = vpop.f32.mrf.mxu0
  %v455 = vadd.f32 %v426, %v454
  %v456 = vpop.f32.mrf.mxu0
  %v457 = vadd.f32 %v428, %v456
  %458 = vdwg.mxu0
  %459 = vmatpush.bf16.msra.mxu0 %v339
  %460 = vmatpush.bf16.msra.mxu0 %v338
  %461 = vmatpush.bf16.msra.mxu0 %v337
  %462 = vmatpush.bf16.msra.mxu0 %v336
  %463 = vmatpush.bf16.msra.mxu0 %v335
  %464 = vmatpush.bf16.msra.mxu0 %v334
  %465 = vmatpush.bf16.msra.mxu0 %v333
  %466 = vmatpush.bf16.msra.mxu0 %v332
  %467 = vmatmul.bf16.gmra.mxu0 %v151
  %v468 = vpop.f32.mrf.mxu0
  %v469 = vadd.f32 %v440, %v468
  %v470 = vpop.f32.mrf.mxu0
  %v471 = vadd.f32 %v442, %v470
  %472 = vmatmul.bf16.gmra.mxu0 %v155
  %v473 = vpop.f32.mrf.mxu0
  %v474 = vadd.f32 %v445, %v473
  %v475 = vpop.f32.mrf.mxu0
  %v476 = vadd.f32 %v447, %v475
  %477 = vmatmul.bf16.gmra.mxu0 %v159
  %v478 = vpop.f32.mrf.mxu0
  %v479 = vadd.f32 %v450, %v478
  %v480 = vpop.f32.mrf.mxu0
  %v481 = vadd.f32 %v452, %v480
  %482 = vmatmul.bf16.gmra.mxu0 %v163
  %v483 = vpop.f32.mrf.mxu0
  %v484 = vadd.f32 %v455, %v483
  %v485 = vpop.f32.mrf.mxu0
  %v486 = vadd.f32 %v457, %v485
  %487 = vdwg.mxu0
  %vm488 = vcmask 523264
  %v489 = vsel %vm488, %v469, 0.0
  %v490 = vsel %vm488, %v471, 0.0
  %v491 = vadd.f32 %v489, %v490
  %v492 = vrot.slane %v491, 4
  %v493 = vadd.f32 %v491, %v492
  %v494 = vrot.slane %v493, 2
  %v495 = vadd.f32 %v493, %v494
  %v496 = vrot.slane %v495, 1
  %v497 = vadd.f32 %v495, %v496
  %v498 = vsel %vm488, %v474, 0.0
  %v499 = vsel %vm488, %v476, 0.0
  %v500 = vadd.f32 %v498, %v499
  %v501 = vrot.slane %v500, 4
  %v502 = vadd.f32 %v500, %v501
  %v503 = vrot.slane %v502, 2
  %v504 = vadd.f32 %v502, %v503
  %v505 = vrot.slane %v504, 1
  %v506 = vadd.f32 %v504, %v505
  %v507 = vsel %vm488, %v479, 0.0
  %v508 = vsel %vm488, %v481, 0.0
  %v509 = vadd.f32 %v507, %v508
  %v510 = vrot.slane %v509, 4
  %v511 = vadd.f32 %v509, %v510
  %v512 = vrot.slane %v511, 2
  %v513 = vadd.f32 %v511, %v512
  %v514 = vrot.slane %v513, 1
  %v515 = vadd.f32 %v513, %v514
  %v516 = vsel %vm488, %v484, 0.0
  %v517 = vsel %vm488, %v486, 0.0
  %v518 = vadd.f32 %v516, %v517
  %v519 = vrot.slane %v518, 4
  %v520 = vadd.f32 %v518, %v519
  %v521 = vrot.slane %v520, 2
  %v522 = vadd.f32 %v520, %v521
  %v523 = vrot.slane %v522, 1
  %v524 = vadd.f32 %v522, %v523
  %v525 = vmul.f32 %v497, 0.0625
  %v526 = vmul.f32 %v506, 0.0625
  %v527 = vmul.f32 %v515, 0.0625
  %v528 = vmul.f32 %v524, 0.0625
  %v529 = vmul.f32 %v469, %v469
  %v530 = vmul.f32 %v471, %v471
  %v531 = vmul.f32 %v474, %v474
  %v532 = vmul.f32 %v476, %v476
  %v533 = vmul.f32 %v479, %v479
  %v534 = vmul.f32 %v481, %v481
  %v535 = vmul.f32 %v484, %v484
  %v536 = vmul.f32 %v486, %v486
  %v537 = vsel %vm488, %v529, 0.0
  %v538 = vsel %vm488, %v530, 0.0
  %v539 = vadd.f32 %v537, %v538
  %v540 = vrot.slane %v539, 4
  %v541 = vadd.f32 %v539, %v540
  %v542 = vrot.slane %v541, 2
  %v543 = vadd.f32 %v541, %v542
  %v544 = vrot.slane %v543, 1
  %v545 = vadd.f32 %v543, %v544
  %v546 = vsel %vm488, %v531, 0.0
  %v547 = vsel %vm488, %v532, 0.0
  %v548 = vadd.f32 %v546, %v547
  %v549 = vrot.slane %v548, 4
  %v550 = vadd.f32 %v548, %v549
  %v551 = vrot.slane %v550, 2
  %v552 = vadd.f32 %v550, %v551
  %v553 = vrot.slane %v552, 1
  %v554 = vadd.f32 %v552, %v553
  %v555 = vsel %vm488, %v533, 0.0
  %v556 = vsel %vm488, %v534, 0.0
  %v557 = vadd.f32 %v555, %v556
  %v558 = vrot.slane %v557, 4
  %v559 = vadd.f32 %v557, %v558
  %v560 = vrot.slane %v559, 2
  %v561 = vadd.f32 %v559, %v560
  %v562 = vrot.slane %v561, 1
  %v563 = vadd.f32 %v561, %v562
  %v564 = vsel %vm488, %v535, 0.0
  %v565 = vsel %vm488, %v536, 0.0
  %v566 = vadd.f32 %v564, %v565
  %v567 = vrot.slane %v566, 4
  %v568 = vadd.f32 %v566, %v567
  %v569 = vrot.slane %v568, 2
  %v570 = vadd.f32 %v568, %v569
  %v571 = vrot.slane %v570, 1
  %v572 = vadd.f32 %v570, %v571
  %v573 = vmul.f32 %v545, 0.0625
  %v574 = vmul.f32 %v554, 0.0625
  %v575 = vmul.f32 %v563, 0.0625
  %v576 = vmul.f32 %v572, 0.0625
  %v577 = vmul.f32 %v525, %v525
  %v578 = vmul.f32 %v526, %v526
  %v579 = vmul.f32 %v527, %v527
  %v580 = vmul.f32 %v528, %v528
  %v581 = vsub.f32 %v573, %v577
  %v582 = vsub.f32 %v574, %v578
  %v583 = vsub.f32 %v575, %v579
  %v584 = vsub.f32 %v576, %v580
  %v585 = vmax.f32 %v581, 0.0
  %v586 = vmax.f32 %v582, 0.0
  %v587 = vmax.f32 %v583, 0.0
  %v588 = vmax.f32 %v584, 0.0
  %v589 = vld [vmem:[%s2] sm:$0x1]
  %v590 = vadd.f32 %v585, 1e-05
  %v591 = vadd.f32 %v586, 1e-05
  %v592 = vadd.f32 %v587, 1e-05
  %v593 = vadd.f32 %v588, 1e-05
  %v594 = vrsqrt.pop %v590
  %v595 = vmul.f32 %v594, %v590
  %v596 = vmul.f32 %v595, %v594
  %v597 = vmul.f32 0.5, %v596
  %v598 = vsub.f32 1.5, %v597
  %v599 = vmul.f32 %v594, %v598
  %vm600 = vweird.f32 %v590
  %vm601 = vweird.f32 %v594
  %vm602 = vmor %vm600, %vm601
  %v603 = vsel %vm602, %v594, %v599
  %v604 = vrsqrt.pop %v591
  %v605 = vmul.f32 %v604, %v591
  %v606 = vmul.f32 %v605, %v604
  %v607 = vmul.f32 0.5, %v606
  %v608 = vsub.f32 1.5, %v607
  %v609 = vmul.f32 %v604, %v608
  %vm610 = vweird.f32 %v591
  %vm611 = vweird.f32 %v604
  %vm612 = vmor %vm610, %vm611
  %v613 = vsel %vm612, %v604, %v609
  %v614 = vrsqrt.pop %v592
  %v615 = vmul.f32 %v614, %v592
  %v616 = vmul.f32 %v615, %v614
  %v617 = vmul.f32 0.5, %v616
  %v618 = vsub.f32 1.5, %v617
  %v619 = vmul.f32 %v614, %v618
  %vm620 = vweird.f32 %v592
  %vm621 = vweird.f32 %v614
  %vm622 = vmor %vm620, %vm621
  %v623 = vsel %vm622, %v614, %v619
  %v624 = vrsqrt.pop %v593
  %v625 = vmul.f32 %v624, %v593
  %v626 = vmul.f32 %v625, %v624
  %v627 = vmul.f32 0.5, %v626
  %v628 = vsub.f32 1.5, %v627
  %v629 = vmul.f32 %v624, %v628
  %vm630 = vweird.f32 %v593
  %vm631 = vweird.f32 %v624
  %vm632 = vmor %vm630, %vm631
  %v633 = vsel %vm632, %v624, %v629
  %v634 = vmul.f32 %v589, %v603
  %v635 = vmul.f32 %v589, %v613
  %v636 = vmul.f32 %v589, %v623
  %v637 = vmul.f32 %v589, %v633
  %v638 = vld [vmem:[%s3] sm:$0x1]
  %v639 = vmul.f32 %v525, %v634
  %v640 = vmul.f32 %v526, %v635
  %v641 = vmul.f32 %v527, %v636
  %v642 = vmul.f32 %v528, %v637
  %v643 = vsub.f32 %v638, %v639
  %v644 = vsub.f32 %v638, %v640
  %v645 = vsub.f32 %v638, %v641
  %v646 = vsub.f32 %v638, %v642
  %v651 = vperm.slane %v634, 0
  %v652 = vperm.slane %v635, 0
  %v653 = vperm.slane %v636, 0
  %v654 = vperm.slane %v637, 0
  %v659 = vmul.f32 %v469, %v651
  %v660 = vmul.f32 %v471, %v651
  %v661 = vmul.f32 %v474, %v652
  %v662 = vmul.f32 %v476, %v652
  %v663 = vmul.f32 %v479, %v653
  %v664 = vmul.f32 %v481, %v653
  %v665 = vmul.f32 %v484, %v654
  %v666 = vmul.f32 %v486, %v654
  %v671 = vperm.slane %v643, 0
  %v672 = vperm.slane %v644, 0
  %v673 = vperm.slane %v645, 0
  %v674 = vperm.slane %v646, 0
  %v679 = vadd.f32 %v659, %v671
  %v680 = vadd.f32 %v660, %v671
  %v681 = vadd.f32 %v661, %v672
  %v682 = vadd.f32 %v662, %v672
  %v683 = vadd.f32 %v663, %v673
  %v684 = vadd.f32 %v664, %v673
  %v685 = vadd.f32 %v665, %v674
  %v686 = vadd.f32 %v666, %v674
  %v687 = vmul.f32 %v679, 0.2
  %v688 = vmul.f32 %v680, 0.2
  %v689 = vmul.f32 %v681, 0.2
  %v690 = vmul.f32 %v682, 0.2
  %v691 = vmul.f32 %v683, 0.2
  %v692 = vmul.f32 %v684, 0.2
  %v693 = vmul.f32 %v685, 0.2
  %v694 = vmul.f32 %v686, 0.2
  %v695 = vmax.f32 %v679, %v687
  %v696 = vmax.f32 %v680, %v688
  %v697 = vmax.f32 %v681, %v689
  %v698 = vmax.f32 %v682, %v690
  %v699 = vmax.f32 %v683, %v691
  %v700 = vmax.f32 %v684, %v692
  %v701 = vmax.f32 %v685, %v693
  %v702 = vmax.f32 %v686, %v694
  %v703 = vld [vmem:[%s4] sm:$0xff]
  %v704 = vld [vmem:[%s4 + $0x8] sm:$0xff]
  %v705 = vmul.f32 %v695, %v703
  %v706 = vmul.f32 %v696, %v704
  %v707 = vmul.f32 %v697, %v703
  %v708 = vmul.f32 %v698, %v704
  %v709 = vmul.f32 %v699, %v703
  %v710 = vmul.f32 %v700, %v704
  %v711 = vmul.f32 %v701, %v703
  %v712 = vmul.f32 %v702, %v704
  %v713 = vsel %vm488, %v705, 0.0
  %v714 = vsel %vm488, %v706, 0.0
  %v715 = vadd.f32 %v713, %v714
  %v716 = vrot.slane %v715, 4
  %v717 = vadd.f32 %v715, %v716
  %v718 = vrot.slane %v717, 2
  %v719 = vadd.f32 %v717, %v718
  %v720 = vrot.slane %v719, 1
  %v721 = vadd.f32 %v719, %v720
  %v722 = vsel %vm488, %v707, 0.0
  %v723 = vsel %vm488, %v708, 0.0
  %v724 = vadd.f32 %v722, %v723
  %v725 = vrot.slane %v724, 4
  %v726 = vadd.f32 %v724, %v725
  %v727 = vrot.slane %v726, 2
  %v728 = vadd.f32 %v726, %v727
  %v729 = vrot.slane %v728, 1
  %v730 = vadd.f32 %v728, %v729
  %v731 = vsel %vm488, %v709, 0.0
  %v732 = vsel %vm488, %v710, 0.0
  %v733 = vadd.f32 %v731, %v732
  %v734 = vrot.slane %v733, 4
  %v735 = vadd.f32 %v733, %v734
  %v736 = vrot.slane %v735, 2
  %v737 = vadd.f32 %v735, %v736
  %v738 = vrot.slane %v737, 1
  %v739 = vadd.f32 %v737, %v738
  %v740 = vsel %vm488, %v711, 0.0
  %v741 = vsel %vm488, %v712, 0.0
  %v742 = vadd.f32 %v740, %v741
  %v743 = vrot.slane %v742, 4
  %v744 = vadd.f32 %v742, %v743
  %v745 = vrot.slane %v744, 2
  %v746 = vadd.f32 %v744, %v745
  %v747 = vrot.slane %v746, 1
  %v748 = vadd.f32 %v746, %v747
  %vm753 = vcmask 1041409
  %v754 = vsel %vm753, %v730, %v721
  %vm755 = vcmask 1042434
  %v756 = vsel %vm755, %v739, %v754
  %vm757 = vcmask 1043459
  %v758 = vsel %vm757, %v748, %v756
  %vm760 = vcmask 519168
  %v761 = vsel %vm760, %v758, 0.0
  %762 = vadd.xlane.f32.xlu0 %v761
  %v763 = vpop.xlane.xlu0 %762
  %vm764 = vcmask 3072
  %765 = vst.msk [vmem:[%s5] sm:$0xf] %vm764, %v763
  // Predicated region
  $region22: #{critic_forward.7} parent=0 // pred_check
    _
  $region23: #{critic_forward.7} parent=0 // pred_check_branch
    %767 = sbr.rel (0) target = $region25
  $region24: #{critic_forward.7} parent=0 // pred_region
    _
  $region25: #{critic_forward.7} parent=0 // pred_fallthru
    _
  // Predicated region
  $region26: #{critic_forward.7} parent=0 // pred_check
    _
  $region27: #{critic_forward.7} parent=0 // pred_check_branch
    %769 = sbr.rel (0) target = $region29
  $region28: #{critic_forward.7} parent=0 // pred_region
    _
  $region29: #{critic_forward.7} parent=0 // pred_fallthru
    _

</llo_original>
